<compile_context>
chip_gen: v7x
topology: tpu7x:2x2x1
jax: 0.10.0
libtpu: 0.0.40
codegen_flags: <defaults>
</compile_context>

<pallas_src>
import math
import functools

import numpy as np
import jax
import jax.numpy as jnp
from jax import lax
from jax.experimental import pallas as pl
from jax.experimental.pallas import tpu as pltpu

_LANE = 128
_INV_PI = 1.0 / math.pi


# ----------------------------------------------------------------------------
# small helpers
# ----------------------------------------------------------------------------

def _round_up(x, m):
    return ((x + m - 1) // m) * m


def _pick_tile(dim, pref):
    """Largest multiple of 128 <= pref that divides dim (dim % 128 == 0)."""
    t = min(pref, dim)
    t = (t // _LANE) * _LANE
    while dim % t:
        t -= _LANE
    return t


def _pad2d(x, rows, cols):
    return jnp.pad(x, ((0, rows - x.shape[0]), (0, cols - x.shape[1])))


def _acos(x):
    """Branch-free arccos on [-1, 1], |err| <~ 2e-8 (A&S 4.4.45); VPU-only."""
    ax = jnp.abs(x)
    p = -0.0012624911 * ax + 0.0066700901
    p = p * ax - 0.0170881256
    p = p * ax + 0.0308918810
    p = p * ax - 0.0501743046
    p = p * ax + 0.0889789874
    p = p * ax - 0.2145988016
    p = p * ax + 1.5707963050
    r = jnp.sqrt(jnp.maximum(1.0 - ax, 0.0)) * p
    return jnp.where(x < 0.0, math.pi - r, r)


# ----------------------------------------------------------------------------
# adjacency construction (two-pass, block-structured)
# ----------------------------------------------------------------------------

def _intra_degree_kernel(segr_ref, segc_ref, nr_ref, nc_ref, deg_ref):
    """Pass 1: per-row sums of the (masked) intra-modality similarity block."""
    @pl.when(pl.program_id(2) == 0)
    def _init():
        deg_ref[...] = jnp.zeros_like(deg_ref)

    segr = segr_ref[...]                       # (TMa, 1) int32, -1 == padding
    segc = segc_ref[...]                       # (1, TN)  int32
    cos = lax.dot_general(nr_ref[0], nc_ref[0], (((1,), (1,)), ((), ())),
                          preferred_element_type=jnp.float32) * 0.99999
    mask = jnp.logical_and(segr == segc, segr >= 0)
    sim = jnp.where(mask, 1.0 - _acos(cos) * _INV_PI, 0.0)
    deg_ref[...] += jnp.sum(sim, axis=1, keepdims=True)


def _intra_norm_kernel(segr_ref, segc_ref, nr_ref, nc_ref, dr_ref, dc_ref,
                       out_ref):
    """Pass 2: recompute the sim tile, normalize, write bf16 directly."""
    segr = segr_ref[...]
    segc = segc_ref[...]
    cos = lax.dot_general(nr_ref[0], nc_ref[0], (((1,), (1,)), ((), ())),
                          preferred_element_type=jnp.float32) * 0.99999
    mask = jnp.logical_and(segr == segc, segr >= 0)
    sim = jnp.where(mask, 1.0 - _acos(cos) * _INV_PI, 0.0)
    out_ref[...] = (sim * dr_ref[...] * dc_ref[...]).astype(out_ref.dtype)


def build_adjacency(a, v, t, dia_len, n_pad):
    """Block-structured, symmetrically-normalized adjacency.

    Returns:
      intra: (3*Np, Np) bf16 -- dense per-modality blocks of D^-1/2 A D^-1/2
      cross: (3, 3*Np, 1) f32 -- cross[n, m*Np+r] = Anorm[m*Np+r, n*Np+r]
    """
    D = t.shape[1]
    Np = n_pad
    Mp = 3 * Np

    # L2-row-normalize each modality. (Padding rows are all-zero -> mapped to 0;
    # PyTorch would NaN on a genuinely zero feature row.)
    normed = []
    for x in (a, v, t):
        xp = _pad2d(x, Np, D)
        nrm = jnp.sqrt(jnp.sum(xp * xp, axis=1, keepdims=True))
        normed.append(jnp.where(nrm > 0, xp / nrm, 0.0))
    normed = jnp.stack(normed, axis=0)                      # (3, Np, D) f32

    # dialogue segment ids; -1 marks padded rows (dia_len is static)
    seg = np.full((Np,), -1, dtype=np.int32)
    start = 0
    for di, length in enumerate(dia_len):
        seg[start:start + length] = di
        start += length
    seg_row = jnp.asarray(seg).reshape(Np, 1)
    seg_col = jnp.asarray(seg).reshape(1, Np)

    TMa = _pick_tile(Np, 256)
    TN = _pick_tile(Np, 512)
    n_rt = Np // TMa
    n_ct = Np // TN

    # ---- pass 1: intra-modality row degrees (tiny output) ----
    deg_intra = pl.pallas_call(
        _intra_degree_kernel,
        grid=(3, n_rt, n_ct),
        in_specs=[
            pl.BlockSpec((TMa, 1), lambda m, i, j: (i, 0)),
            pl.BlockSpec((1, TN), lambda m, i, j: (0, j)),
            pl.BlockSpec((1, TMa, D), lambda m, i, j: (m, i, 0)),
            pl.BlockSpec((1, TN, D), lambda m, i, j: (m, j, 0)),
        ],
        out_specs=pl.BlockSpec((TMa, 1), lambda m, i, j: (m * n_rt + i, 0)),
        out_shape=jax.ShapeDtypeStruct((Mp, 1), jnp.float32),
        compiler_params=pltpu.CompilerParams(
            dimension_semantics=("parallel", "parallel", "arbitrary")),
    )(seg_row, seg_col, normed, normed)

    # ---- cross-modal diagonals + full degrees (O(Np) work -> JAX glue) ----
    valid = (jnp.asarray(seg) >= 0).astype(jnp.float32)                   # (Np,)
    cross_cos = jnp.einsum('mid,nid->mni', normed, normed) * 0.99999      # (3,3,Np)
    cross_sim = 1.0 - jnp.arccos(jnp.clip(cross_cos, -1.0, 1.0)) / math.pi
    cross_sim = cross_sim * (1.0 - jnp.eye(3, dtype=jnp.float32))[:, :, None]
    cross_sim = cross_sim * valid[None, None, :]

    deg = deg_intra.reshape(3, Np) + jnp.sum(cross_sim, axis=1)           # (3, Np)
    dinv = jnp.where(deg > 0, lax.rsqrt(deg), 0.0)

    cross_norm = cross_sim * dinv[:, None, :] * dinv[None, :, :]          # (3,3,Np)
    cross = jnp.transpose(cross_norm, (1, 0, 2)).reshape(3, Mp, 1)        # [n, m*Np+r]

    dinv_rows = dinv.reshape(Mp, 1)
    dinv_lane = dinv.reshape(1, Mp)

    # ---- pass 2: normalized intra blocks, written directly in bf16 ----
    intra = pl.pallas_call(
        _intra_norm_kernel,
        grid=(3, n_ct, n_rt),   # row tiles innermost -> column operands resident
        in_specs=[
            pl.BlockSpec((TMa, 1), lambda m, j, i: (i, 0)),               # seg rows
            pl.BlockSpec((1, TN), lambda m, j, i: (0, j)),                # seg cols
            pl.BlockSpec((1, TMa, D), lambda m, j, i: (m, i, 0)),         # feats rows
            pl.BlockSpec((1, TN, D), lambda m, j, i: (m, j, 0)),          # feats cols
            pl.BlockSpec((TMa, 1), lambda m, j, i: (m * n_rt + i, 0)),    # dinv rows
            pl.BlockSpec((1, TN), lambda m, j, i: (0, m * n_ct + j)),     # dinv cols
        ],
        out_specs=pl.BlockSpec((TMa, TN), lambda m, j, i: (m * n_rt + i, j)),
        out_shape=jax.ShapeDtypeStruct((Mp, Np), jnp.bfloat16),
        compiler_params=pltpu.CompilerParams(
            dimension_semantics=("parallel", "parallel", "parallel")),
    )(seg_row, seg_col, normed, normed, dinv_rows, dinv_lane)

    return intra, cross


# ----------------------------------------------------------------------------
# GCNII kernels
# ----------------------------------------------------------------------------

def _fc_relu_kernel(x_ref, w_ref, b_ref, h0_ref, h_ref):
    y = jnp.dot(x_ref[...], w_ref[...], preferred_element_type=jnp.float32)
    y = jnp.maximum(y + b_ref[...], 0.0)
    h0_ref[...] = y                           # f32 copy kept for the GCNII blend
    h_ref[...] = y.astype(jnp.bfloat16)       # bf16 MXU operand for layer 0


def pallas_fc_relu(x, w, b):
    Mp, K = x.shape
    Hp = w.shape[1]
    TM = _pick_tile(Mp, 512)
    return pl.pallas_call(
        _fc_relu_kernel,
        grid=(Mp // TM,),
        in_specs=[
            pl.BlockSpec((TM, K), lambda i: (i, 0)),
            pl.BlockSpec((K, Hp), lambda i: (0, 0)),
            pl.BlockSpec((1, Hp), lambda i: (0, 0)),
        ],
        out_specs=[
            pl.BlockSpec((TM, Hp), lambda i: (i, 0)),
            pl.BlockSpec((TM, Hp), lambda i: (i, 0)),
        ],
        out_shape=[
            jax.ShapeDtypeStruct((Mp, Hp), jnp.float32),
            jax.ShapeDtypeStruct((Mp, Hp), jnp.bfloat16),
        ],
        compiler_params=pltpu.CompilerParams(dimension_semantics=("parallel",)),
    )(x, w, b.reshape(1, Hp))


def _gcn_layer_kernel(coef_ref, adj_ref, h_ref, cross_ref, h0_ref, w_ref,
                      o_ref, acc_ref, *, variant, hidden, n_pad):
    m = pl.program_id(0)
    i = pl.program_id(1)
    k = pl.program_id(2)
    TM = acc_ref.shape[0]
    TK = adj_ref.shape[1]

    @pl.when(k == 0)
    def _init():
        acc_ref[...] = jnp.zeros_like(acc_ref)

    # hi_m += intra_m[i-tile, k-tile] @ h_m[k-tile]  (bf16 MXU, f32 accumulate).
    # h is fully VMEM-resident; the K strip is sliced in-kernel.
    koff = pl.multiple_of(m * n_pad + k * TK, _LANE)
    acc_ref[...] += jnp.dot(adj_ref[...], h_ref[pl.ds(koff, TK), :],
                            preferred_element_type=jnp.float32)

    @pl.when(k == pl.num_programs(2) - 1)
    def _finalize():
        hi = acc_ref[...]
        # cross-modal blocks are pure diagonals: hi_m += c_{m,n} * h_n  (VPU)
        for n in range(3):
            roff = pl.multiple_of(n * n_pad + i * TM, _LANE)
            hi = hi + cross_ref[n] * h_ref[pl.ds(roff, TM), :].astype(jnp.float32)

        alpha = coef_ref[0]
        theta = coef_ref[1]
        h0 = h0_ref[...]
        if variant:
            # cat([hi, h0], 1) @ W  ==  hi @ W[:H] + h0 @ W[H:]  (no lane-concat)
            sup_w = (jnp.dot(hi.astype(jnp.bfloat16), w_ref[0:hidden, :],
                             preferred_element_type=jnp.float32)
                     + jnp.dot(h0.astype(jnp.bfloat16), w_ref[hidden:2 * hidden, :],
                               preferred_element_type=jnp.float32))
            r = (1.0 - alpha) * hi + alpha * h0
            out = theta * sup_w + (1.0 - theta) * r
        else:
            support = (1.0 - alpha) * hi + alpha * h0
            out = (theta * jnp.dot(support.astype(jnp.bfloat16), w_ref[...],
                                   preferred_element_type=jnp.float32)
                   + (1.0 - theta) * support)
        o_ref[...] = jnp.maximum(out, 0.0).astype(o_ref.dtype)


def pallas_gcn_layer(coef, intra, cross, h, h0, w, *, variant, n_pad):
    Mp, Hp = h.shape
    Np = n_pad
    TM = _pick_tile(Np, 512)
    TK = _pick_tile(Np, 1024)
    n_rt = Np // TM
    n_kt = Np // TK
    kernel = functools.partial(_gcn_layer_kernel, variant=bool(variant),
                               hidden=Hp, n_pad=Np)
    return pl.pallas_call(
        kernel,
        grid=(3, n_rt, n_kt),
        in_specs=[
            pl.BlockSpec(memory_space=pltpu.MemorySpace.SMEM),             # [alpha, theta]
            pl.BlockSpec((TM, TK), lambda m, i, k: (m * n_rt + i, k)),     # intra (bf16)
            pl.BlockSpec((Mp, Hp), lambda m, i, k: (0, 0)),                # h (resident bf16)
            pl.BlockSpec((3, TM, 1), lambda m, i, k: (0, m * n_rt + i, 0)),  # cross diag (f32)
            pl.BlockSpec((TM, Hp), lambda m, i, k: (m * n_rt + i, 0)),     # h0 (f32)
            pl.BlockSpec(w.shape, lambda m, i, k: (0, 0)),                 # W (bf16)
        ],
        out_specs=pl.BlockSpec((TM, Hp), lambda m, i, k: (m * n_rt + i, 0)),
        out_shape=jax.ShapeDtypeStruct((Mp, Hp), jnp.bfloat16),
        scratch_shapes=[pltpu.VMEM((TM, Hp), jnp.float32)],
        compiler_params=pltpu.CompilerParams(
            dimension_semantics=("parallel", "parallel", "arbitrary")),
    )(coef, intra, h, cross, h0, w)


# ----------------------------------------------------------------------------
# my_GCN forward (jitted end-to-end)
# ----------------------------------------------------------------------------

def _forward(a, v, t, speaker, params, *, utt_num, lamda, alpha, variant, nlayers):
    n_dim = a.shape[1]
    H = params["fc_w"].shape[1]
    Hp = max(_LANE, _round_up(H, _LANE))
    N = sum(utt_num)
    Np = max(_LANE, _round_up(N, _LANE))

    # speaker embedding (argmax + gather stay in JAX glue)
    spk_rows = jnp.concatenate(
        [speaker[:x, i, :] for i, x in enumerate(utt_num)], axis=0)
    spk_idx = jnp.argmax(spk_rows, axis=-1)
    t = t + params["speaker_emb"][spk_idx]

    intra, cross = build_adjacency(a, v, t, utt_num, Np)

    feats = jnp.concatenate(
        [_pad2d(a, Np, n_dim), _pad2d(v, Np, n_dim), _pad2d(t, Np, n_dim)], axis=0)

    # zero-pad hidden width to a lane-aligned 128; padded rows/cols stay zero so
    # the real-row math is unchanged and padding never contaminates real rows.
    fc_w = _pad2d(params["fc_w"], n_dim, Hp)
    fc_b = jnp.pad(params["fc_b"], (0, Hp - H))
    conv_ws = []
    for w in params["conv_w"]:
        if variant:
            wp = jnp.zeros((2 * Hp, Hp), jnp.float32)
            wp = wp.at[:H, :H].set(w[:H])
            wp = wp.at[Hp:Hp + H, :H].set(w[H:])
        else:
            wp = _pad2d(w, Hp, Hp)
        conv_ws.append(wp.astype(jnp.bfloat16))

    # per-layer [alpha, theta] scalars as one array (SMEM operands per layer)
    coefs = jnp.asarray(
        [[alpha, math.log(lamda / (l + 1) + 1.0)] for l in range(nlayers)],
        dtype=jnp.float32)

    # dropout(p=0.0) == identity
    h0, h = pallas_fc_relu(feats, fc_w, fc_b)
    # TODO(synk): when 3*Np*Np bf16 fits VMEM, the layer loop could be fused
    # into one pallas_call with the adjacency resident across layers.
    for l in range(nlayers):
        h = pallas_gcn_layer(coefs[l], intra, cross, h, h0, conv_ws[l],
                             variant=variant, n_pad=Np)

    h = h[:, :H].astype(jnp.float32)
    full = jnp.concatenate([feats, h], axis=-1)               # (3Np, n_dim + H)
    return jnp.concatenate([full[m * Np:m * Np + N] for m in range(3)], axis=-1)


my_gcn_forward = jax.jit(
    _forward, static_argnames=("utt_num", "lamda", "alpha", "variant", "nlayers"))


# ----------------------------------------------------------------------------
# main
# ----------------------------------------------------------------------------

if __name__ == "__main__":
    n_dim = 32
    nhidden = 32
    nlayers = 2
    lamda = 0.5
    alpha = 0.1
    variant = False
    speakers_num = 4
    utt_num = (3, 5)       # two dialogues, N = 8 utterances total
    N = sum(utt_num)

    key = jax.random.PRNGKey(0)
    k = jax.random.split(key, 8)

    stdv = 1.0 / math.sqrt(nhidden)
    conv_in = 2 * nhidden if variant else nhidden
    params = {
        "speaker_emb": jax.random.normal(k[0], (speakers_num, n_dim), jnp.float32),
        "fc_w": jax.random.uniform(k[1], (n_dim, nhidden), jnp.float32,
                                   -1.0 / math.sqrt(n_dim), 1.0 / math.sqrt(n_dim)),
        "fc_b": jax.random.uniform(k[2], (nhidden,), jnp.float32,
                                   -1.0 / math.sqrt(n_dim), 1.0 / math.sqrt(n_dim)),
        "conv_w": [jax.random.uniform(k[3 + i], (conv_in, nhidden), jnp.float32,
                                      -stdv, stdv) for i in range(nlayers)],
    }
    # TODO(synk): MultiModalEncoder (self.encoder) is constructed but never
    # called in my_GCN.forward, so its parameters / attention are omitted.

    a = jax.random.normal(k[5], (N, n_dim), dtype=jnp.float32)
    v = jax.random.normal(k[6], (N, n_dim), dtype=jnp.float32)
    t = jax.random.normal(k[7], (N, n_dim), dtype=jnp.float32)
    speaker = jax.random.normal(jax.random.PRNGKey(1),
                                (max(utt_num), len(utt_num), speakers_num),
                                dtype=jnp.float32)

    out = my_gcn_forward(a, v, t, speaker, params,
                         utt_num=utt_num, lamda=lamda, alpha=alpha,
                         variant=variant, nlayers=nlayers)
    out = jax.block_until_ready(out)
    assert out.shape == (N, 3 * (n_dim + nhidden)), out.shape
    assert bool(jnp.all(jnp.isfinite(out)))
    print("KERNEL_OK")
</pallas_src>

<mosaic_0001>
module attributes {stable_mosaic.version = 11 : i64} {
  func.func @_intra_degree_kernel(%arg0: i32, %arg1: i32, %arg2: i32, %arg3: memref<128x1xi32, #tpu.memory_space<vmem>>, %arg4: memref<1x128xi32, #tpu.memory_space<vmem>>, %arg5: memref<1x128x32xf32, #tpu.memory_space<vmem>>, %arg6: memref<1x128x32xf32, #tpu.memory_space<vmem>>, %arg7: memref<128x1xf32, #tpu.memory_space<vmem>>) attributes {dimension_semantics = [#tpu.dimension_semantics<parallel>, #tpu.dimension_semantics<parallel>, #tpu.dimension_semantics<arbitrary>], iteration_bounds = array<i64: 3, 1, 1>, scalar_prefetch = 0 : i64, scratch_operands = 0 : i64, tpu.core_type = #tpu.core_type<tc>, window_params = [{transform_indices = @transform_0, window_bounds = array<i64: 128, 1>}, {transform_indices = @transform_1, window_bounds = array<i64: 1, 128>}, {transform_indices = @transform_2, window_bounds = array<i64: 1, 128, 32>}, {transform_indices = @transform_3, window_bounds = array<i64: 1, 128, 32>}, {transform_indices = @transform_4, window_bounds = array<i64: 128, 1>}]} {
    %c0_i32 = arith.constant 0 : i32
    %0 = arith.cmpi eq, %arg2, %c0_i32 : i32
    %1 = arith.extui %0 : i1 to i32
    %c0_i32_0 = arith.constant 0 : i32
    %2 = arith.cmpi ne, %1, %c0_i32_0 : i32
    scf.if %2 {
      %cst_32 = arith.constant 0.000000e+00 : f32
      %64 = vector.broadcast %cst_32 : f32 to vector<128x1xf32>
      %c0_33 = arith.constant 0 : index
      %c0_34 = arith.constant 0 : index
      %65 = vector.load %arg7[%c0_33, %c0_34] : memref<128x1xf32, #tpu.memory_space<vmem>>, vector<128x1xf32>
      tpu.vector_store %arg7[%c0_33, %c0_34], %64 {strides = array<i32>} : memref<128x1xf32, #tpu.memory_space<vmem>>, vector<128x1xf32>,
    } else {
    }
    %c0 = arith.constant 0 : index
    %c0_1 = arith.constant 0 : index
    %3 = vector.load %arg3[%c0, %c0_1] : memref<128x1xi32, #tpu.memory_space<vmem>>, vector<128x1xi32>
    %c0_2 = arith.constant 0 : index
    %c0_3 = arith.constant 0 : index
    %4 = vector.load %arg4[%c0_2, %c0_3] : memref<1x128xi32, #tpu.memory_space<vmem>>, vector<1x128xi32>
    %c0_4 = arith.constant 0 : index
    %c0_5 = arith.constant 0 : index
    %c0_6 = arith.constant 0 : index
    %5 = vector.load %arg5[%c0_4, %c0_5, %c0_6] : memref<1x128x32xf32, #tpu.memory_space<vmem>>, vector<1x128x32xf32>
    %6 = vector.shape_cast %5 : vector<1x128x32xf32> to vector<128x32xf32>
    %c0_7 = arith.constant 0 : index
    %c0_8 = arith.constant 0 : index
    %c0_9 = arith.constant 0 : index
    %7 = vector.load %arg6[%c0_7, %c0_8, %c0_9] : memref<1x128x32xf32, #tpu.memory_space<vmem>>, vector<1x128x32xf32>
    %8 = vector.shape_cast %7 : vector<1x128x32xf32> to vector<128x32xf32>
    %cst = arith.constant dense<0.000000e+00> : vector<128x128xf32>
    %9 = tpu.matmul %6, %8, %cst {dimension_numbers = #tpu.dot_dimension_numbers<[1], [1], [0], [0], [0, 0, 1, 0], [], []>} : vector<128x32xf32>, vector<128x32xf32>, vector<128x128xf32> -> vector<128x128xf32>
    %cst_10 = arith.constant 0.999989986 : f32
    %10 = vector.broadcast %cst_10 : f32 to vector<128x128xf32>
    %11 = arith.mulf %9, %10 : vector<128x128xf32>
    %12 = vector.broadcast %3 : vector<128x1xi32> to vector<128x128xi32>
    %13 = vector.broadcast %4 : vector<1x128xi32> to vector<128x128xi32>
    %14 = arith.cmpi eq, %12, %13 : vector<128x128xi32>
    %c0_i32_11 = arith.constant 0 : i32
    %15 = vector.broadcast %c0_i32_11 : i32 to vector<128x1xi32>
    %16 = arith.cmpi sge, %3, %15 : vector<128x1xi32>
    %17 = vector.broadcast %16 : vector<128x1xi1> to vector<128x128xi1>
    %18 = arith.andi %14, %17 : vector<128x128xi1>
    %19 = math.absf %11 : vector<128x128xf32>
    %cst_12 = arith.constant -0.0012624911 : f32
    %20 = vector.broadcast %cst_12 : f32 to vector<128x128xf32>
    %21 = arith.mulf %20, %19 : vector<128x128xf32>
    %cst_13 = arith.constant 6.670090e-03 : f32
    %22 = vector.broadcast %cst_13 : f32 to vector<128x128xf32>
    %23 = arith.addf %21, %22 : vector<128x128xf32>
    %24 = arith.mulf %23, %19 : vector<128x128xf32>
    %cst_14 = arith.constant 0.0170881264 : f32
    %25 = vector.broadcast %cst_14 : f32 to vector<128x128xf32>
    %26 = arith.subf %24, %25 : vector<128x128xf32>
    %27 = arith.mulf %26, %19 : vector<128x128xf32>
    %cst_15 = arith.constant 0.0308918804 : f32
    %28 = vector.broadcast %cst_15 : f32 to vector<128x128xf32>
    %29 = arith.addf %27, %28 : vector<128x128xf32>
    %30 = arith.mulf %29, %19 : vector<128x128xf32>
    %cst_16 = arith.constant 0.0501743034 : f32
    %31 = vector.broadcast %cst_16 : f32 to vector<128x128xf32>
    %32 = arith.subf %30, %31 : vector<128x128xf32>
    %33 = arith.mulf %32, %19 : vector<128x128xf32>
    %cst_17 = arith.constant 0.0889789909 : f32
    %34 = vector.broadcast %cst_17 : f32 to vector<128x128xf32>
    %35 = arith.addf %33, %34 : vector<128x128xf32>
    %36 = arith.mulf %35, %19 : vector<128x128xf32>
    %cst_18 = arith.constant 0.214598805 : f32
    %37 = vector.broadcast %cst_18 : f32 to vector<128x128xf32>
    %38 = arith.subf %36, %37 : vector<128x128xf32>
    %39 = arith.mulf %38, %19 : vector<128x128xf32>
    %cst_19 = arith.constant 1.57079625 : f32
    %40 = vector.broadcast %cst_19 : f32 to vector<128x128xf32>
    %41 = arith.addf %39, %40 : vector<128x128xf32>
    %cst_20 = arith.constant 1.000000e+00 : f32
    %42 = vector.broadcast %cst_20 : f32 to vector<128x128xf32>
    %43 = arith.subf %42, %19 : vector<128x128xf32>
    %cst_21 = arith.constant 0.000000e+00 : f32
    %44 = vector.broadcast %cst_21 : f32 to vector<128x128xf32>
    %45 = arith.maximumf %43, %44 : vector<128x128xf32>
    %46 = math.sqrt %45 : vector<128x128xf32>
    %47 = arith.mulf %46, %41 : vector<128x128xf32>
    %cst_22 = arith.constant 0.000000e+00 : f32
    %48 = vector.broadcast %cst_22 : f32 to vector<128x128xf32>
    %49 = arith.cmpf olt, %11, %48 : vector<128x128xf32>
    %cst_23 = arith.constant 3.14159274 : f32
    %50 = vector.broadcast %cst_23 : f32 to vector<128x128xf32>
    %51 = arith.subf %50, %47 : vector<128x128xf32>
    %52 = arith.select %49, %51, %47 : vector<128x128xi1>, vector<128x128xf32>
    %cst_24 = arith.constant 0.318309873 : f32
    %53 = vector.broadcast %cst_24 : f32 to vector<128x128xf32>
    %54 = arith.mulf %52, %53 : vector<128x128xf32>
    %cst_25 = arith.constant 1.000000e+00 : f32
    %55 = vector.broadcast %cst_25 : f32 to vector<128x128xf32>
    %56 = arith.subf %55, %54 : vector<128x128xf32>
    %cst_26 = arith.constant 0.000000e+00 : f32
    %57 = vector.broadcast %cst_26 : f32 to vector<128x128xf32>
    %58 = arith.select %18, %56, %57 : vector<128x128xi1>, vector<128x128xf32>
    %c0_27 = arith.constant 0 : index
    %c0_28 = arith.constant 0 : index
    %59 = vector.load %arg7[%c0_27, %c0_28] : memref<128x1xf32, #tpu.memory_space<vmem>>, vector<128x1xf32>
    %cst_29 = arith.constant dense<0.000000e+00> : vector<128xf32>
    %60 = vector.multi_reduction <add>, %58, %cst_29 [1] : vector<128x128xf32> to vector<128xf32>
    %61 = vector.shape_cast %60 : vector<128xf32> to vector<128x1xf32>
    %62 = arith.addf %59, %61 : vector<128x1xf32>
    %c0_30 = arith.constant 0 : index
    %c0_31 = arith.constant 0 : index
    %63 = vector.load %arg7[%c0_30, %c0_31] : memref<128x1xf32, #tpu.memory_space<vmem>>, vector<128x1xf32>
    tpu.vector_store %arg7[%c0_30, %c0_31], %62 {strides = array<i32>} : memref<128x1xf32, #tpu.memory_space<vmem>>, vector<128x1xf32>,
    return
  }
  func.func @transform_0(%arg0: i32, %arg1: i32, %arg2: i32) -> (i32, i32) {
    %c0_i32 = arith.constant 0 : i32
    %c0_i32_0 = arith.constant 0 : i32
    return %arg1, %c0_i32 : i32, i32
  }
  func.func @transform_1(%arg0: i32, %arg1: i32, %arg2: i32) -> (i32, i32) {
    %c0_i32 = arith.constant 0 : i32
    %c0_i32_0 = arith.constant 0 : i32
    return %c0_i32, %arg2 : i32, i32
  }
  func.func @transform_2(%arg0: i32, %arg1: i32, %arg2: i32) -> (i32, i32, i32) {
    %c0_i32 = arith.constant 0 : i32
    %c0_i32_0 = arith.constant 0 : i32
    return %arg0, %arg1, %c0_i32 : i32, i32, i32
  }
  func.func @transform_3(%arg0: i32, %arg1: i32, %arg2: i32) -> (i32, i32, i32) {
    %c0_i32 = arith.constant 0 : i32
    %c0_i32_0 = arith.constant 0 : i32
    return %arg0, %arg2, %c0_i32 : i32, i32, i32
  }
  func.func @transform_4(%arg0: i32, %arg1: i32, %arg2: i32) -> (i32, i32) {
    %c1_i32 = arith.constant 1 : i32
    %0 = arith.muli %arg0, %c1_i32 : i32
    %1 = arith.addi %0, %arg1 : i32
    %c0_i32 = arith.constant 0 : i32
    %c0_i32_0 = arith.constant 0 : i32
    return %1, %c0_i32 : i32, i32
  }
}

module attributes {stable_mosaic.version = 11 : i64} {
  func.func @_intra_norm_kernel(%arg0: i32, %arg1: i32, %arg2: i32, %arg3: memref<128x1xi32, #tpu.memory_space<vmem>>, %arg4: memref<1x128xi32, #tpu.memory_space<vmem>>, %arg5: memref<1x128x32xf32, #tpu.memory_space<vmem>>, %arg6: memref<1x128x32xf32, #tpu.memory_space<vmem>>, %arg7: memref<128x1xf32, #tpu.memory_space<vmem>>, %arg8: memref<1x128xf32, #tpu.memory_space<vmem>>, %arg9: memref<128x128xbf16, #tpu.memory_space<vmem>>) attributes {dimension_semantics = [#tpu.dimension_semantics<parallel>, #tpu.dimension_semantics<parallel>, #tpu.dimension_semantics<parallel>], iteration_bounds = array<i64: 3, 1, 1>, scalar_prefetch = 0 : i64, scratch_operands = 0 : i64, tpu.core_type = #tpu.core_type<tc>, window_params = [{transform_indices = @transform_0, window_bounds = array<i64: 128, 1>}, {transform_indices = @transform_1, window_bounds = array<i64: 1, 128>}, {transform_indices = @transform_2, window_bounds = array<i64: 1, 128, 32>}, {transform_indices = @transform_3, window_bounds = array<i64: 1, 128, 32>}, {transform_indices = @transform_4, window_bounds = array<i64: 128, 1>}, {transform_indices = @transform_5, window_bounds = array<i64: 1, 128>}, {transform_indices = @transform_6, window_bounds = array<i64: 128, 128>}]} {
    %c0 = arith.constant 0 : index
    %c0_0 = arith.constant 0 : index
    %0 = vector.load %arg3[%c0, %c0_0] : memref<128x1xi32, #tpu.memory_space<vmem>>, vector<128x1xi32>
    %c0_1 = arith.constant 0 : index
    %c0_2 = arith.constant 0 : index
    %1 = vector.load %arg4[%c0_1, %c0_2] : memref<1x128xi32, #tpu.memory_space<vmem>>, vector<1x128xi32>
    %c0_3 = arith.constant 0 : index
    %c0_4 = arith.constant 0 : index
    %c0_5 = arith.constant 0 : index
    %2 = vector.load %arg5[%c0_3, %c0_4, %c0_5] : memref<1x128x32xf32, #tpu.memory_space<vmem>>, vector<1x128x32xf32>
    %3 = vector.shape_cast %2 : vector<1x128x32xf32> to vector<128x32xf32>
    %c0_6 = arith.constant 0 : index
    %c0_7 = arith.constant 0 : index
    %c0_8 = arith.constant 0 : index
    %4 = vector.load %arg6[%c0_6, %c0_7, %c0_8] : memref<1x128x32xf32, #tpu.memory_space<vmem>>, vector<1x128x32xf32>
    %5 = vector.shape_cast %4 : vector<1x128x32xf32> to vector<128x32xf32>
    %cst = arith.constant dense<0.000000e+00> : vector<128x128xf32>
    %6 = tpu.matmul %3, %5, %cst {dimension_numbers = #tpu.dot_dimension_numbers<[1], [1], [0], [0], [0, 0, 1, 0], [], []>} : vector<128x32xf32>, vector<128x32xf32>, vector<128x128xf32> -> vector<128x128xf32>
    %cst_9 = arith.constant 0.999989986 : f32
    %7 = vector.broadcast %cst_9 : f32 to vector<128x128xf32>
    %8 = arith.mulf %6, %7 : vector<128x128xf32>
    %9 = vector.broadcast %0 : vector<128x1xi32> to vector<128x128xi32>
    %10 = vector.broadcast %1 : vector<1x128xi32> to vector<128x128xi32>
    %11 = arith.cmpi eq, %9, %10 : vector<128x128xi32>
    %c0_i32 = arith.constant 0 : i32
    %12 = vector.broadcast %c0_i32 : i32 to vector<128x1xi32>
    %13 = arith.cmpi sge, %0, %12 : vector<128x1xi32>
    %14 = vector.broadcast %13 : vector<128x1xi1> to vector<128x128xi1>
    %15 = arith.andi %11, %14 : vector<128x128xi1>
    %16 = math.absf %8 : vector<128x128xf32>
    %cst_10 = arith.constant -0.0012624911 : f32
    %17 = vector.broadcast %cst_10 : f32 to vector<128x128xf32>
    %18 = arith.mulf %17, %16 : vector<128x128xf32>
    %cst_11 = arith.constant 6.670090e-03 : f32
    %19 = vector.broadcast %cst_11 : f32 to vector<128x128xf32>
    %20 = arith.addf %18, %19 : vector<128x128xf32>
    %21 = arith.mulf %20, %16 : vector<128x128xf32>
    %cst_12 = arith.constant 0.0170881264 : f32
    %22 = vector.broadcast %cst_12 : f32 to vector<128x128xf32>
    %23 = arith.subf %21, %22 : vector<128x128xf32>
    %24 = arith.mulf %23, %16 : vector<128x128xf32>
    %cst_13 = arith.constant 0.0308918804 : f32
    %25 = vector.broadcast %cst_13 : f32 to vector<128x128xf32>
    %26 = arith.addf %24, %25 : vector<128x128xf32>
    %27 = arith.mulf %26, %16 : vector<128x128xf32>
    %cst_14 = arith.constant 0.0501743034 : f32
    %28 = vector.broadcast %cst_14 : f32 to vector<128x128xf32>
    %29 = arith.subf %27, %28 : vector<128x128xf32>
    %30 = arith.mulf %29, %16 : vector<128x128xf32>
    %cst_15 = arith.constant 0.0889789909 : f32
    %31 = vector.broadcast %cst_15 : f32 to vector<128x128xf32>
    %32 = arith.addf %30, %31 : vector<128x128xf32>
    %33 = arith.mulf %32, %16 : vector<128x128xf32>
    %cst_16 = arith.constant 0.214598805 : f32
    %34 = vector.broadcast %cst_16 : f32 to vector<128x128xf32>
    %35 = arith.subf %33, %34 : vector<128x128xf32>
    %36 = arith.mulf %35, %16 : vector<128x128xf32>
    %cst_17 = arith.constant 1.57079625 : f32
    %37 = vector.broadcast %cst_17 : f32 to vector<128x128xf32>
    %38 = arith.addf %36, %37 : vector<128x128xf32>
    %cst_18 = arith.constant 1.000000e+00 : f32
    %39 = vector.broadcast %cst_18 : f32 to vector<128x128xf32>
    %40 = arith.subf %39, %16 : vector<128x128xf32>
    %cst_19 = arith.constant 0.000000e+00 : f32
    %41 = vector.broadcast %cst_19 : f32 to vector<128x128xf32>
    %42 = arith.maximumf %40, %41 : vector<128x128xf32>
    %43 = math.sqrt %42 : vector<128x128xf32>
    %44 = arith.mulf %43, %38 : vector<128x128xf32>
    %cst_20 = arith.constant 0.000000e+00 : f32
    %45 = vector.broadcast %cst_20 : f32 to vector<128x128xf32>
    %46 = arith.cmpf olt, %8, %45 : vector<128x128xf32>
    %cst_21 = arith.constant 3.14159274 : f32
    %47 = vector.broadcast %cst_21 : f32 to vector<128x128xf32>
    %48 = arith.subf %47, %44 : vector<128x128xf32>
    %49 = arith.select %46, %48, %44 : vector<128x128xi1>, vector<128x128xf32>
    %cst_22 = arith.constant 0.318309873 : f32
    %50 = vector.broadcast %cst_22 : f32 to vector<128x128xf32>
    %51 = arith.mulf %49, %50 : vector<128x128xf32>
    %cst_23 = arith.constant 1.000000e+00 : f32
    %52 = vector.broadcast %cst_23 : f32 to vector<128x128xf32>
    %53 = arith.subf %52, %51 : vector<128x128xf32>
    %cst_24 = arith.constant 0.000000e+00 : f32
    %54 = vector.broadcast %cst_24 : f32 to vector<128x128xf32>
    %55 = arith.select %15, %53, %54 : vector<128x128xi1>, vector<128x128xf32>
    %c0_25 = arith.constant 0 : index
    %c0_26 = arith.constant 0 : index
    %56 = vector.load %arg7[%c0_25, %c0_26] : memref<128x1xf32, #tpu.memory_space<vmem>>, vector<128x1xf32>
    %57 = vector.broadcast %56 : vector<128x1xf32> to vector<128x128xf32>
    %58 = arith.mulf %55, %57 : vector<128x128xf32>
    %c0_27 = arith.constant 0 : index
    %c0_28 = arith.constant 0 : index
    %59 = vector.load %arg8[%c0_27, %c0_28] : memref<1x128xf32, #tpu.memory_space<vmem>>, vector<1x128xf32>
    %60 = vector.broadcast %59 : vector<1x128xf32> to vector<128x128xf32>
    %61 = arith.mulf %58, %60 : vector<128x128xf32>
    %62 = arith.truncf %61 : vector<128x128xf32> to vector<128x128xbf16>
    %c0_29 = arith.constant 0 : index
    %c0_30 = arith.constant 0 : index
    %63 = vector.load %arg9[%c0_29, %c0_30] : memref<128x128xbf16, #tpu.memory_space<vmem>>, vector<128x128xbf16>
    tpu.vector_store %arg9[%c0_29, %c0_30], %62 {strides = array<i32>} : memref<128x128xbf16, #tpu.memory_space<vmem>>, vector<128x128xbf16>,
    return
  }
  func.func @transform_0(%arg0: i32, %arg1: i32, %arg2: i32) -> (i32, i32) {
    %c0_i32 = arith.constant 0 : i32
    %c0_i32_0 = arith.constant 0 : i32
    return %arg2, %c0_i32 : i32, i32
  }
  func.func @transform_1(%arg0: i32, %arg1: i32, %arg2: i32) -> (i32, i32) {
    %c0_i32 = arith.constant 0 : i32
    %c0_i32_0 = arith.constant 0 : i32
    return %c0_i32, %arg1 : i32, i32
  }
  func.func @transform_2(%arg0: i32, %arg1: i32, %arg2: i32) -> (i32, i32, i32) {
    %c0_i32 = arith.constant 0 : i32
    %c0_i32_0 = arith.constant 0 : i32
    return %arg0, %arg2, %c0_i32 : i32, i32, i32
  }
  func.func @transform_3(%arg0: i32, %arg1: i32, %arg2: i32) -> (i32, i32, i32) {
    %c0_i32 = arith.constant 0 : i32
    %c0_i32_0 = arith.constant 0 : i32
    return %arg0, %arg1, %c0_i32 : i32, i32, i32
  }
  func.func @transform_4(%arg0: i32, %arg1: i32, %arg2: i32) -> (i32, i32) {
    %c1_i32 = arith.constant 1 : i32
    %0 = arith.muli %arg0, %c1_i32 : i32
    %1 = arith.addi %0, %arg2 : i32
    %c0_i32 = arith.constant 0 : i32
    %c0_i32_0 = arith.constant 0 : i32
    return %1, %c0_i32 : i32, i32
  }
  func.func @transform_5(%arg0: i32, %arg1: i32, %arg2: i32) -> (i32, i32) {
    %c1_i32 = arith.constant 1 : i32
    %0 = arith.muli %arg0, %c1_i32 : i32
    %1 = arith.addi %0, %arg1 : i32
    %c0_i32 = arith.constant 0 : i32
    %c0_i32_0 = arith.constant 0 : i32
    return %c0_i32, %1 : i32, i32
  }
  func.func @transform_6(%arg0: i32, %arg1: i32, %arg2: i32) -> (i32, i32) {
    %c1_i32 = arith.constant 1 : i32
    %0 = arith.muli %arg0, %c1_i32 : i32
    %1 = arith.addi %0, %arg2 : i32
    %c0_i32 = arith.constant 0 : i32
    return %1, %arg1 : i32, i32
  }
}

module attributes {stable_mosaic.version = 11 : i64} {
  func.func @_fc_relu_kernel(%arg0: i32, %arg1: memref<384x32xf32, #tpu.memory_space<vmem>>, %arg2: memref<32x128xf32, #tpu.memory_space<vmem>>, %arg3: memref<1x128xf32, #tpu.memory_space<vmem>>, %arg4: memref<384x128xf32, #tpu.memory_space<vmem>>, %arg5: memref<384x128xbf16, #tpu.memory_space<vmem>>) attributes {dimension_semantics = [#tpu.dimension_semantics<parallel>], iteration_bounds = array<i64: 1>, scalar_prefetch = 0 : i64, scratch_operands = 0 : i64, tpu.core_type = #tpu.core_type<tc>, window_params = [{transform_indices = @transform_0, window_bounds = array<i64: 384, 32>}, {pipeline_mode = #tpu.pipeline_mode<synchronous>, transform_indices = @transform_1, window_bounds = array<i64: 32, 128>}, {pipeline_mode = #tpu.pipeline_mode<synchronous>, transform_indices = @transform_2, window_bounds = array<i64: 1, 128>}, {transform_indices = @transform_3, window_bounds = array<i64: 384, 128>}, {transform_indices = @transform_4, window_bounds = array<i64: 384, 128>}]} {
    %c0 = arith.constant 0 : index
    %c0_0 = arith.constant 0 : index
    %0 = vector.load %arg1[%c0, %c0_0] : memref<384x32xf32, #tpu.memory_space<vmem>>, vector<384x32xf32>
    %c0_1 = arith.constant 0 : index
    %c0_2 = arith.constant 0 : index
    %1 = vector.load %arg2[%c0_1, %c0_2] : memref<32x128xf32, #tpu.memory_space<vmem>>, vector<32x128xf32>
    %cst = arith.constant dense<0.000000e+00> : vector<384x128xf32>
    %2 = tpu.matmul %0, %1, %cst {dimension_numbers = #tpu.dot_dimension_numbers<[1], [0], [0], [1], [0, 0, 1, 1], [], []>} : vector<384x32xf32>, vector<32x128xf32>, vector<384x128xf32> -> vector<384x128xf32>
    %c0_3 = arith.constant 0 : index
    %c0_4 = arith.constant 0 : index
    %3 = vector.load %arg3[%c0_3, %c0_4] : memref<1x128xf32, #tpu.memory_space<vmem>>, vector<1x128xf32>
    %4 = vector.broadcast %3 : vector<1x128xf32> to vector<384x128xf32>
    %5 = arith.addf %2, %4 : vector<384x128xf32>
    %cst_5 = arith.constant 0.000000e+00 : f32
    %6 = vector.broadcast %cst_5 : f32 to vector<384x128xf32>
    %7 = arith.maximumf %5, %6 : vector<384x128xf32>
    %c0_6 = arith.constant 0 : index
    %c0_7 = arith.constant 0 : index
    %8 = vector.load %arg4[%c0_6, %c0_7] : memref<384x128xf32, #tpu.memory_space<vmem>>, vector<384x128xf32>
    tpu.vector_store %arg4[%c0_6, %c0_7], %7 {strides = array<i32>} : memref<384x128xf32, #tpu.memory_space<vmem>>, vector<384x128xf32>,
    %9 = arith.truncf %7 : vector<384x128xf32> to vector<384x128xbf16>
    %c0_8 = arith.constant 0 : index
    %c0_9 = arith.constant 0 : index
    %10 = vector.load %arg5[%c0_8, %c0_9] : memref<384x128xbf16, #tpu.memory_space<vmem>>, vector<384x128xbf16>
    tpu.vector_store %arg5[%c0_8, %c0_9], %9 {strides = array<i32>} : memref<384x128xbf16, #tpu.memory_space<vmem>>, vector<384x128xbf16>,
    return
  }
  func.func @transform_0(%arg0: i32) -> (i32, i32) {
    %c0_i32 = arith.constant 0 : i32
    %c0_i32_0 = arith.constant 0 : i32
    return %arg0, %c0_i32 : i32, i32
  }
  func.func @transform_1(%arg0: i32) -> (i32, i32) {
    %c0_i32 = arith.constant 0 : i32
    %c0_i32_0 = arith.constant 0 : i32
    %c0_i32_1 = arith.constant 0 : i32
    return %c0_i32, %c0_i32_0 : i32, i32
  }
  func.func @transform_2(%arg0: i32) -> (i32, i32) {
    %c0_i32 = arith.constant 0 : i32
    %c0_i32_0 = arith.constant 0 : i32
    %c0_i32_1 = arith.constant 0 : i32
    return %c0_i32, %c0_i32_0 : i32, i32
  }
  func.func @transform_3(%arg0: i32) -> (i32, i32) {
    %c0_i32 = arith.constant 0 : i32
    %c0_i32_0 = arith.constant 0 : i32
    return %arg0, %c0_i32 : i32, i32
  }
  func.func @transform_4(%arg0: i32) -> (i32, i32) {
    %c0_i32 = arith.constant 0 : i32
    %c0_i32_0 = arith.constant 0 : i32
    return %arg0, %c0_i32 : i32, i32
  }
}

module attributes {stable_mosaic.version = 11 : i64} {
  func.func @_gcn_layer_kernel(%arg0: i32, %arg1: i32, %arg2: i32, %arg3: memref<2xf32, #tpu.memory_space<smem>>, %arg4: memref<128x128xbf16, #tpu.memory_space<vmem>>, %arg5: memref<384x128xbf16, #tpu.memory_space<vmem>>, %arg6: memref<3x128x1xf32, #tpu.memory_space<vmem>>, %arg7: memref<128x128xf32, #tpu.memory_space<vmem>>, %arg8: memref<128x128xbf16, #tpu.memory_space<vmem>>, %arg9: memref<128x128xbf16, #tpu.memory_space<vmem>>, %arg10: memref<128x128xf32, #tpu.memory_space<vmem>>) attributes {dimension_semantics = [#tpu.dimension_semantics<parallel>, #tpu.dimension_semantics<parallel>, #tpu.dimension_semantics<arbitrary>], iteration_bounds = array<i64: 3, 1, 1>, scalar_prefetch = 0 : i64, scratch_operands = 1 : i64, tpu.core_type = #tpu.core_type<tc>, window_params = [{transform_indices = @transform_0, window_bounds = array<i64: 2>}, {transform_indices = @transform_1, window_bounds = array<i64: 128, 128>}, {pipeline_mode = #tpu.pipeline_mode<synchronous>, transform_indices = @transform_2, window_bounds = array<i64: 384, 128>}, {transform_indices = @transform_3, window_bounds = array<i64: 3, 128, 1>}, {transform_indices = @transform_4, window_bounds = array<i64: 128, 128>}, {pipeline_mode = #tpu.pipeline_mode<synchronous>, transform_indices = @transform_5, window_bounds = array<i64: 128, 128>}, {transform_indices = @transform_6, window_bounds = array<i64: 128, 128>}]} {
    %c0_i32 = arith.constant 0 : i32
    %0 = arith.cmpi eq, %arg2, %c0_i32 : i32
    %1 = arith.extui %0 : i1 to i32
    %c0_i32_0 = arith.constant 0 : i32
    %2 = arith.cmpi ne, %1, %c0_i32_0 : i32
    scf.if %2 {
      %cst_10 = arith.constant 0.000000e+00 : f32
      %17 = vector.broadcast %cst_10 : f32 to vector<128x128xf32>
      %c0_11 = arith.constant 0 : index
      %c0_12 = arith.constant 0 : index
      %18 = vector.load %arg10[%c0_11, %c0_12] : memref<128x128xf32, #tpu.memory_space<vmem>>, vector<128x128xf32>
      tpu.vector_store %arg10[%c0_11, %c0_12], %17 {strides = array<i32>} : memref<128x128xf32, #tpu.memory_space<vmem>>, vector<128x128xf32>,
    } else {
    }
    %c128_i32 = arith.constant 128 : i32
    %3 = arith.muli %arg0, %c128_i32 : i32
    %c128_i32_1 = arith.constant 128 : i32
    %4 = arith.muli %arg2, %c128_i32_1 : i32
    %5 = arith.addi %3, %4 : i32
    %6 = tpu.assume_multiple %5, 128 : i32
    %c0 = arith.constant 0 : index
    %c0_2 = arith.constant 0 : index
    %7 = vector.load %arg10[%c0, %c0_2] : memref<128x128xf32, #tpu.memory_space<vmem>>, vector<128x128xf32>
    %c0_3 = arith.constant 0 : index
    %c0_4 = arith.constant 0 : index
    %8 = vector.load %arg4[%c0_3, %c0_4] : memref<128x128xbf16, #tpu.memory_space<vmem>>, vector<128x128xbf16>
    %9 = arith.index_cast %6 : i32 to index
    %c0_5 = arith.constant 0 : index
    %10 = vector.load %arg5[%9, %c0_5] : memref<384x128xbf16, #tpu.memory_space<vmem>>, vector<128x128xbf16>
    %cst = arith.constant dense<0.000000e+00> : vector<128x128xf32>
    %11 = tpu.matmul %8, %10, %cst {dimension_numbers = #tpu.dot_dimension_numbers<[1], [0], [0], [1], [0, 0, 1, 1], [], []>} : vector<128x128xbf16>, vector<128x128xbf16>, vector<128x128xf32> -> vector<128x128xf32>
    %12 = arith.addf %7, %11 : vector<128x128xf32>
    %c0_6 = arith.constant 0 : index
    %c0_7 = arith.constant 0 : index
    %13 = vector.load %arg10[%c0_6, %c0_7] : memref<128x128xf32, #tpu.memory_space<vmem>>, vector<128x128xf32>
    tpu.vector_store %arg10[%c0_6, %c0_7], %12 {strides = array<i32>} : memref<128x128xf32, #tpu.memory_space<vmem>>, vector<128x128xf32>,
    %c0_i32_8 = arith.constant 0 : i32
    %14 = arith.cmpi eq, %arg2, %c0_i32_8 : i32
    %15 = arith.extui %14 : i1 to i32
    %c0_i32_9 = arith.constant 0 : i32
    %16 = arith.cmpi ne, %15, %c0_i32_9 : i32
    scf.if %16 {
      %c0_10 = arith.constant 0 : index
      %c0_11 = arith.constant 0 : index
      %17 = vector.load %arg10[%c0_10, %c0_11] : memref<128x128xf32, #tpu.memory_space<vmem>>, vector<128x128xf32>
      %c128_i32_12 = arith.constant 128 : i32
      %18 = arith.muli %arg1, %c128_i32_12 : i32
      %c0_i32_13 = arith.constant 0 : i32
      %19 = arith.addi %c0_i32_13, %18 : i32
      %20 = tpu.assume_multiple %19, 128 : i32
      %c0_14 = arith.constant 0 : index
      %c0_15 = arith.constant 0 : index
      %c0_16 = arith.constant 0 : index
      %21 = vector.load %arg6[%c0_14, %c0_15, %c0_16] : memref<3x128x1xf32, #tpu.memory_space<vmem>>, vector<1x128x1xf32>
      %22 = vector.shape_cast %21 : vector<1x128x1xf32> to vector<128x1xf32>
      %23 = arith.index_cast %20 : i32 to index
      %c0_17 = arith.constant 0 : index
      %24 = vector.load %arg5[%23, %c0_17] : memref<384x128xbf16, #tpu.memory_space<vmem>>, vector<128x128xbf16>
      %25 = arith.extf %24 : vector<128x128xbf16> to vector<128x128xf32>
      %26 = vector.broadcast %22 : vector<128x1xf32> to vector<128x128xf32>
      %27 = arith.mulf %26, %25 : vector<128x128xf32>
      %28 = arith.addf %17, %27 : vector<128x128xf32>
      %c128_i32_18 = arith.constant 128 : i32
      %29 = arith.muli %arg1, %c128_i32_18 : i32
      %c128_i32_19 = arith.constant 128 : i32
      %30 = arith.addi %c128_i32_19, %29 : i32
      %31 = tpu.assume_multiple %30, 128 : i32
      %c1 = arith.constant 1 : index
      %c0_20 = arith.constant 0 : index
      %c0_21 = arith.constant 0 : index
      %32 = vector.load %arg6[%c1, %c0_20, %c0_21] : memref<3x128x1xf32, #tpu.memory_space<vmem>>, vector<1x128x1xf32>
      %33 = vector.shape_cast %32 : vector<1x128x1xf32> to vector<128x1xf32>
      %34 = arith.index_cast %31 : i32 to index
      %c0_22 = arith.constant 0 : index
      %35 = vector.load %arg5[%34, %c0_22] : memref<384x128xbf16, #tpu.memory_space<vmem>>, vector<128x128xbf16>
      %36 = arith.extf %35 : vector<128x128xbf16> to vector<128x128xf32>
      %37 = vector.broadcast %33 : vector<128x1xf32> to vector<128x128xf32>
      %38 = arith.mulf %37, %36 : vector<128x128xf32>
      %39 = arith.addf %28, %38 : vector<128x128xf32>
      %c128_i32_23 = arith.constant 128 : i32
      %40 = arith.muli %arg1, %c128_i32_23 : i32
      %c256_i32 = arith.constant 256 : i32
      %41 = arith.addi %c256_i32, %40 : i32
      %42 = tpu.assume_multiple %41, 128 : i32
      %c2 = arith.constant 2 : index
      %c0_24 = arith.constant 0 : index
      %c0_25 = arith.constant 0 : index
      %43 = vector.load %arg6[%c2, %c0_24, %c0_25] : memref<3x128x1xf32, #tpu.memory_space<vmem>>, vector<1x128x1xf32>
      %44 = vector.shape_cast %43 : vector<1x128x1xf32> to vector<128x1xf32>
      %45 = arith.index_cast %42 : i32 to index
      %c0_26 = arith.constant 0 : index
      %46 = vector.load %arg5[%45, %c0_26] : memref<384x128xbf16, #tpu.memory_space<vmem>>, vector<128x128xbf16>
      %47 = arith.extf %46 : vector<128x128xbf16> to vector<128x128xf32>
      %48 = vector.broadcast %44 : vector<128x1xf32> to vector<128x128xf32>
      %49 = arith.mulf %48, %47 : vector<128x128xf32>
      %50 = arith.addf %39, %49 : vector<128x128xf32>
      %c0_27 = arith.constant 0 : index
      %51 = memref.load %arg3[%c0_27] : memref<2xf32, #tpu.memory_space<smem>>
      %c1_28 = arith.constant 1 : index
      %52 = memref.load %arg3[%c1_28] : memref<2xf32, #tpu.memory_space<smem>>
      %c0_29 = arith.constant 0 : index
      %c0_30 = arith.constant 0 : index
      %53 = vector.load %arg7[%c0_29, %c0_30] : memref<128x128xf32, #tpu.memory_space<vmem>>, vector<128x128xf32>
      %cst_31 = arith.constant 1.000000e+00 : f32
      %54 = arith.subf %cst_31, %51 : f32
      %55 = vector.broadcast %54 : f32 to vector<128x128xf32>
      %56 = arith.mulf %55, %50 : vector<128x128xf32>
      %57 = vector.broadcast %51 : f32 to vector<128x128xf32>
      %58 = arith.mulf %57, %53 : vector<128x128xf32>
      %59 = arith.addf %56, %58 : vector<128x128xf32>
      %60 = arith.truncf %59 : vector<128x128xf32> to vector<128x128xbf16>
      %c0_32 = arith.constant 0 : index
      %c0_33 = arith.constant 0 : index
      %61 = vector.load %arg8[%c0_32, %c0_33] : memref<128x128xbf16, #tpu.memory_space<vmem>>, vector<128x128xbf16>
      %cst_34 = arith.constant dense<0.000000e+00> : vector<128x128xf32>
      %62 = tpu.matmul %60, %61, %cst_34 {dimension_numbers = #tpu.dot_dimension_numbers<[1], [0], [0], [1], [0, 0, 1, 1], [], []>} : vector<128x128xbf16>, vector<128x128xbf16>, vector<128x128xf32> -> vector<128x128xf32>
      %63 = vector.broadcast %52 : f32 to vector<128x128xf32>
      %64 = arith.mulf %63, %62 : vector<128x128xf32>
      %cst_35 = arith.constant 1.000000e+00 : f32
      %65 = arith.subf %cst_35, %52 : f32
      %66 = vector.broadcast %65 : f32 to vector<128x128xf32>
      %67 = arith.mulf %66, %59 : vector<128x128xf32>
      %68 = arith.addf %64, %67 : vector<128x128xf32>
      %cst_36 = arith.constant 0.000000e+00 : f32
      %69 = vector.broadcast %cst_36 : f32 to vector<128x128xf32>
      %70 = arith.maximumf %68, %69 : vector<128x128xf32>
      %71 = arith.truncf %70 : vector<128x128xf32> to vector<128x128xbf16>
      %c0_37 = arith.constant 0 : index
      %c0_38 = arith.constant 0 : index
      %72 = vector.load %arg9[%c0_37, %c0_38] : memref<128x128xbf16, #tpu.memory_space<vmem>>, vector<128x128xbf16>
      tpu.vector_store %arg9[%c0_37, %c0_38], %71 {strides = array<i32>} : memref<128x128xbf16, #tpu.memory_space<vmem>>, vector<128x128xbf16>,
    } else {
    }
    return
  }
  func.func @transform_0(%arg0: i32, %arg1: i32, %arg2: i32) -> i32 {
    %c0_i32 = arith.constant 0 : i32
    %c0_i32_0 = arith.constant 0 : i32
    return %c0_i32 : i32
  }
  func.func @transform_1(%arg0: i32, %arg1: i32, %arg2: i32) -> (i32, i32) {
    %c1_i32 = arith.constant 1 : i32
    %0 = arith.muli %arg0, %c1_i32 : i32
    %1 = arith.addi %0, %arg1 : i32
    %c0_i32 = arith.constant 0 : i32
    return %1, %arg2 : i32, i32
  }
  func.func @transform_2(%arg0: i32, %arg1: i32, %arg2: i32) -> (i32, i32) {
    %c0_i32 = arith.constant 0 : i32
    %c0_i32_0 = arith.constant 0 : i32
    %c0_i32_1 = arith.constant 0 : i32
    return %c0_i32, %c0_i32_0 : i32, i32
  }
  func.func @transform_3(%arg0: i32, %arg1: i32, %arg2: i32) -> (i32, i32, i32) {
    %c1_i32 = arith.constant 1 : i32
    %0 = arith.muli %arg0, %c1_i32 : i32
    %1 = arith.addi %0, %arg1 : i32
    %c0_i32 = arith.constant 0 : i32
    %c0_i32_0 = arith.constant 0 : i32
    %c0_i32_1 = arith.constant 0 : i32
    return %c0_i32, %1, %c0_i32_0 : i32, i32, i32
  }
  func.func @transform_4(%arg0: i32, %arg1: i32, %arg2: i32) -> (i32, i32) {
    %c1_i32 = arith.constant 1 : i32
    %0 = arith.muli %arg0, %c1_i32 : i32
    %1 = arith.addi %0, %arg1 : i32
    %c0_i32 = arith.constant 0 : i32
    %c0_i32_0 = arith.constant 0 : i32
    return %1, %c0_i32 : i32, i32
  }
  func.func @transform_5(%arg0: i32, %arg1: i32, %arg2: i32) -> (i32, i32) {
    %c0_i32 = arith.constant 0 : i32
    %c0_i32_0 = arith.constant 0 : i32
    %c0_i32_1 = arith.constant 0 : i32
    return %c0_i32, %c0_i32_0 : i32, i32
  }
  func.func @transform_6(%arg0: i32, %arg1: i32, %arg2: i32) -> (i32, i32) {
    %c1_i32 = arith.constant 1 : i32
    %0 = arith.muli %arg0, %c1_i32 : i32
    %1 = arith.addi %0, %arg1 : i32
    %c0_i32 = arith.constant 0 : i32
    %c0_i32_0 = arith.constant 0 : i32
    return %1, %c0_i32 : i32, i32
  }
}

</mosaic_0001>

<llo_original>
// kernel: _forward.5
$region0: #{_forward.5}
  #allocation0 [shape = 'u32[]', space=smem, size = 0x4, offset = 0x4, fixed_abs, tag = 'smem constant byte address 0x4 - core index']
  #allocation1 [shape = 'u32[144,128]{1,0:T(1,128)}', space=vmem, size = 0x12000, scoped, tag = 'internal scratch']
  %s0 = inlined_call_operand.vmem [shape: s32[128,1], index: 0, kind: input, shape index: {}]
  %s1 = inlined_call_operand.vmem [shape: s32[1,128], index: 1, kind: input, shape index: {}]
  %s2 = inlined_call_operand.vmem [shape: f32[3,128,32], index: 2, kind: input, shape index: {}, may-alias: {2,3}]
  %s3 = inlined_call_operand.vmem [shape: f32[3,128,32], index: 3, kind: input, shape index: {}, may-alias: {2,3}]
  %s4 = inlined_call_operand.vmem [shape: f32[384,1], index: 4, kind: output, shape index: {}]
  %s5 = sld [smem:[#allocation0]]
  $region53: #{_forward.5} parent=0
    _
  %s7 = ssub.s32 1, %s5
  %s8 = scalar_select 0, %s7, %s5
  loop: start=0, step=1, limit=5
  $region2: #{_forward.5} parent=0 // loop_pre_header
    _
  $region3: #{_forward.5} parent=0 // loop_header
    %s10 = sphi 0, %s14
    %p11 = scmp.ge.s32.totalorder %s10, 5
    %s17 = sphi 0, %s36
    %s18 = sphi 0, %s32
    %s19 = sphi 0, %s28
    %s20 = sphi 0, %s17
    %s21 = sphi 0, %s18
    %s22 = sphi 0, %s19
    %s23 = sphi 0, %s20
    %s24 = sphi 0, %s21
    %s25 = sphi 0, %s22
    %s39 = sphi 0, %s41
    %s42 = sphi 0, %s39
    %s43 = sphi 0, %s42
    %s59 = sphi 0, %s43
    %s65 = sphi 0, %s67
    %s68 = sphi 0, %s65
    %s69 = sphi 0, %s68
    %s85 = sphi 0, %s69
    %s93 = sphi 0, %s95
    %s96 = sphi 0, %s93
    %s97 = sphi 0, %s96
    %s113 = sphi 0, %s97
    %s121 = sphi 0, %s123
    %s124 = sphi 0, %s121
    %s125 = sphi 0, %s124
    %s141 = sphi 0, %s125
    %s149 = sphi 0, %s151
    %s152 = sphi 0, %s149
    %s153 = sphi 0, %s152
    %s169 = sphi 0, %s153
  $region4: #{_forward.5} parent=0 // loop_header_branch
    %13 = sbr.rel (%p11) target = $region8
  $region5: #{_forward.5} parent=0 // loop_body
    %s15 = ssub.s32 %s10, 1
    %s16 = ssub.s32 %s10, 2
    %s26 = sadd.s32 1, %s19
    %p27 = scmp.ge.s32.totalorder %s26, 1
    %s28 = scalar_select %p27, 0, %s26
    %s29 = sadd.s32 1, %s18
    %s30 = scalar_select %p27, %s29, %s18
    %p31 = scmp.ge.s32.totalorder %s30, 1
    %s32 = scalar_select %p31, 0, %s30
    %s33 = sadd.s32 1, %s17
    %s34 = scalar_select %p31, %s33, %s17
    %p35 = scmp.ge.s32.totalorder %s34, 3
    %s36 = scalar_select %p35, 0, %s34
    %s37 = ssub.s32 %s18, %s32
    %p38 = scmp.eq.s32.totalorder %s37, 0
    %s40 = sadd.s32 %s39, 1
    %s41 = scalar_select %p38, %s39, %s40
    %p44 = pneg %p38
    %p45 = scmp.eq.s32.totalorder %s10, 2
    %p46 = por %p44, %p45
    %p47 = scmp.ne.s32.totalorder %s39, %s42
    %p48 = scmp.eq.s32.totalorder %s10, 0
    %p49 = por %p47, %p48
    %p50 = scmp.ne.s32.totalorder %s39, %s42
    %p51 = scmp.eq.s32.totalorder %s15, 2
    %p52 = por %p50, %p51
    %p53 = scmp.ne.s32.totalorder %s42, %s43
    %p54 = scmp.eq.s32.totalorder %s15, 0
    %p55 = por %p53, %p54
    %p56 = scmp.ne.s32.totalorder %s42, %s43
    %p57 = scmp.eq.s32.totalorder %s16, 2
    %p58 = por %p56, %p57
    %p60 = scmp.ne.s32.totalorder %s43, %s59
    %p61 = scmp.eq.s32.totalorder %s16, 0
    %p62 = por %p60, %p61
    %s63 = ssub.s32 %s19, %s28
    %p64 = scmp.eq.s32.totalorder %s63, 0
    %s66 = sadd.s32 %s65, 1
    %s67 = scalar_select %p64, %s65, %s66
    %p70 = pneg %p64
    %p71 = scmp.eq.s32.totalorder %s10, 2
    %p72 = por %p70, %p71
    %p73 = scmp.ne.s32.totalorder %s65, %s68
    %p74 = scmp.eq.s32.totalorder %s10, 0
    %p75 = por %p73, %p74
    %p76 = scmp.ne.s32.totalorder %s65, %s68
    %p77 = scmp.eq.s32.totalorder %s15, 2
    %p78 = por %p76, %p77
    %p79 = scmp.ne.s32.totalorder %s68, %s69
    %p80 = scmp.eq.s32.totalorder %s15, 0
    %p81 = por %p79, %p80
    %p82 = scmp.ne.s32.totalorder %s68, %s69
    %p83 = scmp.eq.s32.totalorder %s16, 2
    %p84 = por %p82, %p83
    %p86 = scmp.ne.s32.totalorder %s69, %s85
    %p87 = scmp.eq.s32.totalorder %s16, 0
    %p88 = por %p86, %p87
    %s89 = ssub.s32 %s17, %s36
    %s90 = ssub.s32 %s18, %s32
    %s91 = sor.u32 %s89, %s90
    %p92 = scmp.eq.s32.totalorder %s91, 0
    %s94 = sadd.s32 %s93, 1
    %s95 = scalar_select %p92, %s93, %s94
    %p98 = pneg %p92
    %p99 = scmp.eq.s32.totalorder %s10, 2
    %p100 = por %p98, %p99
    %p101 = scmp.ne.s32.totalorder %s93, %s96
    %p102 = scmp.eq.s32.totalorder %s10, 0
    %p103 = por %p101, %p102
    %p104 = scmp.ne.s32.totalorder %s93, %s96
    %p105 = scmp.eq.s32.totalorder %s15, 2
    %p106 = por %p104, %p105
    %p107 = scmp.ne.s32.totalorder %s96, %s97
    %p108 = scmp.eq.s32.totalorder %s15, 0
    %p109 = por %p107, %p108
    %p110 = scmp.ne.s32.totalorder %s96, %s97
    %p111 = scmp.eq.s32.totalorder %s16, 2
    %p112 = por %p110, %p111
    %p114 = scmp.ne.s32.totalorder %s97, %s113
    %p115 = scmp.eq.s32.totalorder %s16, 0
    %p116 = por %p114, %p115
    %s117 = ssub.s32 %s17, %s36
    %s118 = ssub.s32 %s19, %s28
    %s119 = sor.u32 %s117, %s118
    %p120 = scmp.eq.s32.totalorder %s119, 0
    %s122 = sadd.s32 %s121, 1
    %s123 = scalar_select %p120, %s121, %s122
    %p126 = pneg %p120
    %p127 = scmp.eq.s32.totalorder %s10, 2
    %p128 = por %p126, %p127
    %p129 = scmp.ne.s32.totalorder %s121, %s124
    %p130 = scmp.eq.s32.totalorder %s10, 0
    %p131 = por %p129, %p130
    %p132 = scmp.ne.s32.totalorder %s121, %s124
    %p133 = scmp.eq.s32.totalorder %s15, 2
    %p134 = por %p132, %p133
    %p135 = scmp.ne.s32.totalorder %s124, %s125
    %p136 = scmp.eq.s32.totalorder %s15, 0
    %p137 = por %p135, %p136
    %p138 = scmp.ne.s32.totalorder %s124, %s125
    %p139 = scmp.eq.s32.totalorder %s16, 2
    %p140 = por %p138, %p139
    %p142 = scmp.ne.s32.totalorder %s125, %s141
    %p143 = scmp.eq.s32.totalorder %s16, 0
    %p144 = por %p142, %p143
    %s145 = sadd.s32 %s17, %s18
    %s146 = sadd.s32 %s36, %s32
    %s147 = ssub.s32 %s145, %s146
    %p148 = scmp.eq.s32.totalorder %s147, 0
    %s150 = sadd.s32 %s149, 1
    %s151 = scalar_select %p148, %s149, %s150
    %p154 = pneg %p148
    %p155 = scmp.eq.s32.totalorder %s10, 2
    %p156 = por %p154, %p155
    %p157 = scmp.ne.s32.totalorder %s149, %s152
    %p158 = scmp.eq.s32.totalorder %s10, 0
    %p159 = por %p157, %p158
    %p160 = scmp.ne.s32.totalorder %s149, %s152
    %p161 = scmp.eq.s32.totalorder %s15, 2
    %p162 = por %p160, %p161
    %p163 = scmp.ne.s32.totalorder %s152, %s153
    %p164 = scmp.eq.s32.totalorder %s15, 0
    %p165 = por %p163, %p164
    %p166 = scmp.ne.s32.totalorder %s152, %s153
    %p167 = scmp.eq.s32.totalorder %s16, 2
    %p168 = por %p166, %p167
    %p170 = scmp.ne.s32.totalorder %s153, %s169
    %p171 = scmp.eq.s32.totalorder %s16, 0
    %p172 = por %p170, %p171
    %p173 = scmp.le.s32.totalorder 1, %s10
    %p174 = scmp.lt.s32.totalorder %s10, 4
    %p175 = pnand %p173, %p174
    %p176 = pneg %p175
    // Predicated region
    $region9: #{_forward.5} parent=5 // pred_check
      _
    $region10: #{_forward.5} parent=5 // pred_check_branch
      %178 = sbr.rel (%p175) target = $region12
    $region11: #{_forward.5} parent=5 // pred_region
      %s179 = ssub.s32 %s10, 1
      // Predicated region
      $region13: #{_forward.5} parent=11 // pred_check
        %p180 = pneg %p55
      $region14: #{_forward.5} parent=11 // pred_check_branch
        %182 = sbr.rel (%p180) target = $region16
      $region15: #{_forward.5} parent=11 // pred_region
        %s183 = smul.u32 16, %s21
        %p184 = scmp.lt.s32.totalorder %s183, 15
        %s185 = scalar_select %p184, %s183, 15
        %s186 = smul.addr %s185, 8
        %s187 = scalar_lea.vmem %s0, %s186
        %s188 = smul.u32 16, %s21
      $region16: #{_forward.5} parent=11 // pred_fallthru
        _
      // Predicated region
      $region17: #{_forward.5} parent=11 // pred_check
        %p189 = pneg %p81
      $region18: #{_forward.5} parent=11 // pred_check_branch
        %191 = sbr.rel (%p189) target = $region20
      $region19: #{_forward.5} parent=11 // pred_region
        %p192 = scmp.lt.s32.totalorder %s22, 0
        %s193 = scalar_select %p192, %s22, 0
        %s194 = scalar_lea.vmem %s1, %s193
      $region20: #{_forward.5} parent=11 // pred_fallthru
        _
    $region12: #{_forward.5} parent=5 // pred_fallthru
      _
    %p195 = scmp.lt.s32.totalorder %s10, 3
    // Predicated region
    $region21: #{_forward.5} parent=5 // pred_check
      %p196 = pneg %p195
    $region22: #{_forward.5} parent=5 // pred_check_branch
      %198 = sbr.rel (%p196) target = $region24
    $region23: #{_forward.5} parent=5 // pred_region
      // Predicated region
      $region25: #{_forward.5} parent=23 // pred_check
        %p199 = pneg %p103
      $region26: #{_forward.5} parent=23 // pred_check_branch
        %201 = sbr.rel (%p199) target = $region28
      $region27: #{_forward.5} parent=23 // pred_region
        %s202 = smul.u32 16, %s18
        %p203 = scmp.lt.s32.totalorder %s17, 2
        %s204 = scalar_select %p203, %s17, 2
        %p205 = scmp.lt.s32.totalorder %s202, 15
        %s206 = scalar_select %p205, %s202, 15
        %s207 = smul.addr %s204, 16
        %s208 = sadd.s32 %s206, %s207
        %s209 = smul.addr %s208, 8
        %s210 = scalar_lea.vmem %s2, %s209
        %s211 = smul.u32 16, %s18
      $region28: #{_forward.5} parent=23 // pred_fallthru
        _
      // Predicated region
      $region29: #{_forward.5} parent=23 // pred_check
        %p212 = pneg %p131
      $region30: #{_forward.5} parent=23 // pred_check_branch
        %214 = sbr.rel (%p212) target = $region32
      $region31: #{_forward.5} parent=23 // pred_region
        %s215 = smul.u32 16, %s19
        %p216 = scmp.lt.s32.totalorder %s17, 2
        %s217 = scalar_select %p216, %s17, 2
        %p218 = scmp.lt.s32.totalorder %s215, 15
        %s219 = scalar_select %p218, %s215, 15
        %s220 = smul.addr %s217, 16
        %s221 = sadd.s32 %s219, %s220
        %s222 = smul.addr %s221, 8
        %s223 = scalar_lea.vmem %s3, %s222
        %s224 = smul.u32 16, %s19
      $region32: #{_forward.5} parent=23 // pred_fallthru
        _
    $region24: #{_forward.5} parent=5 // pred_fallthru
      _
    %p225 = scmp.le.s32.totalorder 1, %s10
    %p226 = scmp.lt.s32.totalorder %s10, 4
    %p227 = pnand %p225, %p226
    %p228 = pneg %p227
    // Predicated region
    $region33: #{_forward.5} parent=5 // pred_check
      _
    $region34: #{_forward.5} parent=5 // pred_check_branch
      %230 = sbr.rel (%p227) target = $region36
    $region35: #{_forward.5} parent=5 // pred_region
      %s231 = ssub.s32 %s10, 1
      %s232 = smul.u32 16, %s21
      %p233 = scmp.lt.s32.totalorder %s232, 15
      %s234 = scalar_select %p233, %s232, 15
      %s235 = smul.addr %s234, 8
      %s236 = scalar_lea.vmem %s0, %s235
      %p237 = pneg %p55
      %p238 = pneg %p52
      %p239 = scmp.lt.s32.totalorder %s22, 0
      %s240 = scalar_select %p239, %s22, 0
      %s241 = scalar_lea.vmem %s1, %s240
      %p242 = pneg %p81
      %p243 = pneg %p78
      %s244 = smul.u32 16, %s21
      %p245 = scmp.lt.s32.totalorder %s20, 2
      %s246 = scalar_select %p245, %s20, 2
      %p247 = scmp.lt.s32.totalorder %s244, 15
      %s248 = scalar_select %p247, %s244, 15
      %s249 = smul.addr %s246, 16
      %s250 = sadd.s32 %s248, %s249
      %s251 = smul.addr %s250, 8
      %s252 = scalar_lea.vmem %s2, %s251
      %p253 = pneg %p109
      %p254 = pneg %p106
      %s255 = smul.u32 16, %s22
      %p256 = scmp.lt.s32.totalorder %s20, 2
      %s257 = scalar_select %p256, %s20, 2
      %p258 = scmp.lt.s32.totalorder %s255, 15
      %s259 = scalar_select %p258, %s255, 15
      %s260 = smul.addr %s257, 16
      %s261 = sadd.s32 %s259, %s260
      %s262 = smul.addr %s261, 8
      %s263 = scalar_lea.vmem %s3, %s262
      %p264 = pneg %p137
      %p265 = pneg %p134
      %p266 = pneg %p165
      %p267 = pneg %p162
      %s268 = sadd.s32 %s20, %s21
      %s269 = smul.u32 16, %s268
      %p270 = scmp.lt.s32.totalorder %s269, 47
      %s271 = scalar_select %p270, %s269, 47
      %s272 = smul.addr %s271, 8
      %s273 = scalar_lea.vmem %s4, %s272
      %s274 = smul.u32 16, %s21
      %p275 = scmp.lt.s32.totalorder %s274, 15
      %s276 = scalar_select %p275, %s274, 15
      %s277 = smul.addr %s276, 8
      %s278 = scalar_lea.vmem %s0, %s277
      %s279 = smul.u32 16, %s21
      %p280 = scmp.lt.s32.totalorder %s22, 0
      %s281 = scalar_select %p280, %s22, 0
      %s282 = scalar_lea.vmem %s1, %s281
      %s283 = smul.u32 16, %s21
      %p284 = scmp.lt.s32.totalorder %s20, 2
      %s285 = scalar_select %p284, %s20, 2
      %p286 = scmp.lt.s32.totalorder %s283, 15
      %s287 = scalar_select %p286, %s283, 15
      %s288 = smul.addr %s285, 16
      %s289 = sadd.s32 %s287, %s288
      %s290 = smul.addr %s289, 8
      %s291 = scalar_lea.vmem %s2, %s290
      %s292 = smul.u32 16, %s21
      %s293 = smul.u32 16, %s22
      %p294 = scmp.lt.s32.totalorder %s20, 2
      %s295 = scalar_select %p294, %s20, 2
      %p296 = scmp.lt.s32.totalorder %s293, 15
      %s297 = scalar_select %p296, %s293, 15
      %s298 = smul.addr %s295, 16
      %s299 = sadd.s32 %s297, %s298
      %s300 = smul.addr %s299, 8
      %s301 = scalar_lea.vmem %s3, %s300
      %s302 = smul.u32 16, %s22
      %s303 = sadd.s32 %s20, %s21
      %s304 = smul.u32 16, %s303
      %p305 = scmp.lt.s32.totalorder %s304, 47
      %s306 = scalar_select %p305, %s304, 47
      %s307 = smul.addr %s306, 8
      %s308 = scalar_lea.vmem %s4, %s307
      %s309 = sadd.s32 %s20, %s21
      %s310 = smul.u32 16, %s309
      %p311 = scmp.eq.s32.totalorder %s22, 0
      // Predicated region
      $region37: #{_forward.5} parent=35 // pred_check
        %p312 = pneg %p311
      $region38: #{_forward.5} parent=35 // pred_check_branch
        %314 = sbr.rel (%p312) target = $region40
      $region39: #{_forward.5} parent=35 // pred_region
        %vm315 = vcmask 7168
        %316 = vst.msk [vmem:[%s308] sm:$0xff] %vm315, 0.0
        %317 = vst.msk [vmem:[%s308 + $0x8] sm:$0xff] %vm315, 0.0
        %318 = vst.msk [vmem:[%s308 + $0x10] sm:$0xff] %vm315, 0.0
        %319 = vst.msk [vmem:[%s308 + $0x18] sm:$0xff] %vm315, 0.0
        %320 = vst.msk [vmem:[%s308 + $0x20] sm:$0xff] %vm315, 0.0
        %321 = vst.msk [vmem:[%s308 + $0x28] sm:$0xff] %vm315, 0.0
        %322 = vst.msk [vmem:[%s308 + $0x30] sm:$0xff] %vm315, 0.0
        %323 = vst.msk [vmem:[%s308 + $0x38] sm:$0xff] %vm315, 0.0
        %324 = vst.msk [vmem:[%s308 + $0x40] sm:$0xff] %vm315, 0.0
        %325 = vst.msk [vmem:[%s308 + $0x48] sm:$0xff] %vm315, 0.0
        %326 = vst.msk [vmem:[%s308 + $0x50] sm:$0xff] %vm315, 0.0
        %327 = vst.msk [vmem:[%s308 + $0x58] sm:$0xff] %vm315, 0.0
        %328 = vst.msk [vmem:[%s308 + $0x60] sm:$0xff] %vm315, 0.0
        %329 = vst.msk [vmem:[%s308 + $0x68] sm:$0xff] %vm315, 0.0
        %330 = vst.msk [vmem:[%s308 + $0x70] sm:$0xff] %vm315, 0.0
        %331 = vst.msk [vmem:[%s308 + $0x78] sm:$0xff] %vm315, 0.0
      $region40: #{_forward.5} parent=35 // pred_fallthru
        _
      %v332 = vld [vmem:[%s278] sm:$0xff]
      %v333 = vld [vmem:[%s278 + $0x8] sm:$0xff]
      %v334 = vld [vmem:[%s278 + $0x10] sm:$0xff]
      %v335 = vld [vmem:[%s278 + $0x18] sm:$0xff]
      %v336 = vld [vmem:[%s278 + $0x20] sm:$0xff]
      %v337 = vld [vmem:[%s278 + $0x28] sm:$0xff]
      %v338 = vld [vmem:[%s278 + $0x30] sm:$0xff]
      %v339 = vld [vmem:[%s278 + $0x38] sm:$0xff]
      %v340 = vld [vmem:[%s278 + $0x40] sm:$0xff]
      %v341 = vld [vmem:[%s278 + $0x48] sm:$0xff]
      %v342 = vld [vmem:[%s278 + $0x50] sm:$0xff]
      %v343 = vld [vmem:[%s278 + $0x58] sm:$0xff]
      %v344 = vld [vmem:[%s278 + $0x60] sm:$0xff]
      %v345 = vld [vmem:[%s278 + $0x68] sm:$0xff]
      %v346 = vld [vmem:[%s278 + $0x70] sm:$0xff]
      %v347 = vld [vmem:[%s278 + $0x78] sm:$0xff]
      %v348 = vld [vmem:[%s282] sm:$0x1]
      %v349 = vld [vmem:[%s291] sm:$0xff]
      %v350 = vld [vmem:[%s291 + $0x8] sm:$0xff]
      %v351 = vld [vmem:[%s291 + $0x10] sm:$0xff]
      %v352 = vld [vmem:[%s291 + $0x18] sm:$0xff]
      %v353 = vld [vmem:[%s291 + $0x20] sm:$0xff]
      %v354 = vld [vmem:[%s291 + $0x28] sm:$0xff]
      %v355 = vld [vmem:[%s291 + $0x30] sm:$0xff]
      %v356 = vld [vmem:[%s291 + $0x38] sm:$0xff]
      %v357 = vld [vmem:[%s291 + $0x40] sm:$0xff]
      %v358 = vld [vmem:[%s291 + $0x48] sm:$0xff]
      %v359 = vld [vmem:[%s291 + $0x50] sm:$0xff]
      %v360 = vld [vmem:[%s291 + $0x58] sm:$0xff]
      %v361 = vld [vmem:[%s291 + $0x60] sm:$0xff]
      %v362 = vld [vmem:[%s291 + $0x68] sm:$0xff]
      %v363 = vld [vmem:[%s291 + $0x70] sm:$0xff]
      %v364 = vld [vmem:[%s291 + $0x78] sm:$0xff]
      %v365 = vld [vmem:[%s301] sm:$0xff]
      %v366 = vld [vmem:[%s301 + $0x8] sm:$0xff]
      %v367 = vld [vmem:[%s301 + $0x10] sm:$0xff]
      %v368 = vld [vmem:[%s301 + $0x18] sm:$0xff]
      %v369 = vld [vmem:[%s301 + $0x20] sm:$0xff]
      %v370 = vld [vmem:[%s301 + $0x28] sm:$0xff]
      %v371 = vld [vmem:[%s301 + $0x30] sm:$0xff]
      %v372 = vld [vmem:[%s301 + $0x38] sm:$0xff]
      %v373 = vld [vmem:[%s301 + $0x40] sm:$0xff]
      %v374 = vld [vmem:[%s301 + $0x48] sm:$0xff]
      %v375 = vld [vmem:[%s301 + $0x50] sm:$0xff]
      %v376 = vld [vmem:[%s301 + $0x58] sm:$0xff]
      %v377 = vld [vmem:[%s301 + $0x60] sm:$0xff]
      %v378 = vld [vmem:[%s301 + $0x68] sm:$0xff]
      %v379 = vld [vmem:[%s301 + $0x70] sm:$0xff]
      %v380 = vld [vmem:[%s301 + $0x78] sm:$0xff]
      %vm381 = vcmask 261120
      %v383 = vsel %vm381, %v349, 0
      %v386 = vsel %vm381, %v350, 0
      %v389 = vsel %vm381, %v351, 0
      %v392 = vsel %vm381, %v352, 0
      %v395 = vsel %vm381, %v353, 0
      %v398 = vsel %vm381, %v354, 0
      %v401 = vsel %vm381, %v355, 0
      %v404 = vsel %vm381, %v356, 0
      %v407 = vsel %vm381, %v357, 0
      %v410 = vsel %vm381, %v358, 0
      %v413 = vsel %vm381, %v359, 0
      %v416 = vsel %vm381, %v360, 0
      %v419 = vsel %vm381, %v361, 0
      %v422 = vsel %vm381, %v362, 0
      %v425 = vsel %vm381, %v363, 0
      %v428 = vsel %vm381, %v364, 0
      %v431 = vsel %vm381, %v365, 0
      %v434 = vsel %vm381, %v366, 0
      %v437 = vsel %vm381, %v367, 0
      %v440 = vsel %vm381, %v368, 0
      %v443 = vsel %vm381, %v369, 0
      %v446 = vsel %vm381, %v370, 0
      %v449 = vsel %vm381, %v371, 0
      %v452 = vsel %vm381, %v372, 0
      %v455 = vsel %vm381, %v373, 0
      %v458 = vsel %vm381, %v374, 0
      %v461 = vsel %vm381, %v375, 0
      %v464 = vsel %vm381, %v376, 0
      %v467 = vsel %vm381, %v377, 0
      %v470 = vsel %vm381, %v378, 0
      %v473 = vsel %vm381, %v379, 0
      %v476 = vsel %vm381, %v380, 0
      %478 = vmatprep.subr.mxu0 0.0
      %479 = vmatpush1.xpose.msra.mxu0 %v431
      %480 = vmatprep.subr.mxu0 0.0
      %481 = vmatpush1.xpose.msra.mxu0 %v434
      %482 = vmatprep.subr.mxu0 0.0
      %483 = vmatpush1.xpose.msra.mxu0 %v437
      %484 = vmatprep.subr.mxu0 0.0
      %485 = vmatpush1.xpose.msra.mxu0 %v440
      %486 = vmatprep.subr.mxu0 0.0
      %487 = vmatpush1.xpose.msra.mxu0 %v443
      %488 = vmatprep.subr.mxu0 0.0
      %489 = vmatpush1.xpose.msra.mxu0 %v446
      %490 = vmatprep.subr.mxu0 0.0
      %491 = vmatpush1.xpose.msra.mxu0 %v449
      %492 = vmatprep.subr.mxu0 0.0
      %493 = vmatpush1.xpose.msra.mxu0 %v452
      %494 = vmatprep.subr.mxu0 0.0
      %495 = vmatpush1.xpose.msra.mxu0 %v455
      %496 = vmatprep.subr.mxu0 0.0
      %497 = vmatpush1.xpose.msra.mxu0 %v458
      %498 = vmatprep.subr.mxu0 0.0
      %499 = vmatpush1.xpose.msra.mxu0 %v461
      %500 = vmatprep.subr.mxu0 0.0
      %501 = vmatpush1.xpose.msra.mxu0 %v464
      %502 = vmatprep.subr.mxu0 0.0
      %503 = vmatpush1.xpose.msra.mxu0 %v467
      %504 = vmatprep.subr.mxu0 0.0
      %505 = vmatpush1.xpose.msra.mxu0 %v470
      %506 = vmatprep.subr.mxu0 0.0
      %507 = vmatpush1.xpose.msra.mxu0 %v473
      %508 = vmatprep.subr.mxu0 0.0
      %509 = vmatpush1.xpose.msra.mxu0 %v476
      %510 = vmatprep.subr.mxu0 0.0
      %511 = vmatpush1.xpose.msra.mxu0 0.0
      %512 = vmatprep.subr.mxu0 0.0
      %513 = vmatpush1.xpose.msra.mxu0 0.0
      %514 = vmatprep.subr.mxu0 0.0
      %515 = vmatpush1.xpose.msra.mxu0 0.0
      %516 = vmatprep.subr.mxu0 0.0
      %517 = vmatpush1.xpose.msra.mxu0 0.0
      %518 = vmatprep.subr.mxu0 0.0
      %519 = vmatpush1.xpose.msra.mxu0 0.0
      %520 = vmatprep.subr.mxu0 0.0
      %521 = vmatpush1.xpose.msra.mxu0 0.0
      %522 = vmatprep.subr.mxu0 0.0
      %523 = vmatpush1.xpose.msra.mxu0 0.0
      %524 = vmatprep.subr.mxu0 0.0
      %525 = vmatpush1.xpose.msra.mxu0 0.0
      %526 = vmatprep.subr.mxu0 0.0
      %527 = vmatpush1.xpose.msra.mxu0 0.0
      %528 = vmatprep.subr.mxu0 0.0
      %529 = vmatpush1.xpose.msra.mxu0 0.0
      %530 = vmatprep.subr.mxu0 0.0
      %531 = vmatpush1.xpose.msra.mxu0 0.0
      %532 = vmatprep.subr.mxu0 0.0
      %533 = vmatpush1.xpose.msra.mxu0 0.0
      %534 = vmatprep.subr.mxu0 0.0
      %535 = vmatpush1.xpose.msra.mxu0 0.0
      %536 = vmatprep.subr.mxu0 0.0
      %537 = vmatpush1.xpose.msra.mxu0 0.0
      %538 = vmatprep.subr.mxu0 0.0
      %539 = vmatpush1.xpose.msra.mxu0 0.0
      %540 = vmatprep.subr.mxu0 0.0
      %541 = vmatpush1.xpose.msra.mxu0 0.0
      %542 = vmatprep.mubr.f32.mxu0 0.0
      %543 = vmatmul.mubr.f32.gmra.mrb[0].mxu0 %v383
      %v544 = vpop.f32.mrb[0].mxu0
      %v545 = vadd.f32 0.0, %v544
      %v546 = vpop.f32.mrb[0].mxu0
      %547 = vmatprep.mubr.f32.mxu0 0.0
      %548 = vmatmul.mubr.f32.gmra.mrb[0].mxu0 %v386
      %v549 = vpop.f32.mrb[0].mxu0
      %v550 = vadd.f32 0.0, %v549
      %v551 = vpop.f32.mrb[0].mxu0
      %552 = vmatprep.mubr.f32.mxu0 0.0
      %553 = vmatmul.mubr.f32.gmra.mrb[0].mxu0 %v389
      %v554 = vpop.f32.mrb[0].mxu0
      %v555 = vadd.f32 0.0, %v554
      %v556 = vpop.f32.mrb[0].mxu0
      %557 = vmatprep.mubr.f32.mxu0 0.0
      %558 = vmatmul.mubr.f32.gmra.mrb[0].mxu0 %v392
      %v559 = vpop.f32.mrb[0].mxu0
      %v560 = vadd.f32 0.0, %v559
      %v561 = vpop.f32.mrb[0].mxu0
      %562 = vmatprep.mubr.f32.mxu0 0.0
      %563 = vmatmul.mubr.f32.gmra.mrb[0].mxu0 %v395
      %v564 = vpop.f32.mrb[0].mxu0
      %v565 = vadd.f32 0.0, %v564
      %v566 = vpop.f32.mrb[0].mxu0
      %567 = vmatprep.mubr.f32.mxu0 0.0
      %568 = vmatmul.mubr.f32.gmra.mrb[0].mxu0 %v398
      %v569 = vpop.f32.mrb[0].mxu0
      %v570 = vadd.f32 0.0, %v569
      %v571 = vpop.f32.mrb[0].mxu0
      %572 = vmatprep.mubr.f32.mxu0 0.0
      %573 = vmatmul.mubr.f32.gmra.mrb[0].mxu0 %v401
      %v574 = vpop.f32.mrb[0].mxu0
      %v575 = vadd.f32 0.0, %v574
      %v576 = vpop.f32.mrb[0].mxu0
      %577 = vmatprep.mubr.f32.mxu0 0.0
      %578 = vmatmul.mubr.f32.gmra.mrb[0].mxu0 %v404
      %v579 = vpop.f32.mrb[0].mxu0
      %v580 = vadd.f32 0.0, %v579
      %v581 = vpop.f32.mrb[0].mxu0
      %582 = vmatprep.mubr.f32.mxu0 0.0
      %583 = vmatmul.mubr.f32.gmra.mrb[0].mxu0 %v407
      %v584 = vpop.f32.mrb[0].mxu0
      %v585 = vadd.f32 0.0, %v584
      %v586 = vpop.f32.mrb[0].mxu0
      %587 = vmatprep.mubr.f32.mxu0 0.0
      %588 = vmatmul.mubr.f32.gmra.mrb[0].mxu0 %v410
      %v589 = vpop.f32.mrb[0].mxu0
      %v590 = vadd.f32 0.0, %v589
      %v591 = vpop.f32.mrb[0].mxu0
      %592 = vmatprep.mubr.f32.mxu0 0.0
      %593 = vmatmul.mubr.f32.gmra.mrb[0].mxu0 %v413
      %v594 = vpop.f32.mrb[0].mxu0
      %v595 = vadd.f32 0.0, %v594
      %v596 = vpop.f32.mrb[0].mxu0
      %597 = vmatprep.mubr.f32.mxu0 0.0
      %598 = vmatmul.mubr.f32.gmra.mrb[0].mxu0 %v416
      %v599 = vpop.f32.mrb[0].mxu0
      %v600 = vadd.f32 0.0, %v599
      %v601 = vpop.f32.mrb[0].mxu0
      %602 = vmatprep.mubr.f32.mxu0 0.0
      %603 = vmatmul.mubr.f32.gmra.mrb[0].mxu0 %v419
      %v604 = vpop.f32.mrb[0].mxu0
      %v605 = vadd.f32 0.0, %v604
      %v606 = vpop.f32.mrb[0].mxu0
      %607 = vmatprep.mubr.f32.mxu0 0.0
      %608 = vmatmul.mubr.f32.gmra.mrb[0].mxu0 %v422
      %v609 = vpop.f32.mrb[0].mxu0
      %v610 = vadd.f32 0.0, %v609
      %v611 = vpop.f32.mrb[0].mxu0
      %612 = vmatprep.mubr.f32.mxu0 0.0
      %613 = vmatmul.mubr.f32.gmra.mrb[0].mxu0 %v425
      %v614 = vpop.f32.mrb[0].mxu0
      %v615 = vadd.f32 0.0, %v614
      %v616 = vpop.f32.mrb[0].mxu0
      %617 = vmatprep.mubr.f32.mxu0 0.0
      %618 = vmatmul.mubr.f32.gmra.mrb[0].mxu0 %v428
      %v619 = vpop.f32.mrb[0].mxu0
      %v620 = vadd.f32 0.0, %v619
      %v621 = vpop.f32.mrb[0].mxu0
      %622 = vdwg.mxu0
      %v623 = vmul.f32 %v545, 0.99999
      %v624 = vmul.f32 %v550, 0.99999
      %v625 = vmul.f32 %v555, 0.99999
      %v626 = vmul.f32 %v560, 0.99999
      %v627 = vmul.f32 %v565, 0.99999
      %v628 = vmul.f32 %v570, 0.99999
      %v629 = vmul.f32 %v575, 0.99999
      %v630 = vmul.f32 %v580, 0.99999
      %v631 = vmul.f32 %v585, 0.99999
      %v632 = vmul.f32 %v590, 0.99999
      %v633 = vmul.f32 %v595, 0.99999
      %v634 = vmul.f32 %v600, 0.99999
      %v635 = vmul.f32 %v605, 0.99999
      %v636 = vmul.f32 %v610, 0.99999
      %v637 = vmul.f32 %v615, 0.99999
      %v638 = vmul.f32 %v620, 0.99999
      %639 = vset.pattern.permute.xlu0 0
      %640 = vperm.xlu0 %639, %v332
      %v641 = vpop.permute.xlu0 %640
      %642 = vset.pattern.permute.xlu0 0
      %643 = vperm.xlu0 %642, %v333
      %v644 = vpop.permute.xlu0 %643
      %645 = vset.pattern.permute.xlu0 0
      %646 = vperm.xlu0 %645, %v334
      %v647 = vpop.permute.xlu0 %646
      %648 = vset.pattern.permute.xlu0 0
      %649 = vperm.xlu0 %648, %v335
      %v650 = vpop.permute.xlu0 %649
      %651 = vset.pattern.permute.xlu0 0
      %652 = vperm.xlu0 %651, %v336
      %v653 = vpop.permute.xlu0 %652
      %654 = vset.pattern.permute.xlu0 0
      %655 = vperm.xlu0 %654, %v337
      %v656 = vpop.permute.xlu0 %655
      %657 = vset.pattern.permute.xlu0 0
      %658 = vperm.xlu0 %657, %v338
      %v659 = vpop.permute.xlu0 %658
      %660 = vset.pattern.permute.xlu0 0
      %661 = vperm.xlu0 %660, %v339
      %v662 = vpop.permute.xlu0 %661
      %663 = vset.pattern.permute.xlu0 0
      %664 = vperm.xlu0 %663, %v340
      %v665 = vpop.permute.xlu0 %664
      %666 = vset.pattern.permute.xlu0 0
      %667 = vperm.xlu0 %666, %v341
      %v668 = vpop.permute.xlu0 %667
      %669 = vset.pattern.permute.xlu0 0
      %670 = vperm.xlu0 %669, %v342
      %v671 = vpop.permute.xlu0 %670
      %672 = vset.pattern.permute.xlu0 0
      %673 = vperm.xlu0 %672, %v343
      %v674 = vpop.permute.xlu0 %673
      %675 = vset.pattern.permute.xlu0 0
      %676 = vperm.xlu0 %675, %v344
      %v677 = vpop.permute.xlu0 %676
      %678 = vset.pattern.permute.xlu0 0
      %679 = vperm.xlu0 %678, %v345
      %v680 = vpop.permute.xlu0 %679
      %681 = vset.pattern.permute.xlu0 0
      %682 = vperm.xlu0 %681, %v346
      %v683 = vpop.permute.xlu0 %682
      %684 = vset.pattern.permute.xlu0 0
      %685 = vperm.xlu0 %684, %v347
      %v686 = vpop.permute.xlu0 %685
      %v687 = vlaneseq
      %v688 = vshrl.u32 %v687, 7
      %v689 = vsub.s32 0, %v688
      %v690 = vrot.slane %v348, %v689
      %vm691 = vcmp.eq.s32.totalorder %v641, %v690
      %vm692 = vcmp.eq.s32.totalorder %v644, %v690
      %vm693 = vcmp.eq.s32.totalorder %v647, %v690
      %vm694 = vcmp.eq.s32.totalorder %v650, %v690
      %vm695 = vcmp.eq.s32.totalorder %v653, %v690
      %vm696 = vcmp.eq.s32.totalorder %v656, %v690
      %vm697 = vcmp.eq.s32.totalorder %v659, %v690
      %vm698 = vcmp.eq.s32.totalorder %v662, %v690
      %vm699 = vcmp.eq.s32.totalorder %v665, %v690
      %vm700 = vcmp.eq.s32.totalorder %v668, %v690
      %vm701 = vcmp.eq.s32.totalorder %v671, %v690
      %vm702 = vcmp.eq.s32.totalorder %v674, %v690
      %vm703 = vcmp.eq.s32.totalorder %v677, %v690
      %vm704 = vcmp.eq.s32.totalorder %v680, %v690
      %vm705 = vcmp.eq.s32.totalorder %v683, %v690
      %vm706 = vcmp.eq.s32.totalorder %v686, %v690
      %vm707 = vcmp.ge.s32.totalorder %v332, 0
      %vm708 = vcmp.ge.s32.totalorder %v333, 0
      %vm709 = vcmp.ge.s32.totalorder %v334, 0
      %vm710 = vcmp.ge.s32.totalorder %v335, 0
      %vm711 = vcmp.ge.s32.totalorder %v336, 0
      %vm712 = vcmp.ge.s32.totalorder %v337, 0
      %vm713 = vcmp.ge.s32.totalorder %v338, 0
      %vm714 = vcmp.ge.s32.totalorder %v339, 0
      %vm715 = vcmp.ge.s32.totalorder %v340, 0
      %vm716 = vcmp.ge.s32.totalorder %v341, 0
      %vm717 = vcmp.ge.s32.totalorder %v342, 0
      %vm718 = vcmp.ge.s32.totalorder %v343, 0
      %vm719 = vcmp.ge.s32.totalorder %v344, 0
      %vm720 = vcmp.ge.s32.totalorder %v345, 0
      %vm721 = vcmp.ge.s32.totalorder %v346, 0
      %vm722 = vcmp.ge.s32.totalorder %v347, 0
      %v723 = vsel %vm707, 1, 0
      %v724 = vsel %vm708, 1, 0
      %v725 = vsel %vm709, 1, 0
      %v726 = vsel %vm710, 1, 0
      %v727 = vsel %vm711, 1, 0
      %v728 = vsel %vm712, 1, 0
      %v729 = vsel %vm713, 1, 0
      %v730 = vsel %vm714, 1, 0
      %v731 = vsel %vm715, 1, 0
      %v732 = vsel %vm716, 1, 0
      %v733 = vsel %vm717, 1, 0
      %v734 = vsel %vm718, 1, 0
      %v735 = vsel %vm719, 1, 0
      %v736 = vsel %vm720, 1, 0
      %v737 = vsel %vm721, 1, 0
      %v738 = vsel %vm722, 1, 0
      %739 = vset.pattern.permute.xlu0 0
      %740 = vperm.xlu0 %739, %v723
      %v741 = vpop.permute.xlu0 %740
      %742 = vset.pattern.permute.xlu0 0
      %743 = vperm.xlu0 %742, %v724
      %v744 = vpop.permute.xlu0 %743
      %745 = vset.pattern.permute.xlu0 0
      %746 = vperm.xlu0 %745, %v725
      %v747 = vpop.permute.xlu0 %746
      %748 = vset.pattern.permute.xlu0 0
      %749 = vperm.xlu0 %748, %v726
      %v750 = vpop.permute.xlu0 %749
      %751 = vset.pattern.permute.xlu0 0
      %752 = vperm.xlu0 %751, %v727
      %v753 = vpop.permute.xlu0 %752
      %754 = vset.pattern.permute.xlu0 0
      %755 = vperm.xlu0 %754, %v728
      %v756 = vpop.permute.xlu0 %755
      %757 = vset.pattern.permute.xlu0 0
      %758 = vperm.xlu0 %757, %v729
      %v759 = vpop.permute.xlu0 %758
      %760 = vset.pattern.permute.xlu0 0
      %761 = vperm.xlu0 %760, %v730
      %v762 = vpop.permute.xlu0 %761
      %763 = vset.pattern.permute.xlu0 0
      %764 = vperm.xlu0 %763, %v731
      %v765 = vpop.permute.xlu0 %764
      %766 = vset.pattern.permute.xlu0 0
      %767 = vperm.xlu0 %766, %v732
      %v768 = vpop.permute.xlu0 %767
      %769 = vset.pattern.permute.xlu0 0
      %770 = vperm.xlu0 %769, %v733
      %v771 = vpop.permute.xlu0 %770
      %772 = vset.pattern.permute.xlu0 0
      %773 = vperm.xlu0 %772, %v734
      %v774 = vpop.permute.xlu0 %773
      %775 = vset.pattern.permute.xlu0 0
      %776 = vperm.xlu0 %775, %v735
      %v777 = vpop.permute.xlu0 %776
      %778 = vset.pattern.permute.xlu0 0
      %779 = vperm.xlu0 %778, %v736
      %v780 = vpop.permute.xlu0 %779
      %781 = vset.pattern.permute.xlu0 0
      %782 = vperm.xlu0 %781, %v737
      %v783 = vpop.permute.xlu0 %782
      %784 = vset.pattern.permute.xlu0 0
      %785 = vperm.xlu0 %784, %v738
      %v786 = vpop.permute.xlu0 %785
      %vm787 = vcmp.eq.s32.totalorder %v741, 1
      %vm788 = vcmp.eq.s32.totalorder %v744, 1
      %vm789 = vcmp.eq.s32.totalorder %v747, 1
      %vm790 = vcmp.eq.s32.totalorder %v750, 1
      %vm791 = vcmp.eq.s32.totalorder %v753, 1
      %vm792 = vcmp.eq.s32.totalorder %v756, 1
      %vm793 = vcmp.eq.s32.totalorder %v759, 1
      %vm794 = vcmp.eq.s32.totalorder %v762, 1
      %vm795 = vcmp.eq.s32.totalorder %v765, 1
      %vm796 = vcmp.eq.s32.totalorder %v768, 1
      %vm797 = vcmp.eq.s32.totalorder %v771, 1
      %vm798 = vcmp.eq.s32.totalorder %v774, 1
      %vm799 = vcmp.eq.s32.totalorder %v777, 1
      %vm800 = vcmp.eq.s32.totalorder %v780, 1
      %vm801 = vcmp.eq.s32.totalorder %v783, 1
      %vm802 = vcmp.eq.s32.totalorder %v786, 1
      %vm803 = vmand %vm691, %vm787
      %vm804 = vmand %vm692, %vm788
      %vm805 = vmand %vm693, %vm789
      %vm806 = vmand %vm694, %vm790
      %vm807 = vmand %vm695, %vm791
      %vm808 = vmand %vm696, %vm792
      %vm809 = vmand %vm697, %vm793
      %vm810 = vmand %vm698, %vm794
      %vm811 = vmand %vm699, %vm795
      %vm812 = vmand %vm700, %vm796
      %vm813 = vmand %vm701, %vm797
      %vm814 = vmand %vm702, %vm798
      %vm815 = vmand %vm703, %vm799
      %vm816 = vmand %vm704, %vm800
      %vm817 = vmand %vm705, %vm801
      %vm818 = vmand %vm706, %vm802
      %v819 = vand.u32 2147483647, %v623
      %v820 = vand.u32 2147483647, %v624
      %v821 = vand.u32 2147483647, %v625
      %v822 = vand.u32 2147483647, %v626
      %v823 = vand.u32 2147483647, %v627
      %v824 = vand.u32 2147483647, %v628
      %v825 = vand.u32 2147483647, %v629
      %v826 = vand.u32 2147483647, %v630
      %v827 = vand.u32 2147483647, %v631
      %v828 = vand.u32 2147483647, %v632
      %v829 = vand.u32 2147483647, %v633
      %v830 = vand.u32 2147483647, %v634
      %v831 = vand.u32 2147483647, %v635
      %v832 = vand.u32 2147483647, %v636
      %v833 = vand.u32 2147483647, %v637
      %v834 = vand.u32 2147483647, %v638
      %v835 = vmul.f32 %v819, -0.0012624911
      %v836 = vmul.f32 %v820, -0.0012624911
      %v837 = vmul.f32 %v821, -0.0012624911
      %v838 = vmul.f32 %v822, -0.0012624911
      %v839 = vmul.f32 %v823, -0.0012624911
      %v840 = vmul.f32 %v824, -0.0012624911
      %v841 = vmul.f32 %v825, -0.0012624911
      %v842 = vmul.f32 %v826, -0.0012624911
      %v843 = vmul.f32 %v827, -0.0012624911
      %v844 = vmul.f32 %v828, -0.0012624911
      %v845 = vmul.f32 %v829, -0.0012624911
      %v846 = vmul.f32 %v830, -0.0012624911
      %v847 = vmul.f32 %v831, -0.0012624911
      %v848 = vmul.f32 %v832, -0.0012624911
      %v849 = vmul.f32 %v833, -0.0012624911
      %v850 = vmul.f32 %v834, -0.0012624911
      %v851 = vadd.f32 %v835, 0.00667009
      %v852 = vadd.f32 %v836, 0.00667009
      %v853 = vadd.f32 %v837, 0.00667009
      %v854 = vadd.f32 %v838, 0.00667009
      %v855 = vadd.f32 %v839, 0.00667009
      %v856 = vadd.f32 %v840, 0.00667009
      %v857 = vadd.f32 %v841, 0.00667009
      %v858 = vadd.f32 %v842, 0.00667009
      %v859 = vadd.f32 %v843, 0.00667009
      %v860 = vadd.f32 %v844, 0.00667009
      %v861 = vadd.f32 %v845, 0.00667009
      %v862 = vadd.f32 %v846, 0.00667009
      %v863 = vadd.f32 %v847, 0.00667009
      %v864 = vadd.f32 %v848, 0.00667009
      %v865 = vadd.f32 %v849, 0.00667009
      %v866 = vadd.f32 %v850, 0.00667009
      %v867 = vmul.f32 %v851, %v819
      %v868 = vmul.f32 %v852, %v820
      %v869 = vmul.f32 %v853, %v821
      %v870 = vmul.f32 %v854, %v822
      %v871 = vmul.f32 %v855, %v823
      %v872 = vmul.f32 %v856, %v824
      %v873 = vmul.f32 %v857, %v825
      %v874 = vmul.f32 %v858, %v826
      %v875 = vmul.f32 %v859, %v827
      %v876 = vmul.f32 %v860, %v828
      %v877 = vmul.f32 %v861, %v829
      %v878 = vmul.f32 %v862, %v830
      %v879 = vmul.f32 %v863, %v831
      %v880 = vmul.f32 %v864, %v832
      %v881 = vmul.f32 %v865, %v833
      %v882 = vmul.f32 %v866, %v834
      %v883 = vsub.f32 %v867, 0.017088126
      %v884 = vsub.f32 %v868, 0.017088126
      %v885 = vsub.f32 %v869, 0.017088126
      %v886 = vsub.f32 %v870, 0.017088126
      %v887 = vsub.f32 %v871, 0.017088126
      %v888 = vsub.f32 %v872, 0.017088126
      %v889 = vsub.f32 %v873, 0.017088126
      %v890 = vsub.f32 %v874, 0.017088126
      %v891 = vsub.f32 %v875, 0.017088126
      %v892 = vsub.f32 %v876, 0.017088126
      %v893 = vsub.f32 %v877, 0.017088126
      %v894 = vsub.f32 %v878, 0.017088126
      %v895 = vsub.f32 %v879, 0.017088126
      %v896 = vsub.f32 %v880, 0.017088126
      %v897 = vsub.f32 %v881, 0.017088126
      %v898 = vsub.f32 %v882, 0.017088126
      %v899 = vmul.f32 %v883, %v819
      %v900 = vmul.f32 %v884, %v820
      %v901 = vmul.f32 %v885, %v821
      %v902 = vmul.f32 %v886, %v822
      %v903 = vmul.f32 %v887, %v823
      %v904 = vmul.f32 %v888, %v824
      %v905 = vmul.f32 %v889, %v825
      %v906 = vmul.f32 %v890, %v826
      %v907 = vmul.f32 %v891, %v827
      %v908 = vmul.f32 %v892, %v828
      %v909 = vmul.f32 %v893, %v829
      %v910 = vmul.f32 %v894, %v830
      %v911 = vmul.f32 %v895, %v831
      %v912 = vmul.f32 %v896, %v832
      %v913 = vmul.f32 %v897, %v833
      %v914 = vmul.f32 %v898, %v834
      %v915 = vadd.f32 %v899, 0.03089188
      %v916 = vadd.f32 %v900, 0.03089188
      %v917 = vadd.f32 %v901, 0.03089188
      %v918 = vadd.f32 %v902, 0.03089188
      %v919 = vadd.f32 %v903, 0.03089188
      %v920 = vadd.f32 %v904, 0.03089188
      %v921 = vadd.f32 %v905, 0.03089188
      %v922 = vadd.f32 %v906, 0.03089188
      %v923 = vadd.f32 %v907, 0.03089188
      %v924 = vadd.f32 %v908, 0.03089188
      %v925 = vadd.f32 %v909, 0.03089188
      %v926 = vadd.f32 %v910, 0.03089188
      %v927 = vadd.f32 %v911, 0.03089188
      %v928 = vadd.f32 %v912, 0.03089188
      %v929 = vadd.f32 %v913, 0.03089188
      %v930 = vadd.f32 %v914, 0.03089188
      %v931 = vmul.f32 %v915, %v819
      %v932 = vmul.f32 %v916, %v820
      %v933 = vmul.f32 %v917, %v821
      %v934 = vmul.f32 %v918, %v822
      %v935 = vmul.f32 %v919, %v823
      %v936 = vmul.f32 %v920, %v824
      %v937 = vmul.f32 %v921, %v825
      %v938 = vmul.f32 %v922, %v826
      %v939 = vmul.f32 %v923, %v827
      %v940 = vmul.f32 %v924, %v828
      %v941 = vmul.f32 %v925, %v829
      %v942 = vmul.f32 %v926, %v830
      %v943 = vmul.f32 %v927, %v831
      %v944 = vmul.f32 %v928, %v832
      %v945 = vmul.f32 %v929, %v833
      %v946 = vmul.f32 %v930, %v834
      %v947 = vsub.f32 %v931, 0.050174303
      %v948 = vsub.f32 %v932, 0.050174303
      %v949 = vsub.f32 %v933, 0.050174303
      %v950 = vsub.f32 %v934, 0.050174303
      %v951 = vsub.f32 %v935, 0.050174303
      %v952 = vsub.f32 %v936, 0.050174303
      %v953 = vsub.f32 %v937, 0.050174303
      %v954 = vsub.f32 %v938, 0.050174303
      %v955 = vsub.f32 %v939, 0.050174303
      %v956 = vsub.f32 %v940, 0.050174303
      %v957 = vsub.f32 %v941, 0.050174303
      %v958 = vsub.f32 %v942, 0.050174303
      %v959 = vsub.f32 %v943, 0.050174303
      %v960 = vsub.f32 %v944, 0.050174303
      %v961 = vsub.f32 %v945, 0.050174303
      %v962 = vsub.f32 %v946, 0.050174303
      %v963 = vmul.f32 %v947, %v819
      %v964 = vmul.f32 %v948, %v820
      %v965 = vmul.f32 %v949, %v821
      %v966 = vmul.f32 %v950, %v822
      %v967 = vmul.f32 %v951, %v823
      %v968 = vmul.f32 %v952, %v824
      %v969 = vmul.f32 %v953, %v825
      %v970 = vmul.f32 %v954, %v826
      %v971 = vmul.f32 %v955, %v827
      %v972 = vmul.f32 %v956, %v828
      %v973 = vmul.f32 %v957, %v829
      %v974 = vmul.f32 %v958, %v830
      %v975 = vmul.f32 %v959, %v831
      %v976 = vmul.f32 %v960, %v832
      %v977 = vmul.f32 %v961, %v833
      %v978 = vmul.f32 %v962, %v834
      %v979 = vadd.f32 %v963, 0.08897899
      %v980 = vadd.f32 %v964, 0.08897899
      %v981 = vadd.f32 %v965, 0.08897899
      %v982 = vadd.f32 %v966, 0.08897899
      %v983 = vadd.f32 %v967, 0.08897899
      %v984 = vadd.f32 %v968, 0.08897899
      %v985 = vadd.f32 %v969, 0.08897899
      %v986 = vadd.f32 %v970, 0.08897899
      %v987 = vadd.f32 %v971, 0.08897899
      %v988 = vadd.f32 %v972, 0.08897899
      %v989 = vadd.f32 %v973, 0.08897899
      %v990 = vadd.f32 %v974, 0.08897899
      %v991 = vadd.f32 %v975, 0.08897899
      %v992 = vadd.f32 %v976, 0.08897899
      %v993 = vadd.f32 %v977, 0.08897899
      %v994 = vadd.f32 %v978, 0.08897899
      %v995 = vmul.f32 %v979, %v819
      %v996 = vmul.f32 %v980, %v820
      %v997 = vmul.f32 %v981, %v821
      %v998 = vmul.f32 %v982, %v822
      %v999 = vmul.f32 %v983, %v823
      %v1000 = vmul.f32 %v984, %v824
      %v1001 = vmul.f32 %v985, %v825
      %v1002 = vmul.f32 %v986, %v826
      %v1003 = vmul.f32 %v987, %v827
      %v1004 = vmul.f32 %v988, %v828
      %v1005 = vmul.f32 %v989, %v829
      %v1006 = vmul.f32 %v990, %v830
      %v1007 = vmul.f32 %v991, %v831
      %v1008 = vmul.f32 %v992, %v832
      %v1009 = vmul.f32 %v993, %v833
      %v1010 = vmul.f32 %v994, %v834
      %v1011 = vsub.f32 %v995, 0.2145988
      %v1012 = vsub.f32 %v996, 0.2145988
      %v1013 = vsub.f32 %v997, 0.2145988
      %v1014 = vsub.f32 %v998, 0.2145988
      %v1015 = vsub.f32 %v999, 0.2145988
      %v1016 = vsub.f32 %v1000, 0.2145988
      %v1017 = vsub.f32 %v1001, 0.2145988
      %v1018 = vsub.f32 %v1002, 0.2145988
      %v1019 = vsub.f32 %v1003, 0.2145988
      %v1020 = vsub.f32 %v1004, 0.2145988
      %v1021 = vsub.f32 %v1005, 0.2145988
      %v1022 = vsub.f32 %v1006, 0.2145988
      %v1023 = vsub.f32 %v1007, 0.2145988
      %v1024 = vsub.f32 %v1008, 0.2145988
      %v1025 = vsub.f32 %v1009, 0.2145988
      %v1026 = vsub.f32 %v1010, 0.2145988
      %v1027 = vmul.f32 %v1011, %v819
      %v1028 = vmul.f32 %v1012, %v820
      %v1029 = vmul.f32 %v1013, %v821
      %v1030 = vmul.f32 %v1014, %v822
      %v1031 = vmul.f32 %v1015, %v823
      %v1032 = vmul.f32 %v1016, %v824
      %v1033 = vmul.f32 %v1017, %v825
      %v1034 = vmul.f32 %v1018, %v826
      %v1035 = vmul.f32 %v1019, %v827
      %v1036 = vmul.f32 %v1020, %v828
      %v1037 = vmul.f32 %v1021, %v829
      %v1038 = vmul.f32 %v1022, %v830
      %v1039 = vmul.f32 %v1023, %v831
      %v1040 = vmul.f32 %v1024, %v832
      %v1041 = vmul.f32 %v1025, %v833
      %v1042 = vmul.f32 %v1026, %v834
      %v1043 = vadd.f32 %v1027, 1.5707963
      %v1044 = vadd.f32 %v1028, 1.5707963
      %v1045 = vadd.f32 %v1029, 1.5707963
      %v1046 = vadd.f32 %v1030, 1.5707963
      %v1047 = vadd.f32 %v1031, 1.5707963
      %v1048 = vadd.f32 %v1032, 1.5707963
      %v1049 = vadd.f32 %v1033, 1.5707963
      %v1050 = vadd.f32 %v1034, 1.5707963
      %v1051 = vadd.f32 %v1035, 1.5707963
      %v1052 = vadd.f32 %v1036, 1.5707963
      %v1053 = vadd.f32 %v1037, 1.5707963
      %v1054 = vadd.f32 %v1038, 1.5707963
      %v1055 = vadd.f32 %v1039, 1.5707963
      %v1056 = vadd.f32 %v1040, 1.5707963
      %v1057 = vadd.f32 %v1041, 1.5707963
      %v1058 = vadd.f32 %v1042, 1.5707963
      %v1059 = vsub.f32 1.0, %v819
      %v1060 = vsub.f32 1.0, %v820
      %v1061 = vsub.f32 1.0, %v821
      %v1062 = vsub.f32 1.0, %v822
      %v1063 = vsub.f32 1.0, %v823
      %v1064 = vsub.f32 1.0, %v824
      %v1065 = vsub.f32 1.0, %v825
      %v1066 = vsub.f32 1.0, %v826
      %v1067 = vsub.f32 1.0, %v827
      %v1068 = vsub.f32 1.0, %v828
      %v1069 = vsub.f32 1.0, %v829
      %v1070 = vsub.f32 1.0, %v830
      %v1071 = vsub.f32 1.0, %v831
      %v1072 = vsub.f32 1.0, %v832
      %v1073 = vsub.f32 1.0, %v833
      %v1074 = vsub.f32 1.0, %v834
      %v1075 = vmax.f32 %v1059, 0.0
      %v1076 = vmax.f32 %v1060, 0.0
      %v1077 = vmax.f32 %v1061, 0.0
      %v1078 = vmax.f32 %v1062, 0.0
      %v1079 = vmax.f32 %v1063, 0.0
      %v1080 = vmax.f32 %v1064, 0.0
      %v1081 = vmax.f32 %v1065, 0.0
      %v1082 = vmax.f32 %v1066, 0.0
      %v1083 = vmax.f32 %v1067, 0.0
      %v1084 = vmax.f32 %v1068, 0.0
      %v1085 = vmax.f32 %v1069, 0.0
      %v1086 = vmax.f32 %v1070, 0.0
      %v1087 = vmax.f32 %v1071, 0.0
      %v1088 = vmax.f32 %v1072, 0.0
      %v1089 = vmax.f32 %v1073, 0.0
      %v1090 = vmax.f32 %v1074, 0.0
      %v1091 = vrsqrt.pop %v1075
      %v1092 = vmul.f32 %v1075, %v1091
      %vm1093 = vcmp.eq.f32.partialorder %v1075, inf
      %v1094 = vsel %vm1093, %v1075, %v1092
      %vm1095 = vcmp.eq.f32.partialorder %v1075, 0.0
      %v1096 = vand.u32 %v1075, 2147483648
      %v1097 = vsel %vm1095, %v1096, %v1094
      %v1098 = vrsqrt.pop %v1076
      %v1099 = vmul.f32 %v1076, %v1098
      %vm1100 = vcmp.eq.f32.partialorder %v1076, inf
      %v1101 = vsel %vm1100, %v1076, %v1099
      %vm1102 = vcmp.eq.f32.partialorder %v1076, 0.0
      %v1103 = vand.u32 %v1076, 2147483648
      %v1104 = vsel %vm1102, %v1103, %v1101
      %v1105 = vrsqrt.pop %v1077
      %v1106 = vmul.f32 %v1077, %v1105
      %vm1107 = vcmp.eq.f32.partialorder %v1077, inf
      %v1108 = vsel %vm1107, %v1077, %v1106
      %vm1109 = vcmp.eq.f32.partialorder %v1077, 0.0
      %v1110 = vand.u32 %v1077, 2147483648
      %v1111 = vsel %vm1109, %v1110, %v1108
      %v1112 = vrsqrt.pop %v1078
      %v1113 = vmul.f32 %v1078, %v1112
      %vm1114 = vcmp.eq.f32.partialorder %v1078, inf
      %v1115 = vsel %vm1114, %v1078, %v1113
      %vm1116 = vcmp.eq.f32.partialorder %v1078, 0.0
      %v1117 = vand.u32 %v1078, 2147483648
      %v1118 = vsel %vm1116, %v1117, %v1115
      %v1119 = vrsqrt.pop %v1079
      %v1120 = vmul.f32 %v1079, %v1119
      %vm1121 = vcmp.eq.f32.partialorder %v1079, inf
      %v1122 = vsel %vm1121, %v1079, %v1120
      %vm1123 = vcmp.eq.f32.partialorder %v1079, 0.0
      %v1124 = vand.u32 %v1079, 2147483648
      %v1125 = vsel %vm1123, %v1124, %v1122
      %v1126 = vrsqrt.pop %v1080
      %v1127 = vmul.f32 %v1080, %v1126
      %vm1128 = vcmp.eq.f32.partialorder %v1080, inf
      %v1129 = vsel %vm1128, %v1080, %v1127
      %vm1130 = vcmp.eq.f32.partialorder %v1080, 0.0
      %v1131 = vand.u32 %v1080, 2147483648
      %v1132 = vsel %vm1130, %v1131, %v1129
      %v1133 = vrsqrt.pop %v1081
      %v1134 = vmul.f32 %v1081, %v1133
      %vm1135 = vcmp.eq.f32.partialorder %v1081, inf
      %v1136 = vsel %vm1135, %v1081, %v1134
      %vm1137 = vcmp.eq.f32.partialorder %v1081, 0.0
      %v1138 = vand.u32 %v1081, 2147483648
      %v1139 = vsel %vm1137, %v1138, %v1136
      %v1140 = vrsqrt.pop %v1082
      %v1141 = vmul.f32 %v1082, %v1140
      %vm1142 = vcmp.eq.f32.partialorder %v1082, inf
      %v1143 = vsel %vm1142, %v1082, %v1141
      %vm1144 = vcmp.eq.f32.partialorder %v1082, 0.0
      %v1145 = vand.u32 %v1082, 2147483648
      %v1146 = vsel %vm1144, %v1145, %v1143
      %v1147 = vrsqrt.pop %v1083
      %v1148 = vmul.f32 %v1083, %v1147
      %vm1149 = vcmp.eq.f32.partialorder %v1083, inf
      %v1150 = vsel %vm1149, %v1083, %v1148
      %vm1151 = vcmp.eq.f32.partialorder %v1083, 0.0
      %v1152 = vand.u32 %v1083, 2147483648
      %v1153 = vsel %vm1151, %v1152, %v1150
      %v1154 = vrsqrt.pop %v1084
      %v1155 = vmul.f32 %v1084, %v1154
      %vm1156 = vcmp.eq.f32.partialorder %v1084, inf
      %v1157 = vsel %vm1156, %v1084, %v1155
      %vm1158 = vcmp.eq.f32.partialorder %v1084, 0.0
      %v1159 = vand.u32 %v1084, 2147483648
      %v1160 = vsel %vm1158, %v1159, %v1157
      %v1161 = vrsqrt.pop %v1085
      %v1162 = vmul.f32 %v1085, %v1161
      %vm1163 = vcmp.eq.f32.partialorder %v1085, inf
      %v1164 = vsel %vm1163, %v1085, %v1162
      %vm1165 = vcmp.eq.f32.partialorder %v1085, 0.0
      %v1166 = vand.u32 %v1085, 2147483648
      %v1167 = vsel %vm1165, %v1166, %v1164
      %v1168 = vrsqrt.pop %v1086
      %v1169 = vmul.f32 %v1086, %v1168
      %vm1170 = vcmp.eq.f32.partialorder %v1086, inf
      %v1171 = vsel %vm1170, %v1086, %v1169
      %vm1172 = vcmp.eq.f32.partialorder %v1086, 0.0
      %v1173 = vand.u32 %v1086, 2147483648
      %v1174 = vsel %vm1172, %v1173, %v1171
      %v1175 = vrsqrt.pop %v1087
      %v1176 = vmul.f32 %v1087, %v1175
      %vm1177 = vcmp.eq.f32.partialorder %v1087, inf
      %v1178 = vsel %vm1177, %v1087, %v1176
      %vm1179 = vcmp.eq.f32.partialorder %v1087, 0.0
      %v1180 = vand.u32 %v1087, 2147483648
      %v1181 = vsel %vm1179, %v1180, %v1178
      %v1182 = vrsqrt.pop %v1088
      %v1183 = vmul.f32 %v1088, %v1182
      %vm1184 = vcmp.eq.f32.partialorder %v1088, inf
      %v1185 = vsel %vm1184, %v1088, %v1183
      %vm1186 = vcmp.eq.f32.partialorder %v1088, 0.0
      %v1187 = vand.u32 %v1088, 2147483648
      %v1188 = vsel %vm1186, %v1187, %v1185
      %v1189 = vrsqrt.pop %v1089
      %v1190 = vmul.f32 %v1089, %v1189
      %vm1191 = vcmp.eq.f32.partialorder %v1089, inf
      %v1192 = vsel %vm1191, %v1089, %v1190
      %vm1193 = vcmp.eq.f32.partialorder %v1089, 0.0
      %v1194 = vand.u32 %v1089, 2147483648
      %v1195 = vsel %vm1193, %v1194, %v1192
      %v1196 = vrsqrt.pop %v1090
      %v1197 = vmul.f32 %v1090, %v1196
      %vm1198 = vcmp.eq.f32.partialorder %v1090, inf
      %v1199 = vsel %vm1198, %v1090, %v1197
      %vm1200 = vcmp.eq.f32.partialorder %v1090, 0.0
      %v1201 = vand.u32 %v1090, 2147483648
      %v1202 = vsel %vm1200, %v1201, %v1199
      %v1203 = vmul.f32 %v1097, %v1043
      %v1204 = vmul.f32 %v1104, %v1044
      %v1205 = vmul.f32 %v1111, %v1045
      %v1206 = vmul.f32 %v1118, %v1046
      %v1207 = vmul.f32 %v1125, %v1047
      %v1208 = vmul.f32 %v1132, %v1048
      %v1209 = vmul.f32 %v1139, %v1049
      %v1210 = vmul.f32 %v1146, %v1050
      %v1211 = vmul.f32 %v1153, %v1051
      %v1212 = vmul.f32 %v1160, %v1052
      %v1213 = vmul.f32 %v1167, %v1053
      %v1214 = vmul.f32 %v1174, %v1054
      %v1215 = vmul.f32 %v1181, %v1055
      %v1216 = vmul.f32 %v1188, %v1056
      %v1217 = vmul.f32 %v1195, %v1057
      %v1218 = vmul.f32 %v1202, %v1058
      %vm1219 = vcmp.lt.f32.partialorder %v623, 0.0
      %vm1220 = vcmp.lt.f32.partialorder %v624, 0.0
      %vm1221 = vcmp.lt.f32.partialorder %v625, 0.0
      %vm1222 = vcmp.lt.f32.partialorder %v626, 0.0
      %vm1223 = vcmp.lt.f32.partialorder %v627, 0.0
      %vm1224 = vcmp.lt.f32.partialorder %v628, 0.0
      %vm1225 = vcmp.lt.f32.partialorder %v629, 0.0
      %vm1226 = vcmp.lt.f32.partialorder %v630, 0.0
      %vm1227 = vcmp.lt.f32.partialorder %v631, 0.0
      %vm1228 = vcmp.lt.f32.partialorder %v632, 0.0
      %vm1229 = vcmp.lt.f32.partialorder %v633, 0.0
      %vm1230 = vcmp.lt.f32.partialorder %v634, 0.0
      %vm1231 = vcmp.lt.f32.partialorder %v635, 0.0
      %vm1232 = vcmp.lt.f32.partialorder %v636, 0.0
      %vm1233 = vcmp.lt.f32.partialorder %v637, 0.0
      %vm1234 = vcmp.lt.f32.partialorder %v638, 0.0
      %v1235 = vsub.f32 3.1415927, %v1203
      %v1236 = vsub.f32 3.1415927, %v1204
      %v1237 = vsub.f32 3.1415927, %v1205
      %v1238 = vsub.f32 3.1415927, %v1206
      %v1239 = vsub.f32 3.1415927, %v1207
      %v1240 = vsub.f32 3.1415927, %v1208
      %v1241 = vsub.f32 3.1415927, %v1209
      %v1242 = vsub.f32 3.1415927, %v1210
      %v1243 = vsub.f32 3.1415927, %v1211
      %v1244 = vsub.f32 3.1415927, %v1212
      %v1245 = vsub.f32 3.1415927, %v1213
      %v1246 = vsub.f32 3.1415927, %v1214
      %v1247 = vsub.f32 3.1415927, %v1215
      %v1248 = vsub.f32 3.1415927, %v1216
      %v1249 = vsub.f32 3.1415927, %v1217
      %v1250 = vsub.f32 3.1415927, %v1218
      %v1251 = vsel %vm1219, %v1235, %v1203
      %v1252 = vsel %vm1220, %v1236, %v1204
      %v1253 = vsel %vm1221, %v1237, %v1205
      %v1254 = vsel %vm1222, %v1238, %v1206
      %v1255 = vsel %vm1223, %v1239, %v1207
      %v1256 = vsel %vm1224, %v1240, %v1208
      %v1257 = vsel %vm1225, %v1241, %v1209
      %v1258 = vsel %vm1226, %v1242, %v1210
      %v1259 = vsel %vm1227, %v1243, %v1211
      %v1260 = vsel %vm1228, %v1244, %v1212
      %v1261 = vsel %vm1229, %v1245, %v1213
      %v1262 = vsel %vm1230, %v1246, %v1214
      %v1263 = vsel %vm1231, %v1247, %v1215
      %v1264 = vsel %vm1232, %v1248, %v1216
      %v1265 = vsel %vm1233, %v1249, %v1217
      %v1266 = vsel %vm1234, %v1250, %v1218
      %v1267 = vmul.f32 %v1251, 0.31830987
      %v1268 = vmul.f32 %v1252, 0.31830987
      %v1269 = vmul.f32 %v1253, 0.31830987
      %v1270 = vmul.f32 %v1254, 0.31830987
      %v1271 = vmul.f32 %v1255, 0.31830987
      %v1272 = vmul.f32 %v1256, 0.31830987
      %v1273 = vmul.f32 %v1257, 0.31830987
      %v1274 = vmul.f32 %v1258, 0.31830987
      %v1275 = vmul.f32 %v1259, 0.31830987
      %v1276 = vmul.f32 %v1260, 0.31830987
      %v1277 = vmul.f32 %v1261, 0.31830987
      %v1278 = vmul.f32 %v1262, 0.31830987
      %v1279 = vmul.f32 %v1263, 0.31830987
      %v1280 = vmul.f32 %v1264, 0.31830987
      %v1281 = vmul.f32 %v1265, 0.31830987
      %v1282 = vmul.f32 %v1266, 0.31830987
      %v1283 = vsub.f32 1.0, %v1267
      %v1284 = vsub.f32 1.0, %v1268
      %v1285 = vsub.f32 1.0, %v1269
      %v1286 = vsub.f32 1.0, %v1270
      %v1287 = vsub.f32 1.0, %v1271
      %v1288 = vsub.f32 1.0, %v1272
      %v1289 = vsub.f32 1.0, %v1273
      %v1290 = vsub.f32 1.0, %v1274
      %v1291 = vsub.f32 1.0, %v1275
      %v1292 = vsub.f32 1.0, %v1276
      %v1293 = vsub.f32 1.0, %v1277
      %v1294 = vsub.f32 1.0, %v1278
      %v1295 = vsub.f32 1.0, %v1279
      %v1296 = vsub.f32 1.0, %v1280
      %v1297 = vsub.f32 1.0, %v1281
      %v1298 = vsub.f32 1.0, %v1282
      %v1299 = vsel %vm803, %v1283, 0.0
      %v1300 = vsel %vm804, %v1284, 0.0
      %v1301 = vsel %vm805, %v1285, 0.0
      %v1302 = vsel %vm806, %v1286, 0.0
      %v1303 = vsel %vm807, %v1287, 0.0
      %v1304 = vsel %vm808, %v1288, 0.0
      %v1305 = vsel %vm809, %v1289, 0.0
      %v1306 = vsel %vm810, %v1290, 0.0
      %v1307 = vsel %vm811, %v1291, 0.0
      %v1308 = vsel %vm812, %v1292, 0.0
      %v1309 = vsel %vm813, %v1293, 0.0
      %v1310 = vsel %vm814, %v1294, 0.0
      %v1311 = vsel %vm815, %v1295, 0.0
      %v1312 = vsel %vm816, %v1296, 0.0
      %v1313 = vsel %vm817, %v1297, 0.0
      %v1314 = vsel %vm818, %v1298, 0.0
      %v1315 = vld [vmem:[%s308] sm:$0xff]
      %v1316 = vld [vmem:[%s308 + $0x8] sm:$0xff]
      %v1317 = vld [vmem:[%s308 + $0x10] sm:$0xff]
      %v1318 = vld [vmem:[%s308 + $0x18] sm:$0xff]
      %v1319 = vld [vmem:[%s308 + $0x20] sm:$0xff]
      %v1320 = vld [vmem:[%s308 + $0x28] sm:$0xff]
      %v1321 = vld [vmem:[%s308 + $0x30] sm:$0xff]
      %v1322 = vld [vmem:[%s308 + $0x38] sm:$0xff]
      %v1323 = vld [vmem:[%s308 + $0x40] sm:$0xff]
      %v1324 = vld [vmem:[%s308 + $0x48] sm:$0xff]
      %v1325 = vld [vmem:[%s308 + $0x50] sm:$0xff]
      %v1326 = vld [vmem:[%s308 + $0x58] sm:$0xff]
      %v1327 = vld [vmem:[%s308 + $0x60] sm:$0xff]
      %v1328 = vld [vmem:[%s308 + $0x68] sm:$0xff]
      %v1329 = vld [vmem:[%s308 + $0x70] sm:$0xff]
      %v1330 = vld [vmem:[%s308 + $0x78] sm:$0xff]
      %1331 = vadd.xlane.f32.xlu0 %v1299
      %v1332 = vpop.xlane.xlu0 %1331
      %1333 = vadd.xlane.f32.xlu0 %v1300
      %v1334 = vpop.xlane.xlu0 %1333
      %1335 = vadd.xlane.f32.xlu0 %v1301
      %v1336 = vpop.xlane.xlu0 %1335
      %1337 = vadd.xlane.f32.xlu0 %v1302
      %v1338 = vpop.xlane.xlu0 %1337
      %1339 = vadd.xlane.f32.xlu0 %v1303
      %v1340 = vpop.xlane.xlu0 %1339
      %1341 = vadd.xlane.f32.xlu0 %v1304
      %v1342 = vpop.xlane.xlu0 %1341
      %1343 = vadd.xlane.f32.xlu0 %v1305
      %v1344 = vpop.xlane.xlu0 %1343
      %1345 = vadd.xlane.f32.xlu0 %v1306
      %v1346 = vpop.xlane.xlu0 %1345
      %1347 = vadd.xlane.f32.xlu0 %v1307
      %v1348 = vpop.xlane.xlu0 %1347
      %1349 = vadd.xlane.f32.xlu0 %v1308
      %v1350 = vpop.xlane.xlu0 %1349
      %1351 = vadd.xlane.f32.xlu0 %v1309
      %v1352 = vpop.xlane.xlu0 %1351
      %1353 = vadd.xlane.f32.xlu0 %v1310
      %v1354 = vpop.xlane.xlu0 %1353
      %1355 = vadd.xlane.f32.xlu0 %v1311
      %v1356 = vpop.xlane.xlu0 %1355
      %1357 = vadd.xlane.f32.xlu0 %v1312
      %v1358 = vpop.xlane.xlu0 %1357
      %1359 = vadd.xlane.f32.xlu0 %v1313
      %v1360 = vpop.xlane.xlu0 %1359
      %1361 = vadd.xlane.f32.xlu0 %v1314
      %v1362 = vpop.xlane.xlu0 %1361
      %v1363 = vadd.f32 %v1315, %v1332
      %v1364 = vadd.f32 %v1316, %v1334
      %v1365 = vadd.f32 %v1317, %v1336
      %v1366 = vadd.f32 %v1318, %v1338
      %v1367 = vadd.f32 %v1319, %v1340
      %v1368 = vadd.f32 %v1320, %v1342
      %v1369 = vadd.f32 %v1321, %v1344
      %v1370 = vadd.f32 %v1322, %v1346
      %v1371 = vadd.f32 %v1323, %v1348
      %v1372 = vadd.f32 %v1324, %v1350
      %v1373 = vadd.f32 %v1325, %v1352
      %v1374 = vadd.f32 %v1326, %v1354
      %v1375 = vadd.f32 %v1327, %v1356
      %v1376 = vadd.f32 %v1328, %v1358
      %v1377 = vadd.f32 %v1329, %v1360
      %v1378 = vadd.f32 %v1330, %v1362
      %vm1379 = vcmask 7168
      %1380 = vst.msk [vmem:[%s308] sm:$0xff] %vm1379, %v1363
      %1381 = vst.msk [vmem:[%s308 + $0x8] sm:$0xff] %vm1379, %v1364
      %1382 = vst.msk [vmem:[%s308 + $0x10] sm:$0xff] %vm1379, %v1365
      %1383 = vst.msk [vmem:[%s308 + $0x18] sm:$0xff] %vm1379, %v1366
      %1384 = vst.msk [vmem:[%s308 + $0x20] sm:$0xff] %vm1379, %v1367
      %1385 = vst.msk [vmem:[%s308 + $0x28] sm:$0xff] %vm1379, %v1368
      %1386 = vst.msk [vmem:[%s308 + $0x30] sm:$0xff] %vm1379, %v1369
      %1387 = vst.msk [vmem:[%s308 + $0x38] sm:$0xff] %vm1379, %v1370
      %1388 = vst.msk [vmem:[%s308 + $0x40] sm:$0xff] %vm1379, %v1371
      %1389 = vst.msk [vmem:[%s308 + $0x48] sm:$0xff] %vm1379, %v1372
      %1390 = vst.msk [vmem:[%s308 + $0x50] sm:$0xff] %vm1379, %v1373
      %1391 = vst.msk [vmem:[%s308 + $0x58] sm:$0xff] %vm1379, %v1374
      %1392 = vst.msk [vmem:[%s308 + $0x60] sm:$0xff] %vm1379, %v1375
      %1393 = vst.msk [vmem:[%s308 + $0x68] sm:$0xff] %vm1379, %v1376
      %1394 = vst.msk [vmem:[%s308 + $0x70] sm:$0xff] %vm1379, %v1377
      %1395 = vst.msk [vmem:[%s308 + $0x78] sm:$0xff] %vm1379, %v1378
      %s1396 = sadd.s32 %s20, %s21
      %s1397 = smul.u32 16, %s1396
      %p1398 = scmp.lt.s32.totalorder %s1397, 47
      %s1399 = scalar_select %p1398, %s1397, 47
      %s1400 = smul.addr %s1399, 8
      %s1401 = scalar_lea.vmem %s4, %s1400
      // Predicated region
      $region41: #{_forward.5} parent=35 // pred_check
        %p1402 = pneg %p162
      $region42: #{_forward.5} parent=35 // pred_check_branch
        %1404 = sbr.rel (%p1402) target = $region44
      $region43: #{_forward.5} parent=35 // pred_region
        %s1405 = sadd.s32 %s20, %s21
        %s1406 = smul.u32 16, %s1405
      $region44: #{_forward.5} parent=35 // pred_fallthru
        _
    $region36: #{_forward.5} parent=5 // pred_fallthru
      _
    %p1407 = scmp.le.s32.totalorder 2, %s10
    // Predicated region
    $region45: #{_forward.5} parent=5 // pred_check
      %p1408 = pneg %p1407
    $region46: #{_forward.5} parent=5 // pred_check_branch
      %1410 = sbr.rel (%p1408) target = $region48
    $region47: #{_forward.5} parent=5 // pred_region
      %s1411 = ssub.s32 %s10, 2
      // Predicated region
      $region49: #{_forward.5} parent=47 // pred_check
        %p1412 = pneg %p168
      $region50: #{_forward.5} parent=47 // pred_check_branch
        %1414 = sbr.rel (%p1412) target = $region52
      $region51: #{_forward.5} parent=47 // pred_region
        %s1415 = sadd.s32 %s23, %s24
        %s1416 = smul.u32 16, %s1415
        %p1417 = scmp.lt.s32.totalorder %s1416, 47
        %s1418 = scalar_select %p1417, %s1416, 47
        %s1419 = smul.addr %s1418, 8
        %s1420 = scalar_lea.vmem %s4, %s1419
      $region52: #{_forward.5} parent=47 // pred_fallthru
        _
    $region48: #{_forward.5} parent=5 // pred_fallthru
      _
  $region6: #{_forward.5} parent=0 // loop_footer
    %s14 = sadd.s32 1, %s10
  $region7: #{_forward.5} parent=0 // loop_footer_branch
    %9 = sbr.rel target = $region3
  $region8: #{_forward.5} parent=0 // loop_exit
    _

// kernel: _forward.6
$region0: #{_forward.6}
  #allocation0 [shape = 'u32[]', space=smem, size = 0x4, offset = 0x4, fixed_abs, tag = 'smem constant byte address 0x4 - core index']
  #allocation1 [shape = 'u32[144,128]{1,0:T(1,128)}', space=vmem, size = 0x12000, scoped, tag = 'internal scratch']
  %s0 = inlined_call_operand.vmem [shape: s32[128,1], index: 0, kind: input, shape index: {}]
  %s1 = inlined_call_operand.vmem [shape: s32[1,128], index: 1, kind: input, shape index: {}]
  %s2 = inlined_call_operand.vmem [shape: f32[3,128,32], index: 2, kind: input, shape index: {}, may-alias: {2,3}]
  %s3 = inlined_call_operand.vmem [shape: f32[3,128,32], index: 3, kind: input, shape index: {}, may-alias: {2,3}]
  %s4 = inlined_call_operand.vmem [shape: f32[384,1], index: 4, kind: input, shape index: {}]
  %s5 = inlined_call_operand.vmem [shape: f32[1,384], index: 5, kind: input, shape index: {}]
  %s6 = inlined_call_operand.vmem [shape: bf16[384,128], index: 6, kind: output, shape index: {}]
  %s7 = sld [smem:[#allocation0]]
  $region57: #{_forward.6} parent=0
    _
  %s9 = ssub.s32 1, %s7
  %s10 = scalar_select 0, %s9, %s7
  loop: start=0, step=1, limit=5
  $region2: #{_forward.6} parent=0 // loop_pre_header
    _
  $region3: #{_forward.6} parent=0 // loop_header
    %s12 = sphi 0, %s16
    %p13 = scmp.ge.s32.totalorder %s12, 5
    %s19 = sphi 0, %s38
    %s20 = sphi 0, %s34
    %s21 = sphi 0, %s30
    %s22 = sphi 0, %s19
    %s23 = sphi 0, %s20
    %s24 = sphi 0, %s21
    %s25 = sphi 0, %s22
    %s26 = sphi 0, %s23
    %s27 = sphi 0, %s24
    %s41 = sphi 0, %s43
    %s44 = sphi 0, %s41
    %s45 = sphi 0, %s44
    %s61 = sphi 0, %s45
    %s67 = sphi 0, %s69
    %s70 = sphi 0, %s67
    %s71 = sphi 0, %s70
    %s87 = sphi 0, %s71
    %s95 = sphi 0, %s97
    %s98 = sphi 0, %s95
    %s99 = sphi 0, %s98
    %s115 = sphi 0, %s99
    %s123 = sphi 0, %s125
    %s126 = sphi 0, %s123
    %s127 = sphi 0, %s126
    %s143 = sphi 0, %s127
    %s151 = sphi 0, %s153
    %s154 = sphi 0, %s151
    %s155 = sphi 0, %s154
    %s171 = sphi 0, %s155
    %s179 = sphi 0, %s181
    %s182 = sphi 0, %s179
    %s183 = sphi 0, %s182
    %s199 = sphi 0, %s183
    %s209 = sphi 0, %s211
    %s212 = sphi 0, %s209
    %s213 = sphi 0, %s212
    %s229 = sphi 0, %s213
  $region4: #{_forward.6} parent=0 // loop_header_branch
    %15 = sbr.rel (%p13) target = $region8
  $region5: #{_forward.6} parent=0 // loop_body
    %s17 = ssub.s32 %s12, 1
    %s18 = ssub.s32 %s12, 2
    %s28 = sadd.s32 1, %s21
    %p29 = scmp.ge.s32.totalorder %s28, 1
    %s30 = scalar_select %p29, 0, %s28
    %s31 = sadd.s32 1, %s20
    %s32 = scalar_select %p29, %s31, %s20
    %p33 = scmp.ge.s32.totalorder %s32, 1
    %s34 = scalar_select %p33, 0, %s32
    %s35 = sadd.s32 1, %s19
    %s36 = scalar_select %p33, %s35, %s19
    %p37 = scmp.ge.s32.totalorder %s36, 3
    %s38 = scalar_select %p37, 0, %s36
    %s39 = ssub.s32 %s21, %s30
    %p40 = scmp.eq.s32.totalorder %s39, 0
    %s42 = sadd.s32 %s41, 1
    %s43 = scalar_select %p40, %s41, %s42
    %p46 = pneg %p40
    %p47 = scmp.eq.s32.totalorder %s12, 2
    %p48 = por %p46, %p47
    %p49 = scmp.ne.s32.totalorder %s41, %s44
    %p50 = scmp.eq.s32.totalorder %s12, 0
    %p51 = por %p49, %p50
    %p52 = scmp.ne.s32.totalorder %s41, %s44
    %p53 = scmp.eq.s32.totalorder %s17, 2
    %p54 = por %p52, %p53
    %p55 = scmp.ne.s32.totalorder %s44, %s45
    %p56 = scmp.eq.s32.totalorder %s17, 0
    %p57 = por %p55, %p56
    %p58 = scmp.ne.s32.totalorder %s44, %s45
    %p59 = scmp.eq.s32.totalorder %s18, 2
    %p60 = por %p58, %p59
    %p62 = scmp.ne.s32.totalorder %s45, %s61
    %p63 = scmp.eq.s32.totalorder %s18, 0
    %p64 = por %p62, %p63
    %s65 = ssub.s32 %s20, %s34
    %p66 = scmp.eq.s32.totalorder %s65, 0
    %s68 = sadd.s32 %s67, 1
    %s69 = scalar_select %p66, %s67, %s68
    %p72 = pneg %p66
    %p73 = scmp.eq.s32.totalorder %s12, 2
    %p74 = por %p72, %p73
    %p75 = scmp.ne.s32.totalorder %s67, %s70
    %p76 = scmp.eq.s32.totalorder %s12, 0
    %p77 = por %p75, %p76
    %p78 = scmp.ne.s32.totalorder %s67, %s70
    %p79 = scmp.eq.s32.totalorder %s17, 2
    %p80 = por %p78, %p79
    %p81 = scmp.ne.s32.totalorder %s70, %s71
    %p82 = scmp.eq.s32.totalorder %s17, 0
    %p83 = por %p81, %p82
    %p84 = scmp.ne.s32.totalorder %s70, %s71
    %p85 = scmp.eq.s32.totalorder %s18, 2
    %p86 = por %p84, %p85
    %p88 = scmp.ne.s32.totalorder %s71, %s87
    %p89 = scmp.eq.s32.totalorder %s18, 0
    %p90 = por %p88, %p89
    %s91 = ssub.s32 %s19, %s38
    %s92 = ssub.s32 %s21, %s30
    %s93 = sor.u32 %s91, %s92
    %p94 = scmp.eq.s32.totalorder %s93, 0
    %s96 = sadd.s32 %s95, 1
    %s97 = scalar_select %p94, %s95, %s96
    %p100 = pneg %p94
    %p101 = scmp.eq.s32.totalorder %s12, 2
    %p102 = por %p100, %p101
    %p103 = scmp.ne.s32.totalorder %s95, %s98
    %p104 = scmp.eq.s32.totalorder %s12, 0
    %p105 = por %p103, %p104
    %p106 = scmp.ne.s32.totalorder %s95, %s98
    %p107 = scmp.eq.s32.totalorder %s17, 2
    %p108 = por %p106, %p107
    %p109 = scmp.ne.s32.totalorder %s98, %s99
    %p110 = scmp.eq.s32.totalorder %s17, 0
    %p111 = por %p109, %p110
    %p112 = scmp.ne.s32.totalorder %s98, %s99
    %p113 = scmp.eq.s32.totalorder %s18, 2
    %p114 = por %p112, %p113
    %p116 = scmp.ne.s32.totalorder %s99, %s115
    %p117 = scmp.eq.s32.totalorder %s18, 0
    %p118 = por %p116, %p117
    %s119 = ssub.s32 %s19, %s38
    %s120 = ssub.s32 %s20, %s34
    %s121 = sor.u32 %s119, %s120
    %p122 = scmp.eq.s32.totalorder %s121, 0
    %s124 = sadd.s32 %s123, 1
    %s125 = scalar_select %p122, %s123, %s124
    %p128 = pneg %p122
    %p129 = scmp.eq.s32.totalorder %s12, 2
    %p130 = por %p128, %p129
    %p131 = scmp.ne.s32.totalorder %s123, %s126
    %p132 = scmp.eq.s32.totalorder %s12, 0
    %p133 = por %p131, %p132
    %p134 = scmp.ne.s32.totalorder %s123, %s126
    %p135 = scmp.eq.s32.totalorder %s17, 2
    %p136 = por %p134, %p135
    %p137 = scmp.ne.s32.totalorder %s126, %s127
    %p138 = scmp.eq.s32.totalorder %s17, 0
    %p139 = por %p137, %p138
    %p140 = scmp.ne.s32.totalorder %s126, %s127
    %p141 = scmp.eq.s32.totalorder %s18, 2
    %p142 = por %p140, %p141
    %p144 = scmp.ne.s32.totalorder %s127, %s143
    %p145 = scmp.eq.s32.totalorder %s18, 0
    %p146 = por %p144, %p145
    %s147 = sadd.s32 %s19, %s21
    %s148 = sadd.s32 %s38, %s30
    %s149 = ssub.s32 %s147, %s148
    %p150 = scmp.eq.s32.totalorder %s149, 0
    %s152 = sadd.s32 %s151, 1
    %s153 = scalar_select %p150, %s151, %s152
    %p156 = pneg %p150
    %p157 = scmp.eq.s32.totalorder %s12, 2
    %p158 = por %p156, %p157
    %p159 = scmp.ne.s32.totalorder %s151, %s154
    %p160 = scmp.eq.s32.totalorder %s12, 0
    %p161 = por %p159, %p160
    %p162 = scmp.ne.s32.totalorder %s151, %s154
    %p163 = scmp.eq.s32.totalorder %s17, 2
    %p164 = por %p162, %p163
    %p165 = scmp.ne.s32.totalorder %s154, %s155
    %p166 = scmp.eq.s32.totalorder %s17, 0
    %p167 = por %p165, %p166
    %p168 = scmp.ne.s32.totalorder %s154, %s155
    %p169 = scmp.eq.s32.totalorder %s18, 2
    %p170 = por %p168, %p169
    %p172 = scmp.ne.s32.totalorder %s155, %s171
    %p173 = scmp.eq.s32.totalorder %s18, 0
    %p174 = por %p172, %p173
    %s175 = sadd.s32 %s19, %s20
    %s176 = sadd.s32 %s38, %s34
    %s177 = ssub.s32 %s175, %s176
    %p178 = scmp.eq.s32.totalorder %s177, 0
    %s180 = sadd.s32 %s179, 1
    %s181 = scalar_select %p178, %s179, %s180
    %p184 = pneg %p178
    %p185 = scmp.eq.s32.totalorder %s12, 2
    %p186 = por %p184, %p185
    %p187 = scmp.ne.s32.totalorder %s179, %s182
    %p188 = scmp.eq.s32.totalorder %s12, 0
    %p189 = por %p187, %p188
    %p190 = scmp.ne.s32.totalorder %s179, %s182
    %p191 = scmp.eq.s32.totalorder %s17, 2
    %p192 = por %p190, %p191
    %p193 = scmp.ne.s32.totalorder %s182, %s183
    %p194 = scmp.eq.s32.totalorder %s17, 0
    %p195 = por %p193, %p194
    %p196 = scmp.ne.s32.totalorder %s182, %s183
    %p197 = scmp.eq.s32.totalorder %s18, 2
    %p198 = por %p196, %p197
    %p200 = scmp.ne.s32.totalorder %s183, %s199
    %p201 = scmp.eq.s32.totalorder %s18, 0
    %p202 = por %p200, %p201
    %s203 = sadd.s32 %s19, %s21
    %s204 = sadd.s32 %s38, %s30
    %s205 = ssub.s32 %s203, %s204
    %s206 = ssub.s32 %s20, %s34
    %s207 = sor.u32 %s205, %s206
    %p208 = scmp.eq.s32.totalorder %s207, 0
    %s210 = sadd.s32 %s209, 1
    %s211 = scalar_select %p208, %s209, %s210
    %p214 = pneg %p208
    %p215 = scmp.eq.s32.totalorder %s12, 2
    %p216 = por %p214, %p215
    %p217 = scmp.ne.s32.totalorder %s209, %s212
    %p218 = scmp.eq.s32.totalorder %s12, 0
    %p219 = por %p217, %p218
    %p220 = scmp.ne.s32.totalorder %s209, %s212
    %p221 = scmp.eq.s32.totalorder %s17, 2
    %p222 = por %p220, %p221
    %p223 = scmp.ne.s32.totalorder %s212, %s213
    %p224 = scmp.eq.s32.totalorder %s17, 0
    %p225 = por %p223, %p224
    %p226 = scmp.ne.s32.totalorder %s212, %s213
    %p227 = scmp.eq.s32.totalorder %s18, 2
    %p228 = por %p226, %p227
    %p230 = scmp.ne.s32.totalorder %s213, %s229
    %p231 = scmp.eq.s32.totalorder %s18, 0
    %p232 = por %p230, %p231
    %p233 = scmp.le.s32.totalorder 1, %s12
    %p234 = scmp.lt.s32.totalorder %s12, 4
    %p235 = pnand %p233, %p234
    %p236 = pneg %p235
    // Predicated region
    $region9: #{_forward.6} parent=5 // pred_check
      _
    $region10: #{_forward.6} parent=5 // pred_check_branch
      %238 = sbr.rel (%p235) target = $region12
    $region11: #{_forward.6} parent=5 // pred_region
      %s239 = ssub.s32 %s12, 1
      // Predicated region
      $region13: #{_forward.6} parent=11 // pred_check
        %p240 = pneg %p57
      $region14: #{_forward.6} parent=11 // pred_check_branch
        %242 = sbr.rel (%p240) target = $region16
      $region15: #{_forward.6} parent=11 // pred_region
        %s243 = smul.u32 16, %s24
        %p244 = scmp.lt.s32.totalorder %s243, 15
        %s245 = scalar_select %p244, %s243, 15
        %s246 = smul.addr %s245, 8
        %s247 = scalar_lea.vmem %s0, %s246
        %s248 = smul.u32 16, %s24
      $region16: #{_forward.6} parent=11 // pred_fallthru
        _
      // Predicated region
      $region17: #{_forward.6} parent=11 // pred_check
        %p249 = pneg %p83
      $region18: #{_forward.6} parent=11 // pred_check_branch
        %251 = sbr.rel (%p249) target = $region20
      $region19: #{_forward.6} parent=11 // pred_region
        %p252 = scmp.lt.s32.totalorder %s23, 0
        %s253 = scalar_select %p252, %s23, 0
        %s254 = scalar_lea.vmem %s1, %s253
      $region20: #{_forward.6} parent=11 // pred_fallthru
        _
    $region12: #{_forward.6} parent=5 // pred_fallthru
      _
    %p255 = scmp.lt.s32.totalorder %s12, 3
    // Predicated region
    $region21: #{_forward.6} parent=5 // pred_check
      %p256 = pneg %p255
    $region22: #{_forward.6} parent=5 // pred_check_branch
      %258 = sbr.rel (%p256) target = $region24
    $region23: #{_forward.6} parent=5 // pred_region
      // Predicated region
      $region25: #{_forward.6} parent=23 // pred_check
        %p259 = pneg %p105
      $region26: #{_forward.6} parent=23 // pred_check_branch
        %261 = sbr.rel (%p259) target = $region28
      $region27: #{_forward.6} parent=23 // pred_region
        %s262 = smul.u32 16, %s21
        %p263 = scmp.lt.s32.totalorder %s19, 2
        %s264 = scalar_select %p263, %s19, 2
        %p265 = scmp.lt.s32.totalorder %s262, 15
        %s266 = scalar_select %p265, %s262, 15
        %s267 = smul.addr %s264, 16
        %s268 = sadd.s32 %s266, %s267
        %s269 = smul.addr %s268, 8
        %s270 = scalar_lea.vmem %s2, %s269
        %s271 = smul.u32 16, %s21
      $region28: #{_forward.6} parent=23 // pred_fallthru
        _
      // Predicated region
      $region29: #{_forward.6} parent=23 // pred_check
        %p272 = pneg %p133
      $region30: #{_forward.6} parent=23 // pred_check_branch
        %274 = sbr.rel (%p272) target = $region32
      $region31: #{_forward.6} parent=23 // pred_region
        %s275 = smul.u32 16, %s20
        %p276 = scmp.lt.s32.totalorder %s19, 2
        %s277 = scalar_select %p276, %s19, 2
        %p278 = scmp.lt.s32.totalorder %s275, 15
        %s279 = scalar_select %p278, %s275, 15
        %s280 = smul.addr %s277, 16
        %s281 = sadd.s32 %s279, %s280
        %s282 = smul.addr %s281, 8
        %s283 = scalar_lea.vmem %s3, %s282
        %s284 = smul.u32 16, %s20
      $region32: #{_forward.6} parent=23 // pred_fallthru
        _
      // Predicated region
      $region33: #{_forward.6} parent=23 // pred_check
        %p285 = pneg %p161
      $region34: #{_forward.6} parent=23 // pred_check_branch
        %287 = sbr.rel (%p285) target = $region36
      $region35: #{_forward.6} parent=23 // pred_region
        %s288 = sadd.s32 %s19, %s21
        %s289 = smul.u32 16, %s288
        %p290 = scmp.lt.s32.totalorder %s289, 47
        %s291 = scalar_select %p290, %s289, 47
        %s292 = smul.addr %s291, 8
        %s293 = scalar_lea.vmem %s4, %s292
        %s294 = sadd.s32 %s19, %s21
        %s295 = smul.u32 16, %s294
      $region36: #{_forward.6} parent=23 // pred_fallthru
        _
      // Predicated region
      $region37: #{_forward.6} parent=23 // pred_check
        %p296 = pneg %p189
      $region38: #{_forward.6} parent=23 // pred_check_branch
        %298 = sbr.rel (%p296) target = $region40
      $region39: #{_forward.6} parent=23 // pred_region
        %s299 = sadd.s32 %s19, %s20
        %p300 = scmp.lt.s32.totalorder %s299, 2
        %s301 = scalar_select %p300, %s299, 2
        %s302 = scalar_lea.vmem %s5, %s301
        %s303 = sadd.s32 %s19, %s20
      $region40: #{_forward.6} parent=23 // pred_fallthru
        _
    $region24: #{_forward.6} parent=5 // pred_fallthru
      _
    %p304 = scmp.le.s32.totalorder 1, %s12
    %p305 = scmp.lt.s32.totalorder %s12, 4
    %p306 = pnand %p304, %p305
    %p307 = pneg %p306
    // Predicated region
    $region41: #{_forward.6} parent=5 // pred_check
      _
    $region42: #{_forward.6} parent=5 // pred_check_branch
      %309 = sbr.rel (%p306) target = $region44
    $region43: #{_forward.6} parent=5 // pred_region
      %s310 = ssub.s32 %s12, 1
      %s311 = smul.u32 16, %s24
      %p312 = scmp.lt.s32.totalorder %s311, 15
      %s313 = scalar_select %p312, %s311, 15
      %s314 = smul.addr %s313, 8
      %s315 = scalar_lea.vmem %s0, %s314
      %p316 = pneg %p57
      %p317 = pneg %p54
      %p318 = scmp.lt.s32.totalorder %s23, 0
      %s319 = scalar_select %p318, %s23, 0
      %s320 = scalar_lea.vmem %s1, %s319
      %p321 = pneg %p83
      %p322 = pneg %p80
      %s323 = smul.u32 16, %s24
      %p324 = scmp.lt.s32.totalorder %s22, 2
      %s325 = scalar_select %p324, %s22, 2
      %p326 = scmp.lt.s32.totalorder %s323, 15
      %s327 = scalar_select %p326, %s323, 15
      %s328 = smul.addr %s325, 16
      %s329 = sadd.s32 %s327, %s328
      %s330 = smul.addr %s329, 8
      %s331 = scalar_lea.vmem %s2, %s330
      %p332 = pneg %p111
      %p333 = pneg %p108
      %s334 = smul.u32 16, %s23
      %p335 = scmp.lt.s32.totalorder %s22, 2
      %s336 = scalar_select %p335, %s22, 2
      %p337 = scmp.lt.s32.totalorder %s334, 15
      %s338 = scalar_select %p337, %s334, 15
      %s339 = smul.addr %s336, 16
      %s340 = sadd.s32 %s338, %s339
      %s341 = smul.addr %s340, 8
      %s342 = scalar_lea.vmem %s3, %s341
      %p343 = pneg %p139
      %p344 = pneg %p136
      %s345 = sadd.s32 %s22, %s24
      %s346 = smul.u32 16, %s345
      %p347 = scmp.lt.s32.totalorder %s346, 47
      %s348 = scalar_select %p347, %s346, 47
      %s349 = smul.addr %s348, 8
      %s350 = scalar_lea.vmem %s4, %s349
      %p351 = pneg %p167
      %p352 = pneg %p164
      %s353 = sadd.s32 %s22, %s23
      %p354 = scmp.lt.s32.totalorder %s353, 2
      %s355 = scalar_select %p354, %s353, 2
      %s356 = scalar_lea.vmem %s5, %s355
      %p357 = pneg %p195
      %p358 = pneg %p192
      %p359 = pneg %p225
      %p360 = pneg %p222
      %s361 = sadd.s32 %s22, %s24
      %s362 = smul.u32 16, %s361
      %p363 = scmp.lt.s32.totalorder %s362, 47
      %s364 = scalar_select %p363, %s362, 47
      %p365 = scmp.lt.s32.totalorder %s23, 0
      %s366 = scalar_select %p365, %s23, 0
      %s367 = sadd.s32 %s366, %s364
      %s368 = smul.addr %s367, 4
      %s369 = scalar_lea.vmem %s6, %s368
      %s370 = smul.u32 16, %s24
      %p371 = scmp.lt.s32.totalorder %s370, 15
      %s372 = scalar_select %p371, %s370, 15
      %s373 = smul.addr %s372, 8
      %s374 = scalar_lea.vmem %s0, %s373
      %s375 = smul.u32 16, %s24
      %p376 = scmp.lt.s32.totalorder %s23, 0
      %s377 = scalar_select %p376, %s23, 0
      %s378 = scalar_lea.vmem %s1, %s377
      %s379 = smul.u32 16, %s24
      %p380 = scmp.lt.s32.totalorder %s22, 2
      %s381 = scalar_select %p380, %s22, 2
      %p382 = scmp.lt.s32.totalorder %s379, 15
      %s383 = scalar_select %p382, %s379, 15
      %s384 = smul.addr %s381, 16
      %s385 = sadd.s32 %s383, %s384
      %s386 = smul.addr %s385, 8
      %s387 = scalar_lea.vmem %s2, %s386
      %s388 = smul.u32 16, %s24
      %s389 = smul.u32 16, %s23
      %p390 = scmp.lt.s32.totalorder %s22, 2
      %s391 = scalar_select %p390, %s22, 2
      %p392 = scmp.lt.s32.totalorder %s389, 15
      %s393 = scalar_select %p392, %s389, 15
      %s394 = smul.addr %s391, 16
      %s395 = sadd.s32 %s393, %s394
      %s396 = smul.addr %s395, 8
      %s397 = scalar_lea.vmem %s3, %s396
      %s398 = smul.u32 16, %s23
      %s399 = sadd.s32 %s22, %s24
      %s400 = smul.u32 16, %s399
      %p401 = scmp.lt.s32.totalorder %s400, 47
      %s402 = scalar_select %p401, %s400, 47
      %s403 = smul.addr %s402, 8
      %s404 = scalar_lea.vmem %s4, %s403
      %s405 = sadd.s32 %s22, %s24
      %s406 = smul.u32 16, %s405
      %s407 = sadd.s32 %s22, %s23
      %p408 = scmp.lt.s32.totalorder %s407, 2
      %s409 = scalar_select %p408, %s407, 2
      %s410 = scalar_lea.vmem %s5, %s409
      %s411 = sadd.s32 %s22, %s23
      %s412 = sadd.s32 %s22, %s24
      %s413 = smul.u32 16, %s412
      %p414 = scmp.lt.s32.totalorder %s413, 47
      %s415 = scalar_select %p414, %s413, 47
      %p416 = scmp.lt.s32.totalorder %s23, 0
      %s417 = scalar_select %p416, %s23, 0
      %s418 = sadd.s32 %s417, %s415
      %s419 = smul.addr %s418, 4
      %s420 = scalar_lea.vmem %s6, %s419
      %s421 = sadd.s32 %s22, %s24
      %s422 = smul.u32 16, %s421
      %v423 = vld [vmem:[%s374] sm:$0xff]
      %v424 = vld [vmem:[%s374 + $0x8] sm:$0xff]
      %v425 = vld [vmem:[%s374 + $0x10] sm:$0xff]
      %v426 = vld [vmem:[%s374 + $0x18] sm:$0xff]
      %v427 = vld [vmem:[%s374 + $0x20] sm:$0xff]
      %v428 = vld [vmem:[%s374 + $0x28] sm:$0xff]
      %v429 = vld [vmem:[%s374 + $0x30] sm:$0xff]
      %v430 = vld [vmem:[%s374 + $0x38] sm:$0xff]
      %v431 = vld [vmem:[%s374 + $0x40] sm:$0xff]
      %v432 = vld [vmem:[%s374 + $0x48] sm:$0xff]
      %v433 = vld [vmem:[%s374 + $0x50] sm:$0xff]
      %v434 = vld [vmem:[%s374 + $0x58] sm:$0xff]
      %v435 = vld [vmem:[%s374 + $0x60] sm:$0xff]
      %v436 = vld [vmem:[%s374 + $0x68] sm:$0xff]
      %v437 = vld [vmem:[%s374 + $0x70] sm:$0xff]
      %v438 = vld [vmem:[%s374 + $0x78] sm:$0xff]
      %v439 = vld [vmem:[%s378] sm:$0x1]
      %v440 = vld [vmem:[%s387] sm:$0xff]
      %v441 = vld [vmem:[%s387 + $0x8] sm:$0xff]
      %v442 = vld [vmem:[%s387 + $0x10] sm:$0xff]
      %v443 = vld [vmem:[%s387 + $0x18] sm:$0xff]
      %v444 = vld [vmem:[%s387 + $0x20] sm:$0xff]
      %v445 = vld [vmem:[%s387 + $0x28] sm:$0xff]
      %v446 = vld [vmem:[%s387 + $0x30] sm:$0xff]
      %v447 = vld [vmem:[%s387 + $0x38] sm:$0xff]
      %v448 = vld [vmem:[%s387 + $0x40] sm:$0xff]
      %v449 = vld [vmem:[%s387 + $0x48] sm:$0xff]
      %v450 = vld [vmem:[%s387 + $0x50] sm:$0xff]
      %v451 = vld [vmem:[%s387 + $0x58] sm:$0xff]
      %v452 = vld [vmem:[%s387 + $0x60] sm:$0xff]
      %v453 = vld [vmem:[%s387 + $0x68] sm:$0xff]
      %v454 = vld [vmem:[%s387 + $0x70] sm:$0xff]
      %v455 = vld [vmem:[%s387 + $0x78] sm:$0xff]
      %v456 = vld [vmem:[%s397] sm:$0xff]
      %v457 = vld [vmem:[%s397 + $0x8] sm:$0xff]
      %v458 = vld [vmem:[%s397 + $0x10] sm:$0xff]
      %v459 = vld [vmem:[%s397 + $0x18] sm:$0xff]
      %v460 = vld [vmem:[%s397 + $0x20] sm:$0xff]
      %v461 = vld [vmem:[%s397 + $0x28] sm:$0xff]
      %v462 = vld [vmem:[%s397 + $0x30] sm:$0xff]
      %v463 = vld [vmem:[%s397 + $0x38] sm:$0xff]
      %v464 = vld [vmem:[%s397 + $0x40] sm:$0xff]
      %v465 = vld [vmem:[%s397 + $0x48] sm:$0xff]
      %v466 = vld [vmem:[%s397 + $0x50] sm:$0xff]
      %v467 = vld [vmem:[%s397 + $0x58] sm:$0xff]
      %v468 = vld [vmem:[%s397 + $0x60] sm:$0xff]
      %v469 = vld [vmem:[%s397 + $0x68] sm:$0xff]
      %v470 = vld [vmem:[%s397 + $0x70] sm:$0xff]
      %v471 = vld [vmem:[%s397 + $0x78] sm:$0xff]
      %vm472 = vcmask 261120
      %v474 = vsel %vm472, %v440, 0
      %v477 = vsel %vm472, %v441, 0
      %v480 = vsel %vm472, %v442, 0
      %v483 = vsel %vm472, %v443, 0
      %v486 = vsel %vm472, %v444, 0
      %v489 = vsel %vm472, %v445, 0
      %v492 = vsel %vm472, %v446, 0
      %v495 = vsel %vm472, %v447, 0
      %v498 = vsel %vm472, %v448, 0
      %v501 = vsel %vm472, %v449, 0
      %v504 = vsel %vm472, %v450, 0
      %v507 = vsel %vm472, %v451, 0
      %v510 = vsel %vm472, %v452, 0
      %v513 = vsel %vm472, %v453, 0
      %v516 = vsel %vm472, %v454, 0
      %v519 = vsel %vm472, %v455, 0
      %v522 = vsel %vm472, %v456, 0
      %v525 = vsel %vm472, %v457, 0
      %v528 = vsel %vm472, %v458, 0
      %v531 = vsel %vm472, %v459, 0
      %v534 = vsel %vm472, %v460, 0
      %v537 = vsel %vm472, %v461, 0
      %v540 = vsel %vm472, %v462, 0
      %v543 = vsel %vm472, %v463, 0
      %v546 = vsel %vm472, %v464, 0
      %v549 = vsel %vm472, %v465, 0
      %v552 = vsel %vm472, %v466, 0
      %v555 = vsel %vm472, %v467, 0
      %v558 = vsel %vm472, %v468, 0
      %v561 = vsel %vm472, %v469, 0
      %v564 = vsel %vm472, %v470, 0
      %v567 = vsel %vm472, %v471, 0
      %569 = vmatprep.subr.mxu0 0.0
      %570 = vmatpush1.xpose.msra.mxu0 %v522
      %571 = vmatprep.subr.mxu0 0.0
      %572 = vmatpush1.xpose.msra.mxu0 %v525
      %573 = vmatprep.subr.mxu0 0.0
      %574 = vmatpush1.xpose.msra.mxu0 %v528
      %575 = vmatprep.subr.mxu0 0.0
      %576 = vmatpush1.xpose.msra.mxu0 %v531
      %577 = vmatprep.subr.mxu0 0.0
      %578 = vmatpush1.xpose.msra.mxu0 %v534
      %579 = vmatprep.subr.mxu0 0.0
      %580 = vmatpush1.xpose.msra.mxu0 %v537
      %581 = vmatprep.subr.mxu0 0.0
      %582 = vmatpush1.xpose.msra.mxu0 %v540
      %583 = vmatprep.subr.mxu0 0.0
      %584 = vmatpush1.xpose.msra.mxu0 %v543
      %585 = vmatprep.subr.mxu0 0.0
      %586 = vmatpush1.xpose.msra.mxu0 %v546
      %587 = vmatprep.subr.mxu0 0.0
      %588 = vmatpush1.xpose.msra.mxu0 %v549
      %589 = vmatprep.subr.mxu0 0.0
      %590 = vmatpush1.xpose.msra.mxu0 %v552
      %591 = vmatprep.subr.mxu0 0.0
      %592 = vmatpush1.xpose.msra.mxu0 %v555
      %593 = vmatprep.subr.mxu0 0.0
      %594 = vmatpush1.xpose.msra.mxu0 %v558
      %595 = vmatprep.subr.mxu0 0.0
      %596 = vmatpush1.xpose.msra.mxu0 %v561
      %597 = vmatprep.subr.mxu0 0.0
      %598 = vmatpush1.xpose.msra.mxu0 %v564
      %599 = vmatprep.subr.mxu0 0.0
      %600 = vmatpush1.xpose.msra.mxu0 %v567
      %601 = vmatprep.subr.mxu0 0.0
      %602 = vmatpush1.xpose.msra.mxu0 0.0
      %603 = vmatprep.subr.mxu0 0.0
      %604 = vmatpush1.xpose.msra.mxu0 0.0
      %605 = vmatprep.subr.mxu0 0.0
      %606 = vmatpush1.xpose.msra.mxu0 0.0
      %607 = vmatprep.subr.mxu0 0.0
      %608 = vmatpush1.xpose.msra.mxu0 0.0
      %609 = vmatprep.subr.mxu0 0.0
      %610 = vmatpush1.xpose.msra.mxu0 0.0
      %611 = vmatprep.subr.mxu0 0.0
      %612 = vmatpush1.xpose.msra.mxu0 0.0
      %613 = vmatprep.subr.mxu0 0.0
      %614 = vmatpush1.xpose.msra.mxu0 0.0
      %615 = vmatprep.subr.mxu0 0.0
      %616 = vmatpush1.xpose.msra.mxu0 0.0
      %617 = vmatprep.subr.mxu0 0.0
      %618 = vmatpush1.xpose.msra.mxu0 0.0
      %619 = vmatprep.subr.mxu0 0.0
      %620 = vmatpush1.xpose.msra.mxu0 0.0
      %621 = vmatprep.subr.mxu0 0.0
      %622 = vmatpush1.xpose.msra.mxu0 0.0
      %623 = vmatprep.subr.mxu0 0.0
      %624 = vmatpush1.xpose.msra.mxu0 0.0
      %625 = vmatprep.subr.mxu0 0.0
      %626 = vmatpush1.xpose.msra.mxu0 0.0
      %627 = vmatprep.subr.mxu0 0.0
      %628 = vmatpush1.xpose.msra.mxu0 0.0
      %629 = vmatprep.subr.mxu0 0.0
      %630 = vmatpush1.xpose.msra.mxu0 0.0
      %631 = vmatprep.subr.mxu0 0.0
      %632 = vmatpush1.xpose.msra.mxu0 0.0
      %633 = vmatprep.mubr.f32.mxu0 0.0
      %634 = vmatmul.mubr.f32.gmra.mrb[0].mxu0 %v474
      %v635 = vpop.f32.mrb[0].mxu0
      %v636 = vadd.f32 0.0, %v635
      %v637 = vpop.f32.mrb[0].mxu0
      %638 = vmatprep.mubr.f32.mxu0 0.0
      %639 = vmatmul.mubr.f32.gmra.mrb[0].mxu0 %v477
      %v640 = vpop.f32.mrb[0].mxu0
      %v641 = vadd.f32 0.0, %v640
      %v642 = vpop.f32.mrb[0].mxu0
      %643 = vmatprep.mubr.f32.mxu0 0.0
      %644 = vmatmul.mubr.f32.gmra.mrb[0].mxu0 %v480
      %v645 = vpop.f32.mrb[0].mxu0
      %v646 = vadd.f32 0.0, %v645
      %v647 = vpop.f32.mrb[0].mxu0
      %648 = vmatprep.mubr.f32.mxu0 0.0
      %649 = vmatmul.mubr.f32.gmra.mrb[0].mxu0 %v483
      %v650 = vpop.f32.mrb[0].mxu0
      %v651 = vadd.f32 0.0, %v650
      %v652 = vpop.f32.mrb[0].mxu0
      %653 = vmatprep.mubr.f32.mxu0 0.0
      %654 = vmatmul.mubr.f32.gmra.mrb[0].mxu0 %v486
      %v655 = vpop.f32.mrb[0].mxu0
      %v656 = vadd.f32 0.0, %v655
      %v657 = vpop.f32.mrb[0].mxu0
      %658 = vmatprep.mubr.f32.mxu0 0.0
      %659 = vmatmul.mubr.f32.gmra.mrb[0].mxu0 %v489
      %v660 = vpop.f32.mrb[0].mxu0
      %v661 = vadd.f32 0.0, %v660
      %v662 = vpop.f32.mrb[0].mxu0
      %663 = vmatprep.mubr.f32.mxu0 0.0
      %664 = vmatmul.mubr.f32.gmra.mrb[0].mxu0 %v492
      %v665 = vpop.f32.mrb[0].mxu0
      %v666 = vadd.f32 0.0, %v665
      %v667 = vpop.f32.mrb[0].mxu0
      %668 = vmatprep.mubr.f32.mxu0 0.0
      %669 = vmatmul.mubr.f32.gmra.mrb[0].mxu0 %v495
      %v670 = vpop.f32.mrb[0].mxu0
      %v671 = vadd.f32 0.0, %v670
      %v672 = vpop.f32.mrb[0].mxu0
      %673 = vmatprep.mubr.f32.mxu0 0.0
      %674 = vmatmul.mubr.f32.gmra.mrb[0].mxu0 %v498
      %v675 = vpop.f32.mrb[0].mxu0
      %v676 = vadd.f32 0.0, %v675
      %v677 = vpop.f32.mrb[0].mxu0
      %678 = vmatprep.mubr.f32.mxu0 0.0
      %679 = vmatmul.mubr.f32.gmra.mrb[0].mxu0 %v501
      %v680 = vpop.f32.mrb[0].mxu0
      %v681 = vadd.f32 0.0, %v680
      %v682 = vpop.f32.mrb[0].mxu0
      %683 = vmatprep.mubr.f32.mxu0 0.0
      %684 = vmatmul.mubr.f32.gmra.mrb[0].mxu0 %v504
      %v685 = vpop.f32.mrb[0].mxu0
      %v686 = vadd.f32 0.0, %v685
      %v687 = vpop.f32.mrb[0].mxu0
      %688 = vmatprep.mubr.f32.mxu0 0.0
      %689 = vmatmul.mubr.f32.gmra.mrb[0].mxu0 %v507
      %v690 = vpop.f32.mrb[0].mxu0
      %v691 = vadd.f32 0.0, %v690
      %v692 = vpop.f32.mrb[0].mxu0
      %693 = vmatprep.mubr.f32.mxu0 0.0
      %694 = vmatmul.mubr.f32.gmra.mrb[0].mxu0 %v510
      %v695 = vpop.f32.mrb[0].mxu0
      %v696 = vadd.f32 0.0, %v695
      %v697 = vpop.f32.mrb[0].mxu0
      %698 = vmatprep.mubr.f32.mxu0 0.0
      %699 = vmatmul.mubr.f32.gmra.mrb[0].mxu0 %v513
      %v700 = vpop.f32.mrb[0].mxu0
      %v701 = vadd.f32 0.0, %v700
      %v702 = vpop.f32.mrb[0].mxu0
      %703 = vmatprep.mubr.f32.mxu0 0.0
      %704 = vmatmul.mubr.f32.gmra.mrb[0].mxu0 %v516
      %v705 = vpop.f32.mrb[0].mxu0
      %v706 = vadd.f32 0.0, %v705
      %v707 = vpop.f32.mrb[0].mxu0
      %708 = vmatprep.mubr.f32.mxu0 0.0
      %709 = vmatmul.mubr.f32.gmra.mrb[0].mxu0 %v519
      %v710 = vpop.f32.mrb[0].mxu0
      %v711 = vadd.f32 0.0, %v710
      %v712 = vpop.f32.mrb[0].mxu0
      %713 = vdwg.mxu0
      %v714 = vmul.f32 %v636, 0.99999
      %v715 = vmul.f32 %v641, 0.99999
      %v716 = vmul.f32 %v646, 0.99999
      %v717 = vmul.f32 %v651, 0.99999
      %v718 = vmul.f32 %v656, 0.99999
      %v719 = vmul.f32 %v661, 0.99999
      %v720 = vmul.f32 %v666, 0.99999
      %v721 = vmul.f32 %v671, 0.99999
      %v722 = vmul.f32 %v676, 0.99999
      %v723 = vmul.f32 %v681, 0.99999
      %v724 = vmul.f32 %v686, 0.99999
      %v725 = vmul.f32 %v691, 0.99999
      %v726 = vmul.f32 %v696, 0.99999
      %v727 = vmul.f32 %v701, 0.99999
      %v728 = vmul.f32 %v706, 0.99999
      %v729 = vmul.f32 %v711, 0.99999
      %730 = vset.pattern.permute.xlu0 0
      %731 = vperm.xlu0 %730, %v423
      %v732 = vpop.permute.xlu0 %731
      %733 = vset.pattern.permute.xlu0 0
      %734 = vperm.xlu0 %733, %v424
      %v735 = vpop.permute.xlu0 %734
      %736 = vset.pattern.permute.xlu0 0
      %737 = vperm.xlu0 %736, %v425
      %v738 = vpop.permute.xlu0 %737
      %739 = vset.pattern.permute.xlu0 0
      %740 = vperm.xlu0 %739, %v426
      %v741 = vpop.permute.xlu0 %740
      %742 = vset.pattern.permute.xlu0 0
      %743 = vperm.xlu0 %742, %v427
      %v744 = vpop.permute.xlu0 %743
      %745 = vset.pattern.permute.xlu0 0
      %746 = vperm.xlu0 %745, %v428
      %v747 = vpop.permute.xlu0 %746
      %748 = vset.pattern.permute.xlu0 0
      %749 = vperm.xlu0 %748, %v429
      %v750 = vpop.permute.xlu0 %749
      %751 = vset.pattern.permute.xlu0 0
      %752 = vperm.xlu0 %751, %v430
      %v753 = vpop.permute.xlu0 %752
      %754 = vset.pattern.permute.xlu0 0
      %755 = vperm.xlu0 %754, %v431
      %v756 = vpop.permute.xlu0 %755
      %757 = vset.pattern.permute.xlu0 0
      %758 = vperm.xlu0 %757, %v432
      %v759 = vpop.permute.xlu0 %758
      %760 = vset.pattern.permute.xlu0 0
      %761 = vperm.xlu0 %760, %v433
      %v762 = vpop.permute.xlu0 %761
      %763 = vset.pattern.permute.xlu0 0
      %764 = vperm.xlu0 %763, %v434
      %v765 = vpop.permute.xlu0 %764
      %766 = vset.pattern.permute.xlu0 0
      %767 = vperm.xlu0 %766, %v435
      %v768 = vpop.permute.xlu0 %767
      %769 = vset.pattern.permute.xlu0 0
      %770 = vperm.xlu0 %769, %v436
      %v771 = vpop.permute.xlu0 %770
      %772 = vset.pattern.permute.xlu0 0
      %773 = vperm.xlu0 %772, %v437
      %v774 = vpop.permute.xlu0 %773
      %775 = vset.pattern.permute.xlu0 0
      %776 = vperm.xlu0 %775, %v438
      %v777 = vpop.permute.xlu0 %776
      %v778 = vlaneseq
      %v779 = vshrl.u32 %v778, 7
      %v780 = vsub.s32 0, %v779
      %v781 = vrot.slane %v439, %v780
      %vm782 = vcmp.eq.s32.totalorder %v732, %v781
      %vm783 = vcmp.eq.s32.totalorder %v735, %v781
      %vm784 = vcmp.eq.s32.totalorder %v738, %v781
      %vm785 = vcmp.eq.s32.totalorder %v741, %v781
      %vm786 = vcmp.eq.s32.totalorder %v744, %v781
      %vm787 = vcmp.eq.s32.totalorder %v747, %v781
      %vm788 = vcmp.eq.s32.totalorder %v750, %v781
      %vm789 = vcmp.eq.s32.totalorder %v753, %v781
      %vm790 = vcmp.eq.s32.totalorder %v756, %v781
      %vm791 = vcmp.eq.s32.totalorder %v759, %v781
      %vm792 = vcmp.eq.s32.totalorder %v762, %v781
      %vm793 = vcmp.eq.s32.totalorder %v765, %v781
      %vm794 = vcmp.eq.s32.totalorder %v768, %v781
      %vm795 = vcmp.eq.s32.totalorder %v771, %v781
      %vm796 = vcmp.eq.s32.totalorder %v774, %v781
      %vm797 = vcmp.eq.s32.totalorder %v777, %v781
      %vm798 = vcmp.ge.s32.totalorder %v423, 0
      %vm799 = vcmp.ge.s32.totalorder %v424, 0
      %vm800 = vcmp.ge.s32.totalorder %v425, 0
      %vm801 = vcmp.ge.s32.totalorder %v426, 0
      %vm802 = vcmp.ge.s32.totalorder %v427, 0
      %vm803 = vcmp.ge.s32.totalorder %v428, 0
      %vm804 = vcmp.ge.s32.totalorder %v429, 0
      %vm805 = vcmp.ge.s32.totalorder %v430, 0
      %vm806 = vcmp.ge.s32.totalorder %v431, 0
      %vm807 = vcmp.ge.s32.totalorder %v432, 0
      %vm808 = vcmp.ge.s32.totalorder %v433, 0
      %vm809 = vcmp.ge.s32.totalorder %v434, 0
      %vm810 = vcmp.ge.s32.totalorder %v435, 0
      %vm811 = vcmp.ge.s32.totalorder %v436, 0
      %vm812 = vcmp.ge.s32.totalorder %v437, 0
      %vm813 = vcmp.ge.s32.totalorder %v438, 0
      %v814 = vsel %vm798, 1, 0
      %v815 = vsel %vm799, 1, 0
      %v816 = vsel %vm800, 1, 0
      %v817 = vsel %vm801, 1, 0
      %v818 = vsel %vm802, 1, 0
      %v819 = vsel %vm803, 1, 0
      %v820 = vsel %vm804, 1, 0
      %v821 = vsel %vm805, 1, 0
      %v822 = vsel %vm806, 1, 0
      %v823 = vsel %vm807, 1, 0
      %v824 = vsel %vm808, 1, 0
      %v825 = vsel %vm809, 1, 0
      %v826 = vsel %vm810, 1, 0
      %v827 = vsel %vm811, 1, 0
      %v828 = vsel %vm812, 1, 0
      %v829 = vsel %vm813, 1, 0
      %830 = vset.pattern.permute.xlu0 0
      %831 = vperm.xlu0 %830, %v814
      %v832 = vpop.permute.xlu0 %831
      %833 = vset.pattern.permute.xlu0 0
      %834 = vperm.xlu0 %833, %v815
      %v835 = vpop.permute.xlu0 %834
      %836 = vset.pattern.permute.xlu0 0
      %837 = vperm.xlu0 %836, %v816
      %v838 = vpop.permute.xlu0 %837
      %839 = vset.pattern.permute.xlu0 0
      %840 = vperm.xlu0 %839, %v817
      %v841 = vpop.permute.xlu0 %840
      %842 = vset.pattern.permute.xlu0 0
      %843 = vperm.xlu0 %842, %v818
      %v844 = vpop.permute.xlu0 %843
      %845 = vset.pattern.permute.xlu0 0
      %846 = vperm.xlu0 %845, %v819
      %v847 = vpop.permute.xlu0 %846
      %848 = vset.pattern.permute.xlu0 0
      %849 = vperm.xlu0 %848, %v820
      %v850 = vpop.permute.xlu0 %849
      %851 = vset.pattern.permute.xlu0 0
      %852 = vperm.xlu0 %851, %v821
      %v853 = vpop.permute.xlu0 %852
      %854 = vset.pattern.permute.xlu0 0
      %855 = vperm.xlu0 %854, %v822
      %v856 = vpop.permute.xlu0 %855
      %857 = vset.pattern.permute.xlu0 0
      %858 = vperm.xlu0 %857, %v823
      %v859 = vpop.permute.xlu0 %858
      %860 = vset.pattern.permute.xlu0 0
      %861 = vperm.xlu0 %860, %v824
      %v862 = vpop.permute.xlu0 %861
      %863 = vset.pattern.permute.xlu0 0
      %864 = vperm.xlu0 %863, %v825
      %v865 = vpop.permute.xlu0 %864
      %866 = vset.pattern.permute.xlu0 0
      %867 = vperm.xlu0 %866, %v826
      %v868 = vpop.permute.xlu0 %867
      %869 = vset.pattern.permute.xlu0 0
      %870 = vperm.xlu0 %869, %v827
      %v871 = vpop.permute.xlu0 %870
      %872 = vset.pattern.permute.xlu0 0
      %873 = vperm.xlu0 %872, %v828
      %v874 = vpop.permute.xlu0 %873
      %875 = vset.pattern.permute.xlu0 0
      %876 = vperm.xlu0 %875, %v829
      %v877 = vpop.permute.xlu0 %876
      %vm878 = vcmp.eq.s32.totalorder %v832, 1
      %vm879 = vcmp.eq.s32.totalorder %v835, 1
      %vm880 = vcmp.eq.s32.totalorder %v838, 1
      %vm881 = vcmp.eq.s32.totalorder %v841, 1
      %vm882 = vcmp.eq.s32.totalorder %v844, 1
      %vm883 = vcmp.eq.s32.totalorder %v847, 1
      %vm884 = vcmp.eq.s32.totalorder %v850, 1
      %vm885 = vcmp.eq.s32.totalorder %v853, 1
      %vm886 = vcmp.eq.s32.totalorder %v856, 1
      %vm887 = vcmp.eq.s32.totalorder %v859, 1
      %vm888 = vcmp.eq.s32.totalorder %v862, 1
      %vm889 = vcmp.eq.s32.totalorder %v865, 1
      %vm890 = vcmp.eq.s32.totalorder %v868, 1
      %vm891 = vcmp.eq.s32.totalorder %v871, 1
      %vm892 = vcmp.eq.s32.totalorder %v874, 1
      %vm893 = vcmp.eq.s32.totalorder %v877, 1
      %vm894 = vmand %vm782, %vm878
      %vm895 = vmand %vm783, %vm879
      %vm896 = vmand %vm784, %vm880
      %vm897 = vmand %vm785, %vm881
      %vm898 = vmand %vm786, %vm882
      %vm899 = vmand %vm787, %vm883
      %vm900 = vmand %vm788, %vm884
      %vm901 = vmand %vm789, %vm885
      %vm902 = vmand %vm790, %vm886
      %vm903 = vmand %vm791, %vm887
      %vm904 = vmand %vm792, %vm888
      %vm905 = vmand %vm793, %vm889
      %vm906 = vmand %vm794, %vm890
      %vm907 = vmand %vm795, %vm891
      %vm908 = vmand %vm796, %vm892
      %vm909 = vmand %vm797, %vm893
      %v910 = vand.u32 2147483647, %v714
      %v911 = vand.u32 2147483647, %v715
      %v912 = vand.u32 2147483647, %v716
      %v913 = vand.u32 2147483647, %v717
      %v914 = vand.u32 2147483647, %v718
      %v915 = vand.u32 2147483647, %v719
      %v916 = vand.u32 2147483647, %v720
      %v917 = vand.u32 2147483647, %v721
      %v918 = vand.u32 2147483647, %v722
      %v919 = vand.u32 2147483647, %v723
      %v920 = vand.u32 2147483647, %v724
      %v921 = vand.u32 2147483647, %v725
      %v922 = vand.u32 2147483647, %v726
      %v923 = vand.u32 2147483647, %v727
      %v924 = vand.u32 2147483647, %v728
      %v925 = vand.u32 2147483647, %v729
      %v926 = vmul.f32 %v910, -0.0012624911
      %v927 = vmul.f32 %v911, -0.0012624911
      %v928 = vmul.f32 %v912, -0.0012624911
      %v929 = vmul.f32 %v913, -0.0012624911
      %v930 = vmul.f32 %v914, -0.0012624911
      %v931 = vmul.f32 %v915, -0.0012624911
      %v932 = vmul.f32 %v916, -0.0012624911
      %v933 = vmul.f32 %v917, -0.0012624911
      %v934 = vmul.f32 %v918, -0.0012624911
      %v935 = vmul.f32 %v919, -0.0012624911
      %v936 = vmul.f32 %v920, -0.0012624911
      %v937 = vmul.f32 %v921, -0.0012624911
      %v938 = vmul.f32 %v922, -0.0012624911
      %v939 = vmul.f32 %v923, -0.0012624911
      %v940 = vmul.f32 %v924, -0.0012624911
      %v941 = vmul.f32 %v925, -0.0012624911
      %v942 = vadd.f32 %v926, 0.00667009
      %v943 = vadd.f32 %v927, 0.00667009
      %v944 = vadd.f32 %v928, 0.00667009
      %v945 = vadd.f32 %v929, 0.00667009
      %v946 = vadd.f32 %v930, 0.00667009
      %v947 = vadd.f32 %v931, 0.00667009
      %v948 = vadd.f32 %v932, 0.00667009
      %v949 = vadd.f32 %v933, 0.00667009
      %v950 = vadd.f32 %v934, 0.00667009
      %v951 = vadd.f32 %v935, 0.00667009
      %v952 = vadd.f32 %v936, 0.00667009
      %v953 = vadd.f32 %v937, 0.00667009
      %v954 = vadd.f32 %v938, 0.00667009
      %v955 = vadd.f32 %v939, 0.00667009
      %v956 = vadd.f32 %v940, 0.00667009
      %v957 = vadd.f32 %v941, 0.00667009
      %v958 = vmul.f32 %v942, %v910
      %v959 = vmul.f32 %v943, %v911
      %v960 = vmul.f32 %v944, %v912
      %v961 = vmul.f32 %v945, %v913
      %v962 = vmul.f32 %v946, %v914
      %v963 = vmul.f32 %v947, %v915
      %v964 = vmul.f32 %v948, %v916
      %v965 = vmul.f32 %v949, %v917
      %v966 = vmul.f32 %v950, %v918
      %v967 = vmul.f32 %v951, %v919
      %v968 = vmul.f32 %v952, %v920
      %v969 = vmul.f32 %v953, %v921
      %v970 = vmul.f32 %v954, %v922
      %v971 = vmul.f32 %v955, %v923
      %v972 = vmul.f32 %v956, %v924
      %v973 = vmul.f32 %v957, %v925
      %v974 = vsub.f32 %v958, 0.017088126
      %v975 = vsub.f32 %v959, 0.017088126
      %v976 = vsub.f32 %v960, 0.017088126
      %v977 = vsub.f32 %v961, 0.017088126
      %v978 = vsub.f32 %v962, 0.017088126
      %v979 = vsub.f32 %v963, 0.017088126
      %v980 = vsub.f32 %v964, 0.017088126
      %v981 = vsub.f32 %v965, 0.017088126
      %v982 = vsub.f32 %v966, 0.017088126
      %v983 = vsub.f32 %v967, 0.017088126
      %v984 = vsub.f32 %v968, 0.017088126
      %v985 = vsub.f32 %v969, 0.017088126
      %v986 = vsub.f32 %v970, 0.017088126
      %v987 = vsub.f32 %v971, 0.017088126
      %v988 = vsub.f32 %v972, 0.017088126
      %v989 = vsub.f32 %v973, 0.017088126
      %v990 = vmul.f32 %v974, %v910
      %v991 = vmul.f32 %v975, %v911
      %v992 = vmul.f32 %v976, %v912
      %v993 = vmul.f32 %v977, %v913
      %v994 = vmul.f32 %v978, %v914
      %v995 = vmul.f32 %v979, %v915
      %v996 = vmul.f32 %v980, %v916
      %v997 = vmul.f32 %v981, %v917
      %v998 = vmul.f32 %v982, %v918
      %v999 = vmul.f32 %v983, %v919
      %v1000 = vmul.f32 %v984, %v920
      %v1001 = vmul.f32 %v985, %v921
      %v1002 = vmul.f32 %v986, %v922
      %v1003 = vmul.f32 %v987, %v923
      %v1004 = vmul.f32 %v988, %v924
      %v1005 = vmul.f32 %v989, %v925
      %v1006 = vadd.f32 %v990, 0.03089188
      %v1007 = vadd.f32 %v991, 0.03089188
      %v1008 = vadd.f32 %v992, 0.03089188
      %v1009 = vadd.f32 %v993, 0.03089188
      %v1010 = vadd.f32 %v994, 0.03089188
      %v1011 = vadd.f32 %v995, 0.03089188
      %v1012 = vadd.f32 %v996, 0.03089188
      %v1013 = vadd.f32 %v997, 0.03089188
      %v1014 = vadd.f32 %v998, 0.03089188
      %v1015 = vadd.f32 %v999, 0.03089188
      %v1016 = vadd.f32 %v1000, 0.03089188
      %v1017 = vadd.f32 %v1001, 0.03089188
      %v1018 = vadd.f32 %v1002, 0.03089188
      %v1019 = vadd.f32 %v1003, 0.03089188
      %v1020 = vadd.f32 %v1004, 0.03089188
      %v1021 = vadd.f32 %v1005, 0.03089188
      %v1022 = vmul.f32 %v1006, %v910
      %v1023 = vmul.f32 %v1007, %v911
      %v1024 = vmul.f32 %v1008, %v912
      %v1025 = vmul.f32 %v1009, %v913
      %v1026 = vmul.f32 %v1010, %v914
      %v1027 = vmul.f32 %v1011, %v915
      %v1028 = vmul.f32 %v1012, %v916
      %v1029 = vmul.f32 %v1013, %v917
      %v1030 = vmul.f32 %v1014, %v918
      %v1031 = vmul.f32 %v1015, %v919
      %v1032 = vmul.f32 %v1016, %v920
      %v1033 = vmul.f32 %v1017, %v921
      %v1034 = vmul.f32 %v1018, %v922
      %v1035 = vmul.f32 %v1019, %v923
      %v1036 = vmul.f32 %v1020, %v924
      %v1037 = vmul.f32 %v1021, %v925
      %v1038 = vsub.f32 %v1022, 0.050174303
      %v1039 = vsub.f32 %v1023, 0.050174303
      %v1040 = vsub.f32 %v1024, 0.050174303
      %v1041 = vsub.f32 %v1025, 0.050174303
      %v1042 = vsub.f32 %v1026, 0.050174303
      %v1043 = vsub.f32 %v1027, 0.050174303
      %v1044 = vsub.f32 %v1028, 0.050174303
      %v1045 = vsub.f32 %v1029, 0.050174303
      %v1046 = vsub.f32 %v1030, 0.050174303
      %v1047 = vsub.f32 %v1031, 0.050174303
      %v1048 = vsub.f32 %v1032, 0.050174303
      %v1049 = vsub.f32 %v1033, 0.050174303
      %v1050 = vsub.f32 %v1034, 0.050174303
      %v1051 = vsub.f32 %v1035, 0.050174303
      %v1052 = vsub.f32 %v1036, 0.050174303
      %v1053 = vsub.f32 %v1037, 0.050174303
      %v1054 = vmul.f32 %v1038, %v910
      %v1055 = vmul.f32 %v1039, %v911
      %v1056 = vmul.f32 %v1040, %v912
      %v1057 = vmul.f32 %v1041, %v913
      %v1058 = vmul.f32 %v1042, %v914
      %v1059 = vmul.f32 %v1043, %v915
      %v1060 = vmul.f32 %v1044, %v916
      %v1061 = vmul.f32 %v1045, %v917
      %v1062 = vmul.f32 %v1046, %v918
      %v1063 = vmul.f32 %v1047, %v919
      %v1064 = vmul.f32 %v1048, %v920
      %v1065 = vmul.f32 %v1049, %v921
      %v1066 = vmul.f32 %v1050, %v922
      %v1067 = vmul.f32 %v1051, %v923
      %v1068 = vmul.f32 %v1052, %v924
      %v1069 = vmul.f32 %v1053, %v925
      %v1070 = vadd.f32 %v1054, 0.08897899
      %v1071 = vadd.f32 %v1055, 0.08897899
      %v1072 = vadd.f32 %v1056, 0.08897899
      %v1073 = vadd.f32 %v1057, 0.08897899
      %v1074 = vadd.f32 %v1058, 0.08897899
      %v1075 = vadd.f32 %v1059, 0.08897899
      %v1076 = vadd.f32 %v1060, 0.08897899
      %v1077 = vadd.f32 %v1061, 0.08897899
      %v1078 = vadd.f32 %v1062, 0.08897899
      %v1079 = vadd.f32 %v1063, 0.08897899
      %v1080 = vadd.f32 %v1064, 0.08897899
      %v1081 = vadd.f32 %v1065, 0.08897899
      %v1082 = vadd.f32 %v1066, 0.08897899
      %v1083 = vadd.f32 %v1067, 0.08897899
      %v1084 = vadd.f32 %v1068, 0.08897899
      %v1085 = vadd.f32 %v1069, 0.08897899
      %v1086 = vmul.f32 %v1070, %v910
      %v1087 = vmul.f32 %v1071, %v911
      %v1088 = vmul.f32 %v1072, %v912
      %v1089 = vmul.f32 %v1073, %v913
      %v1090 = vmul.f32 %v1074, %v914
      %v1091 = vmul.f32 %v1075, %v915
      %v1092 = vmul.f32 %v1076, %v916
      %v1093 = vmul.f32 %v1077, %v917
      %v1094 = vmul.f32 %v1078, %v918
      %v1095 = vmul.f32 %v1079, %v919
      %v1096 = vmul.f32 %v1080, %v920
      %v1097 = vmul.f32 %v1081, %v921
      %v1098 = vmul.f32 %v1082, %v922
      %v1099 = vmul.f32 %v1083, %v923
      %v1100 = vmul.f32 %v1084, %v924
      %v1101 = vmul.f32 %v1085, %v925
      %v1102 = vsub.f32 %v1086, 0.2145988
      %v1103 = vsub.f32 %v1087, 0.2145988
      %v1104 = vsub.f32 %v1088, 0.2145988
      %v1105 = vsub.f32 %v1089, 0.2145988
      %v1106 = vsub.f32 %v1090, 0.2145988
      %v1107 = vsub.f32 %v1091, 0.2145988
      %v1108 = vsub.f32 %v1092, 0.2145988
      %v1109 = vsub.f32 %v1093, 0.2145988
      %v1110 = vsub.f32 %v1094, 0.2145988
      %v1111 = vsub.f32 %v1095, 0.2145988
      %v1112 = vsub.f32 %v1096, 0.2145988
      %v1113 = vsub.f32 %v1097, 0.2145988
      %v1114 = vsub.f32 %v1098, 0.2145988
      %v1115 = vsub.f32 %v1099, 0.2145988
      %v1116 = vsub.f32 %v1100, 0.2145988
      %v1117 = vsub.f32 %v1101, 0.2145988
      %v1118 = vmul.f32 %v1102, %v910
      %v1119 = vmul.f32 %v1103, %v911
      %v1120 = vmul.f32 %v1104, %v912
      %v1121 = vmul.f32 %v1105, %v913
      %v1122 = vmul.f32 %v1106, %v914
      %v1123 = vmul.f32 %v1107, %v915
      %v1124 = vmul.f32 %v1108, %v916
      %v1125 = vmul.f32 %v1109, %v917
      %v1126 = vmul.f32 %v1110, %v918
      %v1127 = vmul.f32 %v1111, %v919
      %v1128 = vmul.f32 %v1112, %v920
      %v1129 = vmul.f32 %v1113, %v921
      %v1130 = vmul.f32 %v1114, %v922
      %v1131 = vmul.f32 %v1115, %v923
      %v1132 = vmul.f32 %v1116, %v924
      %v1133 = vmul.f32 %v1117, %v925
      %v1134 = vadd.f32 %v1118, 1.5707963
      %v1135 = vadd.f32 %v1119, 1.5707963
      %v1136 = vadd.f32 %v1120, 1.5707963
      %v1137 = vadd.f32 %v1121, 1.5707963
      %v1138 = vadd.f32 %v1122, 1.5707963
      %v1139 = vadd.f32 %v1123, 1.5707963
      %v1140 = vadd.f32 %v1124, 1.5707963
      %v1141 = vadd.f32 %v1125, 1.5707963
      %v1142 = vadd.f32 %v1126, 1.5707963
      %v1143 = vadd.f32 %v1127, 1.5707963
      %v1144 = vadd.f32 %v1128, 1.5707963
      %v1145 = vadd.f32 %v1129, 1.5707963
      %v1146 = vadd.f32 %v1130, 1.5707963
      %v1147 = vadd.f32 %v1131, 1.5707963
      %v1148 = vadd.f32 %v1132, 1.5707963
      %v1149 = vadd.f32 %v1133, 1.5707963
      %v1150 = vsub.f32 1.0, %v910
      %v1151 = vsub.f32 1.0, %v911
      %v1152 = vsub.f32 1.0, %v912
      %v1153 = vsub.f32 1.0, %v913
      %v1154 = vsub.f32 1.0, %v914
      %v1155 = vsub.f32 1.0, %v915
      %v1156 = vsub.f32 1.0, %v916
      %v1157 = vsub.f32 1.0, %v917
      %v1158 = vsub.f32 1.0, %v918
      %v1159 = vsub.f32 1.0, %v919
      %v1160 = vsub.f32 1.0, %v920
      %v1161 = vsub.f32 1.0, %v921
      %v1162 = vsub.f32 1.0, %v922
      %v1163 = vsub.f32 1.0, %v923
      %v1164 = vsub.f32 1.0, %v924
      %v1165 = vsub.f32 1.0, %v925
      %v1166 = vmax.f32 %v1150, 0.0
      %v1167 = vmax.f32 %v1151, 0.0
      %v1168 = vmax.f32 %v1152, 0.0
      %v1169 = vmax.f32 %v1153, 0.0
      %v1170 = vmax.f32 %v1154, 0.0
      %v1171 = vmax.f32 %v1155, 0.0
      %v1172 = vmax.f32 %v1156, 0.0
      %v1173 = vmax.f32 %v1157, 0.0
      %v1174 = vmax.f32 %v1158, 0.0
      %v1175 = vmax.f32 %v1159, 0.0
      %v1176 = vmax.f32 %v1160, 0.0
      %v1177 = vmax.f32 %v1161, 0.0
      %v1178 = vmax.f32 %v1162, 0.0
      %v1179 = vmax.f32 %v1163, 0.0
      %v1180 = vmax.f32 %v1164, 0.0
      %v1181 = vmax.f32 %v1165, 0.0
      %v1182 = vrsqrt.pop %v1166
      %v1183 = vmul.f32 %v1166, %v1182
      %vm1184 = vcmp.eq.f32.partialorder %v1166, inf
      %v1185 = vsel %vm1184, %v1166, %v1183
      %vm1186 = vcmp.eq.f32.partialorder %v1166, 0.0
      %v1187 = vand.u32 %v1166, 2147483648
      %v1188 = vsel %vm1186, %v1187, %v1185
      %v1189 = vrsqrt.pop %v1167
      %v1190 = vmul.f32 %v1167, %v1189
      %vm1191 = vcmp.eq.f32.partialorder %v1167, inf
      %v1192 = vsel %vm1191, %v1167, %v1190
      %vm1193 = vcmp.eq.f32.partialorder %v1167, 0.0
      %v1194 = vand.u32 %v1167, 2147483648
      %v1195 = vsel %vm1193, %v1194, %v1192
      %v1196 = vrsqrt.pop %v1168
      %v1197 = vmul.f32 %v1168, %v1196
      %vm1198 = vcmp.eq.f32.partialorder %v1168, inf
      %v1199 = vsel %vm1198, %v1168, %v1197
      %vm1200 = vcmp.eq.f32.partialorder %v1168, 0.0
      %v1201 = vand.u32 %v1168, 2147483648
      %v1202 = vsel %vm1200, %v1201, %v1199
      %v1203 = vrsqrt.pop %v1169
      %v1204 = vmul.f32 %v1169, %v1203
      %vm1205 = vcmp.eq.f32.partialorder %v1169, inf
      %v1206 = vsel %vm1205, %v1169, %v1204
      %vm1207 = vcmp.eq.f32.partialorder %v1169, 0.0
      %v1208 = vand.u32 %v1169, 2147483648
      %v1209 = vsel %vm1207, %v1208, %v1206
      %v1210 = vrsqrt.pop %v1170
      %v1211 = vmul.f32 %v1170, %v1210
      %vm1212 = vcmp.eq.f32.partialorder %v1170, inf
      %v1213 = vsel %vm1212, %v1170, %v1211
      %vm1214 = vcmp.eq.f32.partialorder %v1170, 0.0
      %v1215 = vand.u32 %v1170, 2147483648
      %v1216 = vsel %vm1214, %v1215, %v1213
      %v1217 = vrsqrt.pop %v1171
      %v1218 = vmul.f32 %v1171, %v1217
      %vm1219 = vcmp.eq.f32.partialorder %v1171, inf
      %v1220 = vsel %vm1219, %v1171, %v1218
      %vm1221 = vcmp.eq.f32.partialorder %v1171, 0.0
      %v1222 = vand.u32 %v1171, 2147483648
      %v1223 = vsel %vm1221, %v1222, %v1220
      %v1224 = vrsqrt.pop %v1172
      %v1225 = vmul.f32 %v1172, %v1224
      %vm1226 = vcmp.eq.f32.partialorder %v1172, inf
      %v1227 = vsel %vm1226, %v1172, %v1225
      %vm1228 = vcmp.eq.f32.partialorder %v1172, 0.0
      %v1229 = vand.u32 %v1172, 2147483648
      %v1230 = vsel %vm1228, %v1229, %v1227
      %v1231 = vrsqrt.pop %v1173
      %v1232 = vmul.f32 %v1173, %v1231
      %vm1233 = vcmp.eq.f32.partialorder %v1173, inf
      %v1234 = vsel %vm1233, %v1173, %v1232
      %vm1235 = vcmp.eq.f32.partialorder %v1173, 0.0
      %v1236 = vand.u32 %v1173, 2147483648
      %v1237 = vsel %vm1235, %v1236, %v1234
      %v1238 = vrsqrt.pop %v1174
      %v1239 = vmul.f32 %v1174, %v1238
      %vm1240 = vcmp.eq.f32.partialorder %v1174, inf
      %v1241 = vsel %vm1240, %v1174, %v1239
      %vm1242 = vcmp.eq.f32.partialorder %v1174, 0.0
      %v1243 = vand.u32 %v1174, 2147483648
      %v1244 = vsel %vm1242, %v1243, %v1241
      %v1245 = vrsqrt.pop %v1175
      %v1246 = vmul.f32 %v1175, %v1245
      %vm1247 = vcmp.eq.f32.partialorder %v1175, inf
      %v1248 = vsel %vm1247, %v1175, %v1246
      %vm1249 = vcmp.eq.f32.partialorder %v1175, 0.0
      %v1250 = vand.u32 %v1175, 2147483648
      %v1251 = vsel %vm1249, %v1250, %v1248
      %v1252 = vrsqrt.pop %v1176
      %v1253 = vmul.f32 %v1176, %v1252
      %vm1254 = vcmp.eq.f32.partialorder %v1176, inf
      %v1255 = vsel %vm1254, %v1176, %v1253
      %vm1256 = vcmp.eq.f32.partialorder %v1176, 0.0
      %v1257 = vand.u32 %v1176, 2147483648
      %v1258 = vsel %vm1256, %v1257, %v1255
      %v1259 = vrsqrt.pop %v1177
      %v1260 = vmul.f32 %v1177, %v1259
      %vm1261 = vcmp.eq.f32.partialorder %v1177, inf
      %v1262 = vsel %vm1261, %v1177, %v1260
      %vm1263 = vcmp.eq.f32.partialorder %v1177, 0.0
      %v1264 = vand.u32 %v1177, 2147483648
      %v1265 = vsel %vm1263, %v1264, %v1262
      %v1266 = vrsqrt.pop %v1178
      %v1267 = vmul.f32 %v1178, %v1266
      %vm1268 = vcmp.eq.f32.partialorder %v1178, inf
      %v1269 = vsel %vm1268, %v1178, %v1267
      %vm1270 = vcmp.eq.f32.partialorder %v1178, 0.0
      %v1271 = vand.u32 %v1178, 2147483648
      %v1272 = vsel %vm1270, %v1271, %v1269
      %v1273 = vrsqrt.pop %v1179
      %v1274 = vmul.f32 %v1179, %v1273
      %vm1275 = vcmp.eq.f32.partialorder %v1179, inf
      %v1276 = vsel %vm1275, %v1179, %v1274
      %vm1277 = vcmp.eq.f32.partialorder %v1179, 0.0
      %v1278 = vand.u32 %v1179, 2147483648
      %v1279 = vsel %vm1277, %v1278, %v1276
      %v1280 = vrsqrt.pop %v1180
      %v1281 = vmul.f32 %v1180, %v1280
      %vm1282 = vcmp.eq.f32.partialorder %v1180, inf
      %v1283 = vsel %vm1282, %v1180, %v1281
      %vm1284 = vcmp.eq.f32.partialorder %v1180, 0.0
      %v1285 = vand.u32 %v1180, 2147483648
      %v1286 = vsel %vm1284, %v1285, %v1283
      %v1287 = vrsqrt.pop %v1181
      %v1288 = vmul.f32 %v1181, %v1287
      %vm1289 = vcmp.eq.f32.partialorder %v1181, inf
      %v1290 = vsel %vm1289, %v1181, %v1288
      %vm1291 = vcmp.eq.f32.partialorder %v1181, 0.0
      %v1292 = vand.u32 %v1181, 2147483648
      %v1293 = vsel %vm1291, %v1292, %v1290
      %v1294 = vmul.f32 %v1188, %v1134
      %v1295 = vmul.f32 %v1195, %v1135
      %v1296 = vmul.f32 %v1202, %v1136
      %v1297 = vmul.f32 %v1209, %v1137
      %v1298 = vmul.f32 %v1216, %v1138
      %v1299 = vmul.f32 %v1223, %v1139
      %v1300 = vmul.f32 %v1230, %v1140
      %v1301 = vmul.f32 %v1237, %v1141
      %v1302 = vmul.f32 %v1244, %v1142
      %v1303 = vmul.f32 %v1251, %v1143
      %v1304 = vmul.f32 %v1258, %v1144
      %v1305 = vmul.f32 %v1265, %v1145
      %v1306 = vmul.f32 %v1272, %v1146
      %v1307 = vmul.f32 %v1279, %v1147
      %v1308 = vmul.f32 %v1286, %v1148
      %v1309 = vmul.f32 %v1293, %v1149
      %vm1310 = vcmp.lt.f32.partialorder %v714, 0.0
      %vm1311 = vcmp.lt.f32.partialorder %v715, 0.0
      %vm1312 = vcmp.lt.f32.partialorder %v716, 0.0
      %vm1313 = vcmp.lt.f32.partialorder %v717, 0.0
      %vm1314 = vcmp.lt.f32.partialorder %v718, 0.0
      %vm1315 = vcmp.lt.f32.partialorder %v719, 0.0
      %vm1316 = vcmp.lt.f32.partialorder %v720, 0.0
      %vm1317 = vcmp.lt.f32.partialorder %v721, 0.0
      %vm1318 = vcmp.lt.f32.partialorder %v722, 0.0
      %vm1319 = vcmp.lt.f32.partialorder %v723, 0.0
      %vm1320 = vcmp.lt.f32.partialorder %v724, 0.0
      %vm1321 = vcmp.lt.f32.partialorder %v725, 0.0
      %vm1322 = vcmp.lt.f32.partialorder %v726, 0.0
      %vm1323 = vcmp.lt.f32.partialorder %v727, 0.0
      %vm1324 = vcmp.lt.f32.partialorder %v728, 0.0
      %vm1325 = vcmp.lt.f32.partialorder %v729, 0.0
      %v1326 = vsub.f32 3.1415927, %v1294
      %v1327 = vsub.f32 3.1415927, %v1295
      %v1328 = vsub.f32 3.1415927, %v1296
      %v1329 = vsub.f32 3.1415927, %v1297
      %v1330 = vsub.f32 3.1415927, %v1298
      %v1331 = vsub.f32 3.1415927, %v1299
      %v1332 = vsub.f32 3.1415927, %v1300
      %v1333 = vsub.f32 3.1415927, %v1301
      %v1334 = vsub.f32 3.1415927, %v1302
      %v1335 = vsub.f32 3.1415927, %v1303
      %v1336 = vsub.f32 3.1415927, %v1304
      %v1337 = vsub.f32 3.1415927, %v1305
      %v1338 = vsub.f32 3.1415927, %v1306
      %v1339 = vsub.f32 3.1415927, %v1307
      %v1340 = vsub.f32 3.1415927, %v1308
      %v1341 = vsub.f32 3.1415927, %v1309
      %v1342 = vsel %vm1310, %v1326, %v1294
      %v1343 = vsel %vm1311, %v1327, %v1295
      %v1344 = vsel %vm1312, %v1328, %v1296
      %v1345 = vsel %vm1313, %v1329, %v1297
      %v1346 = vsel %vm1314, %v1330, %v1298
      %v1347 = vsel %vm1315, %v1331, %v1299
      %v1348 = vsel %vm1316, %v1332, %v1300
      %v1349 = vsel %vm1317, %v1333, %v1301
      %v1350 = vsel %vm1318, %v1334, %v1302
      %v1351 = vsel %vm1319, %v1335, %v1303
      %v1352 = vsel %vm1320, %v1336, %v1304
      %v1353 = vsel %vm1321, %v1337, %v1305
      %v1354 = vsel %vm1322, %v1338, %v1306
      %v1355 = vsel %vm1323, %v1339, %v1307
      %v1356 = vsel %vm1324, %v1340, %v1308
      %v1357 = vsel %vm1325, %v1341, %v1309
      %v1358 = vmul.f32 %v1342, 0.31830987
      %v1359 = vmul.f32 %v1343, 0.31830987
      %v1360 = vmul.f32 %v1344, 0.31830987
      %v1361 = vmul.f32 %v1345, 0.31830987
      %v1362 = vmul.f32 %v1346, 0.31830987
      %v1363 = vmul.f32 %v1347, 0.31830987
      %v1364 = vmul.f32 %v1348, 0.31830987
      %v1365 = vmul.f32 %v1349, 0.31830987
      %v1366 = vmul.f32 %v1350, 0.31830987
      %v1367 = vmul.f32 %v1351, 0.31830987
      %v1368 = vmul.f32 %v1352, 0.31830987
      %v1369 = vmul.f32 %v1353, 0.31830987
      %v1370 = vmul.f32 %v1354, 0.31830987
      %v1371 = vmul.f32 %v1355, 0.31830987
      %v1372 = vmul.f32 %v1356, 0.31830987
      %v1373 = vmul.f32 %v1357, 0.31830987
      %v1374 = vsub.f32 1.0, %v1358
      %v1375 = vsub.f32 1.0, %v1359
      %v1376 = vsub.f32 1.0, %v1360
      %v1377 = vsub.f32 1.0, %v1361
      %v1378 = vsub.f32 1.0, %v1362
      %v1379 = vsub.f32 1.0, %v1363
      %v1380 = vsub.f32 1.0, %v1364
      %v1381 = vsub.f32 1.0, %v1365
      %v1382 = vsub.f32 1.0, %v1366
      %v1383 = vsub.f32 1.0, %v1367
      %v1384 = vsub.f32 1.0, %v1368
      %v1385 = vsub.f32 1.0, %v1369
      %v1386 = vsub.f32 1.0, %v1370
      %v1387 = vsub.f32 1.0, %v1371
      %v1388 = vsub.f32 1.0, %v1372
      %v1389 = vsub.f32 1.0, %v1373
      %v1390 = vsel %vm894, %v1374, 0.0
      %v1391 = vsel %vm895, %v1375, 0.0
      %v1392 = vsel %vm896, %v1376, 0.0
      %v1393 = vsel %vm897, %v1377, 0.0
      %v1394 = vsel %vm898, %v1378, 0.0
      %v1395 = vsel %vm899, %v1379, 0.0
      %v1396 = vsel %vm900, %v1380, 0.0
      %v1397 = vsel %vm901, %v1381, 0.0
      %v1398 = vsel %vm902, %v1382, 0.0
      %v1399 = vsel %vm903, %v1383, 0.0
      %v1400 = vsel %vm904, %v1384, 0.0
      %v1401 = vsel %vm905, %v1385, 0.0
      %v1402 = vsel %vm906, %v1386, 0.0
      %v1403 = vsel %vm907, %v1387, 0.0
      %v1404 = vsel %vm908, %v1388, 0.0
      %v1405 = vsel %vm909, %v1389, 0.0
      %v1406 = vld [vmem:[%s404] sm:$0xff]
      %v1407 = vld [vmem:[%s404 + $0x8] sm:$0xff]
      %v1408 = vld [vmem:[%s404 + $0x10] sm:$0xff]
      %v1409 = vld [vmem:[%s404 + $0x18] sm:$0xff]
      %v1410 = vld [vmem:[%s404 + $0x20] sm:$0xff]
      %v1411 = vld [vmem:[%s404 + $0x28] sm:$0xff]
      %v1412 = vld [vmem:[%s404 + $0x30] sm:$0xff]
      %v1413 = vld [vmem:[%s404 + $0x38] sm:$0xff]
      %v1414 = vld [vmem:[%s404 + $0x40] sm:$0xff]
      %v1415 = vld [vmem:[%s404 + $0x48] sm:$0xff]
      %v1416 = vld [vmem:[%s404 + $0x50] sm:$0xff]
      %v1417 = vld [vmem:[%s404 + $0x58] sm:$0xff]
      %v1418 = vld [vmem:[%s404 + $0x60] sm:$0xff]
      %v1419 = vld [vmem:[%s404 + $0x68] sm:$0xff]
      %v1420 = vld [vmem:[%s404 + $0x70] sm:$0xff]
      %v1421 = vld [vmem:[%s404 + $0x78] sm:$0xff]
      %1423 = vset.pattern.permute.xlu0 0
      %1424 = vperm.xlu0 %1423, %v1406
      %v1425 = vpop.permute.xlu0 %1424
      %1428 = vset.pattern.permute.xlu0 0
      %1429 = vperm.xlu0 %1428, %v1407
      %v1430 = vpop.permute.xlu0 %1429
      %1433 = vset.pattern.permute.xlu0 0
      %1434 = vperm.xlu0 %1433, %v1408
      %v1435 = vpop.permute.xlu0 %1434
      %1438 = vset.pattern.permute.xlu0 0
      %1439 = vperm.xlu0 %1438, %v1409
      %v1440 = vpop.permute.xlu0 %1439
      %1443 = vset.pattern.permute.xlu0 0
      %1444 = vperm.xlu0 %1443, %v1410
      %v1445 = vpop.permute.xlu0 %1444
      %1448 = vset.pattern.permute.xlu0 0
      %1449 = vperm.xlu0 %1448, %v1411
      %v1450 = vpop.permute.xlu0 %1449
      %1453 = vset.pattern.permute.xlu0 0
      %1454 = vperm.xlu0 %1453, %v1412
      %v1455 = vpop.permute.xlu0 %1454
      %1458 = vset.pattern.permute.xlu0 0
      %1459 = vperm.xlu0 %1458, %v1413
      %v1460 = vpop.permute.xlu0 %1459
      %1463 = vset.pattern.permute.xlu0 0
      %1464 = vperm.xlu0 %1463, %v1414
      %v1465 = vpop.permute.xlu0 %1464
      %1468 = vset.pattern.permute.xlu0 0
      %1469 = vperm.xlu0 %1468, %v1415
      %v1470 = vpop.permute.xlu0 %1469
      %1473 = vset.pattern.permute.xlu0 0
      %1474 = vperm.xlu0 %1473, %v1416
      %v1475 = vpop.permute.xlu0 %1474
      %1478 = vset.pattern.permute.xlu0 0
      %1479 = vperm.xlu0 %1478, %v1417
      %v1480 = vpop.permute.xlu0 %1479
      %1483 = vset.pattern.permute.xlu0 0
      %1484 = vperm.xlu0 %1483, %v1418
      %v1485 = vpop.permute.xlu0 %1484
      %1488 = vset.pattern.permute.xlu0 0
      %1489 = vperm.xlu0 %1488, %v1419
      %v1490 = vpop.permute.xlu0 %1489
      %1493 = vset.pattern.permute.xlu0 0
      %1494 = vperm.xlu0 %1493, %v1420
      %v1495 = vpop.permute.xlu0 %1494
      %1498 = vset.pattern.permute.xlu0 0
      %1499 = vperm.xlu0 %1498, %v1421
      %v1500 = vpop.permute.xlu0 %1499
      %v1502 = vmul.f32 %v1390, %v1425
      %v1503 = vmul.f32 %v1391, %v1430
      %v1504 = vmul.f32 %v1392, %v1435
      %v1505 = vmul.f32 %v1393, %v1440
      %v1506 = vmul.f32 %v1394, %v1445
      %v1507 = vmul.f32 %v1395, %v1450
      %v1508 = vmul.f32 %v1396, %v1455
      %v1509 = vmul.f32 %v1397, %v1460
      %v1510 = vmul.f32 %v1398, %v1465
      %v1511 = vmul.f32 %v1399, %v1470
      %v1512 = vmul.f32 %v1400, %v1475
      %v1513 = vmul.f32 %v1401, %v1480
      %v1514 = vmul.f32 %v1402, %v1485
      %v1515 = vmul.f32 %v1403, %v1490
      %v1516 = vmul.f32 %v1404, %v1495
      %v1517 = vmul.f32 %v1405, %v1500
      %v1518 = vld [vmem:[%s410] sm:$0x1]
      %v1520 = vlaneseq
      %v1521 = vshrl.u32 %v1520, 7
      %v1522 = vsub.s32 0, %v1521
      %v1523 = vrot.slane %v1518, %v1522
      %v1525 = vmul.f32 %v1502, %v1523
      %v1526 = vmul.f32 %v1503, %v1523
      %v1527 = vmul.f32 %v1504, %v1523
      %v1528 = vmul.f32 %v1505, %v1523
      %v1529 = vmul.f32 %v1506, %v1523
      %v1530 = vmul.f32 %v1507, %v1523
      %v1531 = vmul.f32 %v1508, %v1523
      %v1532 = vmul.f32 %v1509, %v1523
      %v1533 = vmul.f32 %v1510, %v1523
      %v1534 = vmul.f32 %v1511, %v1523
      %v1535 = vmul.f32 %v1512, %v1523
      %v1536 = vmul.f32 %v1513, %v1523
      %v1537 = vmul.f32 %v1514, %v1523
      %v1538 = vmul.f32 %v1515, %v1523
      %v1539 = vmul.f32 %v1516, %v1523
      %v1540 = vmul.f32 %v1517, %v1523
      %v1541 = vpack.c.bf16 %v1526, %v1525
      %v1542 = vpack.c.bf16 %v1528, %v1527
      %v1543 = vpack.c.bf16 %v1530, %v1529
      %v1544 = vpack.c.bf16 %v1532, %v1531
      %v1545 = vpack.c.bf16 %v1534, %v1533
      %v1546 = vpack.c.bf16 %v1536, %v1535
      %v1547 = vpack.c.bf16 %v1538, %v1537
      %v1548 = vpack.c.bf16 %v1540, %v1539
      %v1557 = vunpack.c.l.b16 %v1541
      %v1558 = vunpack.c.h.b16 %v1541
      %v1559 = vunpack.c.l.b16 %v1542
      %v1560 = vunpack.c.h.b16 %v1542
      %v1561 = vunpack.c.l.b16 %v1543
      %v1562 = vunpack.c.h.b16 %v1543
      %v1563 = vunpack.c.l.b16 %v1544
      %v1564 = vunpack.c.h.b16 %v1544
      %v1565 = vunpack.c.l.b16 %v1545
      %v1566 = vunpack.c.h.b16 %v1545
      %v1567 = vunpack.c.l.b16 %v1546
      %v1568 = vunpack.c.h.b16 %v1546
      %v1569 = vunpack.c.l.b16 %v1547
      %v1570 = vunpack.c.h.b16 %v1547
      %v1571 = vunpack.c.l.b16 %v1548
      %v1572 = vunpack.c.h.b16 %v1548
      %v1573 = vpack.c.b16 %v1557, %v1557
      %v1574 = vpack.c.b16 %v1558, %v1558
      %v1575 = vpack.c.b16 %v1559, %v1559
      %v1576 = vpack.c.b16 %v1560, %v1560
      %v1577 = vpack.c.b16 %v1561, %v1561
      %v1578 = vpack.c.b16 %v1562, %v1562
      %v1579 = vpack.c.b16 %v1563, %v1563
      %v1580 = vpack.c.b16 %v1564, %v1564
      %v1581 = vpack.c.b16 %v1565, %v1565
      %v1582 = vpack.c.b16 %v1566, %v1566
      %v1583 = vpack.c.b16 %v1567, %v1567
      %v1584 = vpack.c.b16 %v1568, %v1568
      %v1585 = vpack.c.b16 %v1569, %v1569
      %v1586 = vpack.c.b16 %v1570, %v1570
      %v1587 = vpack.c.b16 %v1571, %v1571
      %v1588 = vpack.c.b16 %v1572, %v1572
      %1605 = vst [vmem:[%s420] sm:$0xf] %v1573
      %1606 = vst [vmem:[%s420 + $0x4] sm:$0xf] %v1574
      %1607 = vst [vmem:[%s420 + $0x8] sm:$0xf] %v1575
      %1608 = vst [vmem:[%s420 + $0xc] sm:$0xf] %v1576
      %1609 = vst [vmem:[%s420 + $0x10] sm:$0xf] %v1577
      %1610 = vst [vmem:[%s420 + $0x14] sm:$0xf] %v1578
      %1611 = vst [vmem:[%s420 + $0x18] sm:$0xf] %v1579
      %1612 = vst [vmem:[%s420 + $0x1c] sm:$0xf] %v1580
      %1613 = vst [vmem:[%s420 + $0x20] sm:$0xf] %v1581
      %1614 = vst [vmem:[%s420 + $0x24] sm:$0xf] %v1582
      %1615 = vst [vmem:[%s420 + $0x28] sm:$0xf] %v1583
      %1616 = vst [vmem:[%s420 + $0x2c] sm:$0xf] %v1584
      %1617 = vst [vmem:[%s420 + $0x30] sm:$0xf] %v1585
      %1618 = vst [vmem:[%s420 + $0x34] sm:$0xf] %v1586
      %1619 = vst [vmem:[%s420 + $0x38] sm:$0xf] %v1587
      %1620 = vst [vmem:[%s420 + $0x3c] sm:$0xf] %v1588
      %s1621 = sadd.s32 %s22, %s24
      %s1622 = smul.u32 16, %s1621
      %p1623 = scmp.lt.s32.totalorder %s1622, 47
      %s1624 = scalar_select %p1623, %s1622, 47
      %p1625 = scmp.lt.s32.totalorder %s23, 0
      %s1626 = scalar_select %p1625, %s23, 0
      %s1627 = sadd.s32 %s1626, %s1624
      %s1628 = smul.addr %s1627, 4
      %s1629 = scalar_lea.vmem %s6, %s1628
      // Predicated region
      $region45: #{_forward.6} parent=43 // pred_check
        %p1630 = pneg %p222
      $region46: #{_forward.6} parent=43 // pred_check_branch
        %1632 = sbr.rel (%p1630) target = $region48
      $region47: #{_forward.6} parent=43 // pred_region
        %s1633 = sadd.s32 %s22, %s24
        %s1634 = smul.u32 16, %s1633
      $region48: #{_forward.6} parent=43 // pred_fallthru
        _
    $region44: #{_forward.6} parent=5 // pred_fallthru
      _
    %p1635 = scmp.le.s32.totalorder 2, %s12
    // Predicated region
    $region49: #{_forward.6} parent=5 // pred_check
      %p1636 = pneg %p1635
    $region50: #{_forward.6} parent=5 // pred_check_branch
      %1638 = sbr.rel (%p1636) target = $region52
    $region51: #{_forward.6} parent=5 // pred_region
      %s1639 = ssub.s32 %s12, 2
      // Predicated region
      $region53: #{_forward.6} parent=51 // pred_check
        %p1640 = pneg %p228
      $region54: #{_forward.6} parent=51 // pred_check_branch
        %1642 = sbr.rel (%p1640) target = $region56
      $region55: #{_forward.6} parent=51 // pred_region
        %s1643 = sadd.s32 %s25, %s27
        %s1644 = smul.u32 16, %s1643
        %p1645 = scmp.lt.s32.totalorder %s1644, 47
        %s1646 = scalar_select %p1645, %s1644, 47
        %p1647 = scmp.lt.s32.totalorder %s26, 0
        %s1648 = scalar_select %p1647, %s26, 0
        %s1649 = sadd.s32 %s1648, %s1646
        %s1650 = smul.addr %s1649, 4
        %s1651 = scalar_lea.vmem %s6, %s1650
      $region56: #{_forward.6} parent=51 // pred_fallthru
        _
    $region52: #{_forward.6} parent=5 // pred_fallthru
      _
  $region6: #{_forward.6} parent=0 // loop_footer
    %s16 = sadd.s32 1, %s12
  $region7: #{_forward.6} parent=0 // loop_footer_branch
    %11 = sbr.rel target = $region3
  $region8: #{_forward.6} parent=0 // loop_exit
    _

// kernel: _forward.7
$region0: #{_forward.7}
  #allocation0 [shape = 'u32[]', space=smem, size = 0x4, offset = 0x4, fixed_abs, tag = 'smem constant byte address 0x4 - core index']
  #allocation1 [shape = 'u32[144,128]{1,0:T(1,128)}', space=vmem, size = 0x12000, scoped, tag = 'internal scratch']
  %s0 = inlined_call_operand.vmem [shape: f32[384,32], index: 0, kind: input, shape index: {}]
  %s1 = inlined_call_operand.vmem [shape: f32[32,128], index: 1, kind: input, shape index: {}]
  %s2 = inlined_call_operand.vmem [shape: f32[1,128], index: 2, kind: input, shape index: {}]
  %s3 = inlined_call_operand.vmem [shape: f32[384,128], index: 3, kind: output, shape index: {0}]
  %s4 = inlined_call_operand.vmem [shape: bf16[384,128], index: 4, kind: output, shape index: {1}]
  %5 = xla_tuple %s3, %s4
  %s6 = sld [smem:[#allocation0]]
  $region30: #{_forward.7} parent=0
    _
  %s8 = ssub.s32 1, %s6
  %s9 = scalar_select 0, %s8, %s6
  // Predicated region
  $region2: #{_forward.7} parent=0 // pred_check
    _
  $region3: #{_forward.7} parent=0 // pred_check_branch
    %11 = sbr.rel (0) target = $region5
  $region4: #{_forward.7} parent=0 // pred_region
    _
  $region5: #{_forward.7} parent=0 // pred_fallthru
    _
  // Predicated region
  $region6: #{_forward.7} parent=0 // pred_check
    _
  $region7: #{_forward.7} parent=0 // pred_check_branch
    %13 = sbr.rel (0) target = $region9
  $region8: #{_forward.7} parent=0 // pred_region
    _
  $region9: #{_forward.7} parent=0 // pred_fallthru
    _
  // Predicated region
  $region10: #{_forward.7} parent=0 // pred_check
    _
  $region11: #{_forward.7} parent=0 // pred_check_branch
    %15 = sbr.rel (0) target = $region13
  $region12: #{_forward.7} parent=0 // pred_region
    _
  $region13: #{_forward.7} parent=0 // pred_fallthru
    _
  %v16 = vld [vmem:[%s0] sm:$0xff]
  %v17 = vld [vmem:[%s0 + $0x8] sm:$0xff]
  %v18 = vld [vmem:[%s0 + $0x10] sm:$0xff]
  %v19 = vld [vmem:[%s0 + $0x18] sm:$0xff]
  %v20 = vld [vmem:[%s0 + $0x20] sm:$0xff]
  %v21 = vld [vmem:[%s0 + $0x28] sm:$0xff]
  %v22 = vld [vmem:[%s0 + $0x30] sm:$0xff]
  %v23 = vld [vmem:[%s0 + $0x38] sm:$0xff]
  %v24 = vld [vmem:[%s0 + $0x40] sm:$0xff]
  %v25 = vld [vmem:[%s0 + $0x48] sm:$0xff]
  %v26 = vld [vmem:[%s0 + $0x50] sm:$0xff]
  %v27 = vld [vmem:[%s0 + $0x58] sm:$0xff]
  %v28 = vld [vmem:[%s0 + $0x60] sm:$0xff]
  %v29 = vld [vmem:[%s0 + $0x68] sm:$0xff]
  %v30 = vld [vmem:[%s0 + $0x70] sm:$0xff]
  %v31 = vld [vmem:[%s0 + $0x78] sm:$0xff]
  %v32 = vld [vmem:[%s0 + $0x80] sm:$0xff]
  %v33 = vld [vmem:[%s0 + $0x88] sm:$0xff]
  %v34 = vld [vmem:[%s0 + $0x90] sm:$0xff]
  %v35 = vld [vmem:[%s0 + $0x98] sm:$0xff]
  %v36 = vld [vmem:[%s0 + $0xa0] sm:$0xff]
  %v37 = vld [vmem:[%s0 + $0xa8] sm:$0xff]
  %v38 = vld [vmem:[%s0 + $0xb0] sm:$0xff]
  %v39 = vld [vmem:[%s0 + $0xb8] sm:$0xff]
  %v40 = vld [vmem:[%s0 + $0xc0] sm:$0xff]
  %v41 = vld [vmem:[%s0 + $0xc8] sm:$0xff]
  %v42 = vld [vmem:[%s0 + $0xd0] sm:$0xff]
  %v43 = vld [vmem:[%s0 + $0xd8] sm:$0xff]
  %v44 = vld [vmem:[%s0 + $0xe0] sm:$0xff]
  %v45 = vld [vmem:[%s0 + $0xe8] sm:$0xff]
  %v46 = vld [vmem:[%s0 + $0xf0] sm:$0xff]
  %v47 = vld [vmem:[%s0 + $0xf8] sm:$0xff]
  %v48 = vld [vmem:[%s0 + $0x100] sm:$0xff]
  %v49 = vld [vmem:[%s0 + $0x108] sm:$0xff]
  %v50 = vld [vmem:[%s0 + $0x110] sm:$0xff]
  %v51 = vld [vmem:[%s0 + $0x118] sm:$0xff]
  %v52 = vld [vmem:[%s0 + $0x120] sm:$0xff]
  %v53 = vld [vmem:[%s0 + $0x128] sm:$0xff]
  %v54 = vld [vmem:[%s0 + $0x130] sm:$0xff]
  %v55 = vld [vmem:[%s0 + $0x138] sm:$0xff]
  %v56 = vld [vmem:[%s0 + $0x140] sm:$0xff]
  %v57 = vld [vmem:[%s0 + $0x148] sm:$0xff]
  %v58 = vld [vmem:[%s0 + $0x150] sm:$0xff]
  %v59 = vld [vmem:[%s0 + $0x158] sm:$0xff]
  %v60 = vld [vmem:[%s0 + $0x160] sm:$0xff]
  %v61 = vld [vmem:[%s0 + $0x168] sm:$0xff]
  %v62 = vld [vmem:[%s0 + $0x170] sm:$0xff]
  %v63 = vld [vmem:[%s0 + $0x178] sm:$0xff]
  %v64 = vld [vmem:[%s1] sm:$0xff]
  %v65 = vld [vmem:[%s1 + $0x8] sm:$0xff]
  %v66 = vld [vmem:[%s1 + $0x10] sm:$0xff]
  %v67 = vld [vmem:[%s1 + $0x18] sm:$0xff]
  %v68 = vld [vmem:[%s2] sm:$0x1]
  %v70 = vlaneseq
  %v71 = vshrl.u32 %v70, 7
  %v72 = vsub.s32 0, %v71
  %v73 = vrot.slane %v68, %v72
  %vm75 = vcmask 261120
  %v77 = vsel %vm75, %v16, 0
  %v80 = vsel %vm75, %v17, 0
  %v83 = vsel %vm75, %v18, 0
  %v86 = vsel %vm75, %v19, 0
  %v89 = vsel %vm75, %v20, 0
  %v92 = vsel %vm75, %v21, 0
  %v95 = vsel %vm75, %v22, 0
  %v98 = vsel %vm75, %v23, 0
  %v101 = vsel %vm75, %v24, 0
  %v104 = vsel %vm75, %v25, 0
  %v107 = vsel %vm75, %v26, 0
  %v110 = vsel %vm75, %v27, 0
  %v113 = vsel %vm75, %v28, 0
  %v116 = vsel %vm75, %v29, 0
  %v119 = vsel %vm75, %v30, 0
  %v122 = vsel %vm75, %v31, 0
  %v125 = vsel %vm75, %v32, 0
  %v128 = vsel %vm75, %v33, 0
  %v131 = vsel %vm75, %v34, 0
  %v134 = vsel %vm75, %v35, 0
  %v137 = vsel %vm75, %v36, 0
  %v140 = vsel %vm75, %v37, 0
  %v143 = vsel %vm75, %v38, 0
  %v146 = vsel %vm75, %v39, 0
  %v149 = vsel %vm75, %v40, 0
  %v152 = vsel %vm75, %v41, 0
  %v155 = vsel %vm75, %v42, 0
  %v158 = vsel %vm75, %v43, 0
  %v161 = vsel %vm75, %v44, 0
  %v164 = vsel %vm75, %v45, 0
  %v167 = vsel %vm75, %v46, 0
  %v170 = vsel %vm75, %v47, 0
  %v173 = vsel %vm75, %v48, 0
  %v176 = vsel %vm75, %v49, 0
  %v179 = vsel %vm75, %v50, 0
  %v182 = vsel %vm75, %v51, 0
  %v185 = vsel %vm75, %v52, 0
  %v188 = vsel %vm75, %v53, 0
  %v191 = vsel %vm75, %v54, 0
  %v194 = vsel %vm75, %v55, 0
  %v197 = vsel %vm75, %v56, 0
  %v200 = vsel %vm75, %v57, 0
  %v203 = vsel %vm75, %v58, 0
  %v206 = vsel %vm75, %v59, 0
  %v209 = vsel %vm75, %v60, 0
  %v212 = vsel %vm75, %v61, 0
  %v215 = vsel %vm75, %v62, 0
  %v218 = vsel %vm75, %v63, 0
  %220 = vmatprep.subr.mxu0 0.0
  %221 = vmatpush1.msra.mxu0 %v64
  %222 = vmatprep.subr.mxu0 0.0
  %223 = vmatpush1.msra.mxu0 %v65
  %224 = vmatprep.subr.mxu0 0.0
  %225 = vmatpush1.msra.mxu0 %v66
  %226 = vmatprep.subr.mxu0 0.0
  %227 = vmatpush1.msra.mxu0 %v67
  %228 = vmatprep.subr.mxu0 0.0
  %229 = vmatpush1.msra.mxu0 0.0
  %230 = vmatprep.subr.mxu0 0.0
  %231 = vmatpush1.msra.mxu0 0.0
  %232 = vmatprep.subr.mxu0 0.0
  %233 = vmatpush1.msra.mxu0 0.0
  %234 = vmatprep.subr.mxu0 0.0
  %235 = vmatpush1.msra.mxu0 0.0
  %236 = vmatprep.subr.mxu0 0.0
  %237 = vmatpush1.msra.mxu0 0.0
  %238 = vmatprep.subr.mxu0 0.0
  %239 = vmatpush1.msra.mxu0 0.0
  %240 = vmatprep.subr.mxu0 0.0
  %241 = vmatpush1.msra.mxu0 0.0
  %242 = vmatprep.subr.mxu0 0.0
  %243 = vmatpush1.msra.mxu0 0.0
  %244 = vmatprep.subr.mxu0 0.0
  %245 = vmatpush1.msra.mxu0 0.0
  %246 = vmatprep.subr.mxu0 0.0
  %247 = vmatpush1.msra.mxu0 0.0
  %248 = vmatprep.subr.mxu0 0.0
  %249 = vmatpush1.msra.mxu0 0.0
  %250 = vmatprep.subr.mxu0 0.0
  %251 = vmatpush1.msra.mxu0 0.0
  %252 = vmatprep.subr.mxu0 0.0
  %253 = vmatpush1.msra.mxu0 0.0
  %254 = vmatprep.subr.mxu0 0.0
  %255 = vmatpush1.msra.mxu0 0.0
  %256 = vmatprep.subr.mxu0 0.0
  %257 = vmatpush1.msra.mxu0 0.0
  %258 = vmatprep.subr.mxu0 0.0
  %259 = vmatpush1.msra.mxu0 0.0
  %260 = vmatprep.subr.mxu0 0.0
  %261 = vmatpush1.msra.mxu0 0.0
  %262 = vmatprep.subr.mxu0 0.0
  %263 = vmatpush1.msra.mxu0 0.0
  %264 = vmatprep.subr.mxu0 0.0
  %265 = vmatpush1.msra.mxu0 0.0
  %266 = vmatprep.subr.mxu0 0.0
  %267 = vmatpush1.msra.mxu0 0.0
  %268 = vmatprep.subr.mxu0 0.0
  %269 = vmatpush1.msra.mxu0 0.0
  %270 = vmatprep.subr.mxu0 0.0
  %271 = vmatpush1.msra.mxu0 0.0
  %272 = vmatprep.subr.mxu0 0.0
  %273 = vmatpush1.msra.mxu0 0.0
  %274 = vmatprep.subr.mxu0 0.0
  %275 = vmatpush1.msra.mxu0 0.0
  %276 = vmatprep.subr.mxu0 0.0
  %277 = vmatpush1.msra.mxu0 0.0
  %278 = vmatprep.subr.mxu0 0.0
  %279 = vmatpush1.msra.mxu0 0.0
  %280 = vmatprep.subr.mxu0 0.0
  %281 = vmatpush1.msra.mxu0 0.0
  %282 = vmatprep.subr.mxu0 0.0
  %283 = vmatpush1.msra.mxu0 0.0
  %284 = vmatprep.mubr.f32.mxu0 0.0
  %285 = vmatmul.mubr.f32.gmra.mrb[0].mxu0 %v77
  %v286 = vpop.f32.mrb[0].mxu0
  %v287 = vadd.f32 %v73, %v286
  %v288 = vpop.f32.mrb[0].mxu0
  %289 = vmatprep.mubr.f32.mxu0 0.0
  %290 = vmatmul.mubr.f32.gmra.mrb[0].mxu0 %v80
  %v291 = vpop.f32.mrb[0].mxu0
  %v292 = vadd.f32 %v73, %v291
  %v293 = vpop.f32.mrb[0].mxu0
  %294 = vmatprep.mubr.f32.mxu0 0.0
  %295 = vmatmul.mubr.f32.gmra.mrb[0].mxu0 %v83
  %v296 = vpop.f32.mrb[0].mxu0
  %v297 = vadd.f32 %v73, %v296
  %v298 = vpop.f32.mrb[0].mxu0
  %299 = vmatprep.mubr.f32.mxu0 0.0
  %300 = vmatmul.mubr.f32.gmra.mrb[0].mxu0 %v86
  %v301 = vpop.f32.mrb[0].mxu0
  %v302 = vadd.f32 %v73, %v301
  %v303 = vpop.f32.mrb[0].mxu0
  %304 = vmatprep.mubr.f32.mxu0 0.0
  %305 = vmatmul.mubr.f32.gmra.mrb[0].mxu0 %v89
  %v306 = vpop.f32.mrb[0].mxu0
  %v307 = vadd.f32 %v73, %v306
  %v308 = vpop.f32.mrb[0].mxu0
  %309 = vmatprep.mubr.f32.mxu0 0.0
  %310 = vmatmul.mubr.f32.gmra.mrb[0].mxu0 %v92
  %v311 = vpop.f32.mrb[0].mxu0
  %v312 = vadd.f32 %v73, %v311
  %v313 = vpop.f32.mrb[0].mxu0
  %314 = vmatprep.mubr.f32.mxu0 0.0
  %315 = vmatmul.mubr.f32.gmra.mrb[0].mxu0 %v95
  %v316 = vpop.f32.mrb[0].mxu0
  %v317 = vadd.f32 %v73, %v316
  %v318 = vpop.f32.mrb[0].mxu0
  %319 = vmatprep.mubr.f32.mxu0 0.0
  %320 = vmatmul.mubr.f32.gmra.mrb[0].mxu0 %v98
  %v321 = vpop.f32.mrb[0].mxu0
  %v322 = vadd.f32 %v73, %v321
  %v323 = vpop.f32.mrb[0].mxu0
  %324 = vmatprep.mubr.f32.mxu0 0.0
  %325 = vmatmul.mubr.f32.gmra.mrb[0].mxu0 %v101
  %v326 = vpop.f32.mrb[0].mxu0
  %v327 = vadd.f32 %v73, %v326
  %v328 = vpop.f32.mrb[0].mxu0
  %329 = vmatprep.mubr.f32.mxu0 0.0
  %330 = vmatmul.mubr.f32.gmra.mrb[0].mxu0 %v104
  %v331 = vpop.f32.mrb[0].mxu0
  %v332 = vadd.f32 %v73, %v331
  %v333 = vpop.f32.mrb[0].mxu0
  %334 = vmatprep.mubr.f32.mxu0 0.0
  %335 = vmatmul.mubr.f32.gmra.mrb[0].mxu0 %v107
  %v336 = vpop.f32.mrb[0].mxu0
  %v337 = vadd.f32 %v73, %v336
  %v338 = vpop.f32.mrb[0].mxu0
  %339 = vmatprep.mubr.f32.mxu0 0.0
  %340 = vmatmul.mubr.f32.gmra.mrb[0].mxu0 %v110
  %v341 = vpop.f32.mrb[0].mxu0
  %v342 = vadd.f32 %v73, %v341
  %v343 = vpop.f32.mrb[0].mxu0
  %344 = vmatprep.mubr.f32.mxu0 0.0
  %345 = vmatmul.mubr.f32.gmra.mrb[0].mxu0 %v113
  %v346 = vpop.f32.mrb[0].mxu0
  %v347 = vadd.f32 %v73, %v346
  %v348 = vpop.f32.mrb[0].mxu0
  %349 = vmatprep.mubr.f32.mxu0 0.0
  %350 = vmatmul.mubr.f32.gmra.mrb[0].mxu0 %v116
  %v351 = vpop.f32.mrb[0].mxu0
  %v352 = vadd.f32 %v73, %v351
  %v353 = vpop.f32.mrb[0].mxu0
  %354 = vmatprep.mubr.f32.mxu0 0.0
  %355 = vmatmul.mubr.f32.gmra.mrb[0].mxu0 %v119
  %v356 = vpop.f32.mrb[0].mxu0
  %v357 = vadd.f32 %v73, %v356
  %v358 = vpop.f32.mrb[0].mxu0
  %359 = vmatprep.mubr.f32.mxu0 0.0
  %360 = vmatmul.mubr.f32.gmra.mrb[0].mxu0 %v122
  %v361 = vpop.f32.mrb[0].mxu0
  %v362 = vadd.f32 %v73, %v361
  %v363 = vpop.f32.mrb[0].mxu0
  %364 = vmatprep.mubr.f32.mxu0 0.0
  %365 = vmatmul.mubr.f32.gmra.mrb[0].mxu0 %v125
  %v366 = vpop.f32.mrb[0].mxu0
  %v367 = vadd.f32 %v73, %v366
  %v368 = vpop.f32.mrb[0].mxu0
  %369 = vmatprep.mubr.f32.mxu0 0.0
  %370 = vmatmul.mubr.f32.gmra.mrb[0].mxu0 %v128
  %v371 = vpop.f32.mrb[0].mxu0
  %v372 = vadd.f32 %v73, %v371
  %v373 = vpop.f32.mrb[0].mxu0
  %374 = vmatprep.mubr.f32.mxu0 0.0
  %375 = vmatmul.mubr.f32.gmra.mrb[0].mxu0 %v131
  %v376 = vpop.f32.mrb[0].mxu0
  %v377 = vadd.f32 %v73, %v376
  %v378 = vpop.f32.mrb[0].mxu0
  %379 = vmatprep.mubr.f32.mxu0 0.0
  %380 = vmatmul.mubr.f32.gmra.mrb[0].mxu0 %v134
  %v381 = vpop.f32.mrb[0].mxu0
  %v382 = vadd.f32 %v73, %v381
  %v383 = vpop.f32.mrb[0].mxu0
  %384 = vmatprep.mubr.f32.mxu0 0.0
  %385 = vmatmul.mubr.f32.gmra.mrb[0].mxu0 %v137
  %v386 = vpop.f32.mrb[0].mxu0
  %v387 = vadd.f32 %v73, %v386
  %v388 = vpop.f32.mrb[0].mxu0
  %389 = vmatprep.mubr.f32.mxu0 0.0
  %390 = vmatmul.mubr.f32.gmra.mrb[0].mxu0 %v140
  %v391 = vpop.f32.mrb[0].mxu0
  %v392 = vadd.f32 %v73, %v391
  %v393 = vpop.f32.mrb[0].mxu0
  %394 = vmatprep.mubr.f32.mxu0 0.0
  %395 = vmatmul.mubr.f32.gmra.mrb[0].mxu0 %v143
  %v396 = vpop.f32.mrb[0].mxu0
  %v397 = vadd.f32 %v73, %v396
  %v398 = vpop.f32.mrb[0].mxu0
  %399 = vmatprep.mubr.f32.mxu0 0.0
  %400 = vmatmul.mubr.f32.gmra.mrb[0].mxu0 %v146
  %v401 = vpop.f32.mrb[0].mxu0
  %v402 = vadd.f32 %v73, %v401
  %v403 = vpop.f32.mrb[0].mxu0
  %404 = vmatprep.mubr.f32.mxu0 0.0
  %405 = vmatmul.mubr.f32.gmra.mrb[0].mxu0 %v149
  %v406 = vpop.f32.mrb[0].mxu0
  %v407 = vadd.f32 %v73, %v406
  %v408 = vpop.f32.mrb[0].mxu0
  %409 = vmatprep.mubr.f32.mxu0 0.0
  %410 = vmatmul.mubr.f32.gmra.mrb[0].mxu0 %v152
  %v411 = vpop.f32.mrb[0].mxu0
  %v412 = vadd.f32 %v73, %v411
  %v413 = vpop.f32.mrb[0].mxu0
  %414 = vmatprep.mubr.f32.mxu0 0.0
  %415 = vmatmul.mubr.f32.gmra.mrb[0].mxu0 %v155
  %v416 = vpop.f32.mrb[0].mxu0
  %v417 = vadd.f32 %v73, %v416
  %v418 = vpop.f32.mrb[0].mxu0
  %419 = vmatprep.mubr.f32.mxu0 0.0
  %420 = vmatmul.mubr.f32.gmra.mrb[0].mxu0 %v158
  %v421 = vpop.f32.mrb[0].mxu0
  %v422 = vadd.f32 %v73, %v421
  %v423 = vpop.f32.mrb[0].mxu0
  %424 = vmatprep.mubr.f32.mxu0 0.0
  %425 = vmatmul.mubr.f32.gmra.mrb[0].mxu0 %v161
  %v426 = vpop.f32.mrb[0].mxu0
  %v427 = vadd.f32 %v73, %v426
  %v428 = vpop.f32.mrb[0].mxu0
  %429 = vmatprep.mubr.f32.mxu0 0.0
  %430 = vmatmul.mubr.f32.gmra.mrb[0].mxu0 %v164
  %v431 = vpop.f32.mrb[0].mxu0
  %v432 = vadd.f32 %v73, %v431
  %v433 = vpop.f32.mrb[0].mxu0
  %434 = vmatprep.mubr.f32.mxu0 0.0
  %435 = vmatmul.mubr.f32.gmra.mrb[0].mxu0 %v167
  %v436 = vpop.f32.mrb[0].mxu0
  %v437 = vadd.f32 %v73, %v436
  %v438 = vpop.f32.mrb[0].mxu0
  %439 = vmatprep.mubr.f32.mxu0 0.0
  %440 = vmatmul.mubr.f32.gmra.mrb[0].mxu0 %v170
  %v441 = vpop.f32.mrb[0].mxu0
  %v442 = vadd.f32 %v73, %v441
  %v443 = vpop.f32.mrb[0].mxu0
  %444 = vmatprep.mubr.f32.mxu0 0.0
  %445 = vmatmul.mubr.f32.gmra.mrb[0].mxu0 %v173
  %v446 = vpop.f32.mrb[0].mxu0
  %v447 = vadd.f32 %v73, %v446
  %v448 = vpop.f32.mrb[0].mxu0
  %449 = vmatprep.mubr.f32.mxu0 0.0
  %450 = vmatmul.mubr.f32.gmra.mrb[0].mxu0 %v176
  %v451 = vpop.f32.mrb[0].mxu0
  %v452 = vadd.f32 %v73, %v451
  %v453 = vpop.f32.mrb[0].mxu0
  %454 = vmatprep.mubr.f32.mxu0 0.0
  %455 = vmatmul.mubr.f32.gmra.mrb[0].mxu0 %v179
  %v456 = vpop.f32.mrb[0].mxu0
  %v457 = vadd.f32 %v73, %v456
  %v458 = vpop.f32.mrb[0].mxu0
  %459 = vmatprep.mubr.f32.mxu0 0.0
  %460 = vmatmul.mubr.f32.gmra.mrb[0].mxu0 %v182
  %v461 = vpop.f32.mrb[0].mxu0
  %v462 = vadd.f32 %v73, %v461
  %v463 = vpop.f32.mrb[0].mxu0
  %464 = vmatprep.mubr.f32.mxu0 0.0
  %465 = vmatmul.mubr.f32.gmra.mrb[0].mxu0 %v185
  %v466 = vpop.f32.mrb[0].mxu0
  %v467 = vadd.f32 %v73, %v466
  %v468 = vpop.f32.mrb[0].mxu0
  %469 = vmatprep.mubr.f32.mxu0 0.0
  %470 = vmatmul.mubr.f32.gmra.mrb[0].mxu0 %v188
  %v471 = vpop.f32.mrb[0].mxu0
  %v472 = vadd.f32 %v73, %v471
  %v473 = vpop.f32.mrb[0].mxu0
  %474 = vmatprep.mubr.f32.mxu0 0.0
  %475 = vmatmul.mubr.f32.gmra.mrb[0].mxu0 %v191
  %v476 = vpop.f32.mrb[0].mxu0
  %v477 = vadd.f32 %v73, %v476
  %v478 = vpop.f32.mrb[0].mxu0
  %479 = vmatprep.mubr.f32.mxu0 0.0
  %480 = vmatmul.mubr.f32.gmra.mrb[0].mxu0 %v194
  %v481 = vpop.f32.mrb[0].mxu0
  %v482 = vadd.f32 %v73, %v481
  %v483 = vpop.f32.mrb[0].mxu0
  %484 = vmatprep.mubr.f32.mxu0 0.0
  %485 = vmatmul.mubr.f32.gmra.mrb[0].mxu0 %v197
  %v486 = vpop.f32.mrb[0].mxu0
  %v487 = vadd.f32 %v73, %v486
  %v488 = vpop.f32.mrb[0].mxu0
  %489 = vmatprep.mubr.f32.mxu0 0.0
  %490 = vmatmul.mubr.f32.gmra.mrb[0].mxu0 %v200
  %v491 = vpop.f32.mrb[0].mxu0
  %v492 = vadd.f32 %v73, %v491
  %v493 = vpop.f32.mrb[0].mxu0
  %494 = vmatprep.mubr.f32.mxu0 0.0
  %495 = vmatmul.mubr.f32.gmra.mrb[0].mxu0 %v203
  %v496 = vpop.f32.mrb[0].mxu0
  %v497 = vadd.f32 %v73, %v496
  %v498 = vpop.f32.mrb[0].mxu0
  %499 = vmatprep.mubr.f32.mxu0 0.0
  %500 = vmatmul.mubr.f32.gmra.mrb[0].mxu0 %v206
  %v501 = vpop.f32.mrb[0].mxu0
  %v502 = vadd.f32 %v73, %v501
  %v503 = vpop.f32.mrb[0].mxu0
  %504 = vmatprep.mubr.f32.mxu0 0.0
  %505 = vmatmul.mubr.f32.gmra.mrb[0].mxu0 %v209
  %v506 = vpop.f32.mrb[0].mxu0
  %v507 = vadd.f32 %v73, %v506
  %v508 = vpop.f32.mrb[0].mxu0
  %509 = vmatprep.mubr.f32.mxu0 0.0
  %510 = vmatmul.mubr.f32.gmra.mrb[0].mxu0 %v212
  %v511 = vpop.f32.mrb[0].mxu0
  %v512 = vadd.f32 %v73, %v511
  %v513 = vpop.f32.mrb[0].mxu0
  %514 = vmatprep.mubr.f32.mxu0 0.0
  %515 = vmatmul.mubr.f32.gmra.mrb[0].mxu0 %v215
  %v516 = vpop.f32.mrb[0].mxu0
  %v517 = vadd.f32 %v73, %v516
  %v518 = vpop.f32.mrb[0].mxu0
  %519 = vmatprep.mubr.f32.mxu0 0.0
  %520 = vmatmul.mubr.f32.gmra.mrb[0].mxu0 %v218
  %v521 = vpop.f32.mrb[0].mxu0
  %v522 = vadd.f32 %v73, %v521
  %v523 = vpop.f32.mrb[0].mxu0
  %524 = vdwg.mxu0
  %v525 = vmax.f32 %v287, 0.0
  %v526 = vmax.f32 %v292, 0.0
  %v527 = vmax.f32 %v297, 0.0
  %v528 = vmax.f32 %v302, 0.0
  %v529 = vmax.f32 %v307, 0.0
  %v530 = vmax.f32 %v312, 0.0
  %v531 = vmax.f32 %v317, 0.0
  %v532 = vmax.f32 %v322, 0.0
  %v533 = vmax.f32 %v327, 0.0
  %v534 = vmax.f32 %v332, 0.0
  %v535 = vmax.f32 %v337, 0.0
  %v536 = vmax.f32 %v342, 0.0
  %v537 = vmax.f32 %v347, 0.0
  %v538 = vmax.f32 %v352, 0.0
  %v539 = vmax.f32 %v357, 0.0
  %v540 = vmax.f32 %v362, 0.0
  %v541 = vmax.f32 %v367, 0.0
  %v542 = vmax.f32 %v372, 0.0
  %v543 = vmax.f32 %v377, 0.0
  %v544 = vmax.f32 %v382, 0.0
  %v545 = vmax.f32 %v387, 0.0
  %v546 = vmax.f32 %v392, 0.0
  %v547 = vmax.f32 %v397, 0.0
  %v548 = vmax.f32 %v402, 0.0
  %v549 = vmax.f32 %v407, 0.0
  %v550 = vmax.f32 %v412, 0.0
  %v551 = vmax.f32 %v417, 0.0
  %v552 = vmax.f32 %v422, 0.0
  %v553 = vmax.f32 %v427, 0.0
  %v554 = vmax.f32 %v432, 0.0
  %v555 = vmax.f32 %v437, 0.0
  %v556 = vmax.f32 %v442, 0.0
  %v557 = vmax.f32 %v447, 0.0
  %v558 = vmax.f32 %v452, 0.0
  %v559 = vmax.f32 %v457, 0.0
  %v560 = vmax.f32 %v462, 0.0
  %v561 = vmax.f32 %v467, 0.0
  %v562 = vmax.f32 %v472, 0.0
  %v563 = vmax.f32 %v477, 0.0
  %v564 = vmax.f32 %v482, 0.0
  %v565 = vmax.f32 %v487, 0.0
  %v566 = vmax.f32 %v492, 0.0
  %v567 = vmax.f32 %v497, 0.0
  %v568 = vmax.f32 %v502, 0.0
  %v569 = vmax.f32 %v507, 0.0
  %v570 = vmax.f32 %v512, 0.0
  %v571 = vmax.f32 %v517, 0.0
  %v572 = vmax.f32 %v522, 0.0
  %573 = vst [vmem:[%s3] sm:$0xff] %v525
  %574 = vst [vmem:[%s3 + $0x8] sm:$0xff] %v526
  %575 = vst [vmem:[%s3 + $0x10] sm:$0xff] %v527
  %576 = vst [vmem:[%s3 + $0x18] sm:$0xff] %v528
  %577 = vst [vmem:[%s3 + $0x20] sm:$0xff] %v529
  %578 = vst [vmem:[%s3 + $0x28] sm:$0xff] %v530
  %579 = vst [vmem:[%s3 + $0x30] sm:$0xff] %v531
  %580 = vst [vmem:[%s3 + $0x38] sm:$0xff] %v532
  %581 = vst [vmem:[%s3 + $0x40] sm:$0xff] %v533
  %582 = vst [vmem:[%s3 + $0x48] sm:$0xff] %v534
  %583 = vst [vmem:[%s3 + $0x50] sm:$0xff] %v535
  %584 = vst [vmem:[%s3 + $0x58] sm:$0xff] %v536
  %585 = vst [vmem:[%s3 + $0x60] sm:$0xff] %v537
  %586 = vst [vmem:[%s3 + $0x68] sm:$0xff] %v538
  %587 = vst [vmem:[%s3 + $0x70] sm:$0xff] %v539
  %588 = vst [vmem:[%s3 + $0x78] sm:$0xff] %v540
  %589 = vst [vmem:[%s3 + $0x80] sm:$0xff] %v541
  %590 = vst [vmem:[%s3 + $0x88] sm:$0xff] %v542
  %591 = vst [vmem:[%s3 + $0x90] sm:$0xff] %v543
  %592 = vst [vmem:[%s3 + $0x98] sm:$0xff] %v544
  %593 = vst [vmem:[%s3 + $0xa0] sm:$0xff] %v545
  %594 = vst [vmem:[%s3 + $0xa8] sm:$0xff] %v546
  %595 = vst [vmem:[%s3 + $0xb0] sm:$0xff] %v547
  %596 = vst [vmem:[%s3 + $0xb8] sm:$0xff] %v548
  %597 = vst [vmem:[%s3 + $0xc0] sm:$0xff] %v549
  %598 = vst [vmem:[%s3 + $0xc8] sm:$0xff] %v550
  %599 = vst [vmem:[%s3 + $0xd0] sm:$0xff] %v551
  %600 = vst [vmem:[%s3 + $0xd8] sm:$0xff] %v552
  %601 = vst [vmem:[%s3 + $0xe0] sm:$0xff] %v553
  %602 = vst [vmem:[%s3 + $0xe8] sm:$0xff] %v554
  %603 = vst [vmem:[%s3 + $0xf0] sm:$0xff] %v555
  %604 = vst [vmem:[%s3 + $0xf8] sm:$0xff] %v556
  %605 = vst [vmem:[%s3 + $0x100] sm:$0xff] %v557
  %606 = vst [vmem:[%s3 + $0x108] sm:$0xff] %v558
  %607 = vst [vmem:[%s3 + $0x110] sm:$0xff] %v559
  %608 = vst [vmem:[%s3 + $0x118] sm:$0xff] %v560
  %609 = vst [vmem:[%s3 + $0x120] sm:$0xff] %v561
  %610 = vst [vmem:[%s3 + $0x128] sm:$0xff] %v562
  %611 = vst [vmem:[%s3 + $0x130] sm:$0xff] %v563
  %612 = vst [vmem:[%s3 + $0x138] sm:$0xff] %v564
  %613 = vst [vmem:[%s3 + $0x140] sm:$0xff] %v565
  %614 = vst [vmem:[%s3 + $0x148] sm:$0xff] %v566
  %615 = vst [vmem:[%s3 + $0x150] sm:$0xff] %v567
  %616 = vst [vmem:[%s3 + $0x158] sm:$0xff] %v568
  %617 = vst [vmem:[%s3 + $0x160] sm:$0xff] %v569
  %618 = vst [vmem:[%s3 + $0x168] sm:$0xff] %v570
  %619 = vst [vmem:[%s3 + $0x170] sm:$0xff] %v571
  %620 = vst [vmem:[%s3 + $0x178] sm:$0xff] %v572
  %v621 = vpack.c.bf16 %v526, %v525
  %v622 = vpack.c.bf16 %v528, %v527
  %v623 = vpack.c.bf16 %v530, %v529
  %v624 = vpack.c.bf16 %v532, %v531
  %v625 = vpack.c.bf16 %v534, %v533
  %v626 = vpack.c.bf16 %v536, %v535
  %v627 = vpack.c.bf16 %v538, %v537
  %v628 = vpack.c.bf16 %v540, %v539
  %v629 = vpack.c.bf16 %v542, %v541
  %v630 = vpack.c.bf16 %v544, %v543
  %v631 = vpack.c.bf16 %v546, %v545
  %v632 = vpack.c.bf16 %v548, %v547
  %v633 = vpack.c.bf16 %v550, %v549
  %v634 = vpack.c.bf16 %v552, %v551
  %v635 = vpack.c.bf16 %v554, %v553
  %v636 = vpack.c.bf16 %v556, %v555
  %v637 = vpack.c.bf16 %v558, %v557
  %v638 = vpack.c.bf16 %v560, %v559
  %v639 = vpack.c.bf16 %v562, %v561
  %v640 = vpack.c.bf16 %v564, %v563
  %v641 = vpack.c.bf16 %v566, %v565
  %v642 = vpack.c.bf16 %v568, %v567
  %v643 = vpack.c.bf16 %v570, %v569
  %v644 = vpack.c.bf16 %v572, %v571
  %v669 = vunpack.c.l.b16 %v621
  %v670 = vunpack.c.h.b16 %v621
  %v671 = vunpack.c.l.b16 %v622
  %v672 = vunpack.c.h.b16 %v622
  %v673 = vunpack.c.l.b16 %v623
  %v674 = vunpack.c.h.b16 %v623
  %v675 = vunpack.c.l.b16 %v624
  %v676 = vunpack.c.h.b16 %v624
  %v677 = vunpack.c.l.b16 %v625
  %v678 = vunpack.c.h.b16 %v625
  %v679 = vunpack.c.l.b16 %v626
  %v680 = vunpack.c.h.b16 %v626
  %v681 = vunpack.c.l.b16 %v627
  %v682 = vunpack.c.h.b16 %v627
  %v683 = vunpack.c.l.b16 %v628
  %v684 = vunpack.c.h.b16 %v628
  %v685 = vunpack.c.l.b16 %v629
  %v686 = vunpack.c.h.b16 %v629
  %v687 = vunpack.c.l.b16 %v630
  %v688 = vunpack.c.h.b16 %v630
  %v689 = vunpack.c.l.b16 %v631
  %v690 = vunpack.c.h.b16 %v631
  %v691 = vunpack.c.l.b16 %v632
  %v692 = vunpack.c.h.b16 %v632
  %v693 = vunpack.c.l.b16 %v633
  %v694 = vunpack.c.h.b16 %v633
  %v695 = vunpack.c.l.b16 %v634
  %v696 = vunpack.c.h.b16 %v634
  %v697 = vunpack.c.l.b16 %v635
  %v698 = vunpack.c.h.b16 %v635
  %v699 = vunpack.c.l.b16 %v636
  %v700 = vunpack.c.h.b16 %v636
  %v701 = vunpack.c.l.b16 %v637
  %v702 = vunpack.c.h.b16 %v637
  %v703 = vunpack.c.l.b16 %v638
  %v704 = vunpack.c.h.b16 %v638
  %v705 = vunpack.c.l.b16 %v639
  %v706 = vunpack.c.h.b16 %v639
  %v707 = vunpack.c.l.b16 %v640
  %v708 = vunpack.c.h.b16 %v640
  %v709 = vunpack.c.l.b16 %v641
  %v710 = vunpack.c.h.b16 %v641
  %v711 = vunpack.c.l.b16 %v642
  %v712 = vunpack.c.h.b16 %v642
  %v713 = vunpack.c.l.b16 %v643
  %v714 = vunpack.c.h.b16 %v643
  %v715 = vunpack.c.l.b16 %v644
  %v716 = vunpack.c.h.b16 %v644
  %v717 = vpack.c.b16 %v669, %v669
  %v718 = vpack.c.b16 %v670, %v670
  %v719 = vpack.c.b16 %v671, %v671
  %v720 = vpack.c.b16 %v672, %v672
  %v721 = vpack.c.b16 %v673, %v673
  %v722 = vpack.c.b16 %v674, %v674
  %v723 = vpack.c.b16 %v675, %v675
  %v724 = vpack.c.b16 %v676, %v676
  %v725 = vpack.c.b16 %v677, %v677
  %v726 = vpack.c.b16 %v678, %v678
  %v727 = vpack.c.b16 %v679, %v679
  %v728 = vpack.c.b16 %v680, %v680
  %v729 = vpack.c.b16 %v681, %v681
  %v730 = vpack.c.b16 %v682, %v682
  %v731 = vpack.c.b16 %v683, %v683
  %v732 = vpack.c.b16 %v684, %v684
  %v733 = vpack.c.b16 %v685, %v685
  %v734 = vpack.c.b16 %v686, %v686
  %v735 = vpack.c.b16 %v687, %v687
  %v736 = vpack.c.b16 %v688, %v688
  %v737 = vpack.c.b16 %v689, %v689
  %v738 = vpack.c.b16 %v690, %v690
  %v739 = vpack.c.b16 %v691, %v691
  %v740 = vpack.c.b16 %v692, %v692
  %v741 = vpack.c.b16 %v693, %v693
  %v742 = vpack.c.b16 %v694, %v694
  %v743 = vpack.c.b16 %v695, %v695
  %v744 = vpack.c.b16 %v696, %v696
  %v745 = vpack.c.b16 %v697, %v697
  %v746 = vpack.c.b16 %v698, %v698
  %v747 = vpack.c.b16 %v699, %v699
  %v748 = vpack.c.b16 %v700, %v700
  %v749 = vpack.c.b16 %v701, %v701
  %v750 = vpack.c.b16 %v702, %v702
  %v751 = vpack.c.b16 %v703, %v703
  %v752 = vpack.c.b16 %v704, %v704
  %v753 = vpack.c.b16 %v705, %v705
  %v754 = vpack.c.b16 %v706, %v706
  %v755 = vpack.c.b16 %v707, %v707
  %v756 = vpack.c.b16 %v708, %v708
  %v757 = vpack.c.b16 %v709, %v709
  %v758 = vpack.c.b16 %v710, %v710
  %v759 = vpack.c.b16 %v711, %v711
  %v760 = vpack.c.b16 %v712, %v712
  %v761 = vpack.c.b16 %v713, %v713
  %v762 = vpack.c.b16 %v714, %v714
  %v763 = vpack.c.b16 %v715, %v715
  %v764 = vpack.c.b16 %v716, %v716
  %813 = vst [vmem:[%s4] sm:$0xf] %v717
  %814 = vst [vmem:[%s4 + $0x4] sm:$0xf] %v718
  %815 = vst [vmem:[%s4 + $0x8] sm:$0xf] %v719
  %816 = vst [vmem:[%s4 + $0xc] sm:$0xf] %v720
  %817 = vst [vmem:[%s4 + $0x10] sm:$0xf] %v721
  %818 = vst [vmem:[%s4 + $0x14] sm:$0xf] %v722
  %819 = vst [vmem:[%s4 + $0x18] sm:$0xf] %v723
  %820 = vst [vmem:[%s4 + $0x1c] sm:$0xf] %v724
  %821 = vst [vmem:[%s4 + $0x20] sm:$0xf] %v725
  %822 = vst [vmem:[%s4 + $0x24] sm:$0xf] %v726
  %823 = vst [vmem:[%s4 + $0x28] sm:$0xf] %v727
  %824 = vst [vmem:[%s4 + $0x2c] sm:$0xf] %v728
  %825 = vst [vmem:[%s4 + $0x30] sm:$0xf] %v729
  %826 = vst [vmem:[%s4 + $0x34] sm:$0xf] %v730
  %827 = vst [vmem:[%s4 + $0x38] sm:$0xf] %v731
  %828 = vst [vmem:[%s4 + $0x3c] sm:$0xf] %v732
  %829 = vst [vmem:[%s4 + $0x40] sm:$0xf] %v733
  %830 = vst [vmem:[%s4 + $0x44] sm:$0xf] %v734
  %831 = vst [vmem:[%s4 + $0x48] sm:$0xf] %v735
  %832 = vst [vmem:[%s4 + $0x4c] sm:$0xf] %v736
  %833 = vst [vmem:[%s4 + $0x50] sm:$0xf] %v737
  %834 = vst [vmem:[%s4 + $0x54] sm:$0xf] %v738
  %835 = vst [vmem:[%s4 + $0x58] sm:$0xf] %v739
  %836 = vst [vmem:[%s4 + $0x5c] sm:$0xf] %v740
  %837 = vst [vmem:[%s4 + $0x60] sm:$0xf] %v741
  %838 = vst [vmem:[%s4 + $0x64] sm:$0xf] %v742
  %839 = vst [vmem:[%s4 + $0x68] sm:$0xf] %v743
  %840 = vst [vmem:[%s4 + $0x6c] sm:$0xf] %v744
  %841 = vst [vmem:[%s4 + $0x70] sm:$0xf] %v745
  %842 = vst [vmem:[%s4 + $0x74] sm:$0xf] %v746
  %843 = vst [vmem:[%s4 + $0x78] sm:$0xf] %v747
  %844 = vst [vmem:[%s4 + $0x7c] sm:$0xf] %v748
  %845 = vst [vmem:[%s4 + $0x80] sm:$0xf] %v749
  %846 = vst [vmem:[%s4 + $0x84] sm:$0xf] %v750
  %847 = vst [vmem:[%s4 + $0x88] sm:$0xf] %v751
  %848 = vst [vmem:[%s4 + $0x8c] sm:$0xf] %v752
  %849 = vst [vmem:[%s4 + $0x90] sm:$0xf] %v753
  %850 = vst [vmem:[%s4 + $0x94] sm:$0xf] %v754
  %851 = vst [vmem:[%s4 + $0x98] sm:$0xf] %v755
  %852 = vst [vmem:[%s4 + $0x9c] sm:$0xf] %v756
  %853 = vst [vmem:[%s4 + $0xa0] sm:$0xf] %v757
  %854 = vst [vmem:[%s4 + $0xa4] sm:$0xf] %v758
  %855 = vst [vmem:[%s4 + $0xa8] sm:$0xf] %v759
  %856 = vst [vmem:[%s4 + $0xac] sm:$0xf] %v760
  %857 = vst [vmem:[%s4 + $0xb0] sm:$0xf] %v761
  %858 = vst [vmem:[%s4 + $0xb4] sm:$0xf] %v762
  %859 = vst [vmem:[%s4 + $0xb8] sm:$0xf] %v763
  %860 = vst [vmem:[%s4 + $0xbc] sm:$0xf] %v764
  // Predicated region
  $region14: #{_forward.7} parent=0 // pred_check
    _
  $region15: #{_forward.7} parent=0 // pred_check_branch
    %862 = sbr.rel (0) target = $region17
  $region16: #{_forward.7} parent=0 // pred_region
    _
  $region17: #{_forward.7} parent=0 // pred_fallthru
    _
  // Predicated region
  $region18: #{_forward.7} parent=0 // pred_check
    _
  $region19: #{_forward.7} parent=0 // pred_check_branch
    %864 = sbr.rel (0) target = $region21
  $region20: #{_forward.7} parent=0 // pred_region
    _
  $region21: #{_forward.7} parent=0 // pred_fallthru
    _
  // Predicated region
  $region22: #{_forward.7} parent=0 // pred_check
    _
  $region23: #{_forward.7} parent=0 // pred_check_branch
    %866 = sbr.rel (0) target = $region25
  $region24: #{_forward.7} parent=0 // pred_region
    _
  $region25: #{_forward.7} parent=0 // pred_fallthru
    _
  // Predicated region
  $region26: #{_forward.7} parent=0 // pred_check
    _
  $region27: #{_forward.7} parent=0 // pred_check_branch
    %868 = sbr.rel (0) target = $region29
  $region28: #{_forward.7} parent=0 // pred_region
    _
  $region29: #{_forward.7} parent=0 // pred_fallthru
    _

// kernel: _forward.8
$region0: #{_forward.8}
  #allocation0 [shape = 'u32[]', space=smem, size = 0x4, offset = 0x4, fixed_abs, tag = 'smem constant byte address 0x4 - core index']
  #allocation1 [shape = 'u32[144,128]{1,0:T(1,128)}', space=vmem, size = 0x12000, scoped, tag = 'internal scratch']
  #allocation2 [shape = 'f32[128,128]{1,0:T(8,128)}', space=vmem, size = 0x10000, scoped, tag = 'scratch operand']
  %s0 = inlined_call_operand.vmem [shape: f32[2], index: 0, kind: input, shape index: {}]
  %s1 = inlined_call_operand.vmem [shape: bf16[384,128], index: 1, kind: input, shape index: {}]
  %s2 = inlined_call_operand.vmem [shape: bf16[384,128], index: 2, kind: input, shape index: {}]
  %s3 = inlined_call_operand.vmem [shape: f32[3,384,1], index: 3, kind: input, shape index: {}]
  %s4 = inlined_call_operand.vmem [shape: f32[384,128], index: 4, kind: input, shape index: {}]
  %s5 = inlined_call_operand.vmem [shape: bf16[128,128], index: 5, kind: input, shape index: {}]
  %s6 = inlined_call_operand.vmem [shape: bf16[384,128], index: 6, kind: output, shape index: {}]
  %s7 = sld [smem:[#allocation0]]
  $region107: #{_forward.8} parent=0
    _
  %s9 = ssub.s32 1, %s7
  %s10 = scalar_select 0, %s9, %s7
  $region1: #{_forward.8} parent=0
    #allocation3 [shape = 'u8[512]{0}', space=smem, size = 0x200, scoped, tag = 'input window, operand 0, single buffered']
    #allocation4 [shape = 's32[2]{0}', space=sflag, size = 0x8, scoped, tag = 'scoped memory for _forward.8']
    #allocation5 [shape = 'u8[393216]{0}', space=vmem, size = 0x60000, scoped, tag = 'input window, operand 3']
    %11 = vsyncpa [#allocation4], 0
    loop: start=0, step=1, limit=5
    $region2: #{_forward.8} parent=1 // loop_pre_header
      _
    $region3: #{_forward.8} parent=1 // loop_header
      %s13 = sphi 0, %s17
      %p14 = scmp.ge.s32.totalorder %s13, 5
      %s20 = sphi 0, %s39
      %s21 = sphi 0, %s35
      %s22 = sphi 0, %s31
      %s23 = sphi 0, %s20
      %s24 = sphi 0, %s21
      %s25 = sphi 0, %s22
      %s26 = sphi 0, %s23
      %s27 = sphi 0, %s24
      %s28 = sphi 0, %s25
      %s40 = sphi 0, %s40
      %s42 = sphi 0, %s40
      %s43 = sphi 0, %s42
      %s57 = sphi 0, %s43
      %s67 = sphi 0, %s69
      %s70 = sphi 0, %s67
      %s71 = sphi 0, %s70
      %s87 = sphi 0, %s71
      %s91 = sphi 0, %s91
      %s93 = sphi 0, %s91
      %s94 = sphi 0, %s93
      %s108 = sphi 0, %s94
      %s116 = sphi 0, %s118
      %s119 = sphi 0, %s116
      %s120 = sphi 0, %s119
      %s136 = sphi 0, %s120
      %s144 = sphi 0, %s146
      %s147 = sphi 0, %s144
      %s148 = sphi 0, %s147
      %s164 = sphi 0, %s148
      %s168 = sphi 0, %s168
      %s170 = sphi 0, %s168
      %s171 = sphi 0, %s170
      %s185 = sphi 0, %s171
      %s193 = sphi 0, %s195
      %s196 = sphi 0, %s193
      %s197 = sphi 0, %s196
      %s213 = sphi 0, %s197
    $region4: #{_forward.8} parent=1 // loop_header_branch
      %16 = sbr.rel (%p14) target = $region8
    $region5: #{_forward.8} parent=1 // loop_body
      %s18 = ssub.s32 %s13, 1
      %s19 = ssub.s32 %s13, 2
      %s29 = sadd.s32 1, %s22
      %p30 = scmp.ge.s32.totalorder %s29, 1
      %s31 = scalar_select %p30, 0, %s29
      %s32 = sadd.s32 1, %s21
      %s33 = scalar_select %p30, %s32, %s21
      %p34 = scmp.ge.s32.totalorder %s33, 1
      %s35 = scalar_select %p34, 0, %s33
      %s36 = sadd.s32 1, %s20
      %s37 = scalar_select %p34, %s36, %s20
      %p38 = scmp.ge.s32.totalorder %s37, 3
      %s39 = scalar_select %p38, 0, %s37
      %s41 = sadd.s32 %s40, 1
      %p44 = scmp.eq.s32.totalorder %s13, 2
      %p45 = scmp.ne.s32.totalorder %s40, %s42
      %p46 = scmp.eq.s32.totalorder %s13, 0
      %p47 = por %p45, %p46
      %p48 = scmp.ne.s32.totalorder %s40, %s42
      %p49 = scmp.eq.s32.totalorder %s18, 2
      %p50 = por %p48, %p49
      %p51 = scmp.ne.s32.totalorder %s42, %s43
      %p52 = scmp.eq.s32.totalorder %s18, 0
      %p53 = por %p51, %p52
      %p54 = scmp.ne.s32.totalorder %s42, %s43
      %p55 = scmp.eq.s32.totalorder %s19, 2
      %p56 = por %p54, %p55
      %p58 = scmp.ne.s32.totalorder %s43, %s57
      %p59 = scmp.eq.s32.totalorder %s19, 0
      %p60 = por %p58, %p59
      %s61 = sadd.s32 %s20, %s21
      %s62 = sadd.s32 %s39, %s35
      %s63 = ssub.s32 %s61, %s62
      %s64 = ssub.s32 %s22, %s31
      %s65 = sor.u32 %s63, %s64
      %p66 = scmp.eq.s32.totalorder %s65, 0
      %s68 = sadd.s32 %s67, 1
      %s69 = scalar_select %p66, %s67, %s68
      %p72 = pneg %p66
      %p73 = scmp.eq.s32.totalorder %s13, 2
      %p74 = por %p72, %p73
      %p75 = scmp.ne.s32.totalorder %s67, %s70
      %p76 = scmp.eq.s32.totalorder %s13, 0
      %p77 = por %p75, %p76
      %p78 = scmp.ne.s32.totalorder %s67, %s70
      %p79 = scmp.eq.s32.totalorder %s18, 2
      %p80 = por %p78, %p79
      %p81 = scmp.ne.s32.totalorder %s70, %s71
      %p82 = scmp.eq.s32.totalorder %s18, 0
      %p83 = por %p81, %p82
      %p84 = scmp.ne.s32.totalorder %s70, %s71
      %p85 = scmp.eq.s32.totalorder %s19, 2
      %p86 = por %p84, %p85
      %p88 = scmp.ne.s32.totalorder %s71, %s87
      %p89 = scmp.eq.s32.totalorder %s19, 0
      %p90 = por %p88, %p89
      %s92 = sadd.s32 %s91, 1
      %p95 = scmp.eq.s32.totalorder %s13, 2
      %p96 = scmp.ne.s32.totalorder %s91, %s93
      %p97 = scmp.eq.s32.totalorder %s13, 0
      %p98 = por %p96, %p97
      %p99 = scmp.ne.s32.totalorder %s91, %s93
      %p100 = scmp.eq.s32.totalorder %s18, 2
      %p101 = por %p99, %p100
      %p102 = scmp.ne.s32.totalorder %s93, %s94
      %p103 = scmp.eq.s32.totalorder %s18, 0
      %p104 = por %p102, %p103
      %p105 = scmp.ne.s32.totalorder %s93, %s94
      %p106 = scmp.eq.s32.totalorder %s19, 2
      %p107 = por %p105, %p106
      %p109 = scmp.ne.s32.totalorder %s94, %s108
      %p110 = scmp.eq.s32.totalorder %s19, 0
      %p111 = por %p109, %p110
      %s112 = sadd.s32 %s20, %s21
      %s113 = sadd.s32 %s39, %s35
      %s114 = ssub.s32 %s112, %s113
      %p115 = scmp.eq.s32.totalorder %s114, 0
      %s117 = sadd.s32 %s116, 1
      %s118 = scalar_select %p115, %s116, %s117
      %p121 = pneg %p115
      %p122 = scmp.eq.s32.totalorder %s13, 2
      %p123 = por %p121, %p122
      %p124 = scmp.ne.s32.totalorder %s116, %s119
      %p125 = scmp.eq.s32.totalorder %s13, 0
      %p126 = por %p124, %p125
      %p127 = scmp.ne.s32.totalorder %s116, %s119
      %p128 = scmp.eq.s32.totalorder %s18, 2
      %p129 = por %p127, %p128
      %p130 = scmp.ne.s32.totalorder %s119, %s120
      %p131 = scmp.eq.s32.totalorder %s18, 0
      %p132 = por %p130, %p131
      %p133 = scmp.ne.s32.totalorder %s119, %s120
      %p134 = scmp.eq.s32.totalorder %s19, 2
      %p135 = por %p133, %p134
      %p137 = scmp.ne.s32.totalorder %s120, %s136
      %p138 = scmp.eq.s32.totalorder %s19, 0
      %p139 = por %p137, %p138
      %s140 = sadd.s32 %s20, %s21
      %s141 = sadd.s32 %s39, %s35
      %s142 = ssub.s32 %s140, %s141
      %p143 = scmp.eq.s32.totalorder %s142, 0
      %s145 = sadd.s32 %s144, 1
      %s146 = scalar_select %p143, %s144, %s145
      %p149 = pneg %p143
      %p150 = scmp.eq.s32.totalorder %s13, 2
      %p151 = por %p149, %p150
      %p152 = scmp.ne.s32.totalorder %s144, %s147
      %p153 = scmp.eq.s32.totalorder %s13, 0
      %p154 = por %p152, %p153
      %p155 = scmp.ne.s32.totalorder %s144, %s147
      %p156 = scmp.eq.s32.totalorder %s18, 2
      %p157 = por %p155, %p156
      %p158 = scmp.ne.s32.totalorder %s147, %s148
      %p159 = scmp.eq.s32.totalorder %s18, 0
      %p160 = por %p158, %p159
      %p161 = scmp.ne.s32.totalorder %s147, %s148
      %p162 = scmp.eq.s32.totalorder %s19, 2
      %p163 = por %p161, %p162
      %p165 = scmp.ne.s32.totalorder %s148, %s164
      %p166 = scmp.eq.s32.totalorder %s19, 0
      %p167 = por %p165, %p166
      %s169 = sadd.s32 %s168, 1
      %p172 = scmp.eq.s32.totalorder %s13, 2
      %p173 = scmp.ne.s32.totalorder %s168, %s170
      %p174 = scmp.eq.s32.totalorder %s13, 0
      %p175 = por %p173, %p174
      %p176 = scmp.ne.s32.totalorder %s168, %s170
      %p177 = scmp.eq.s32.totalorder %s18, 2
      %p178 = por %p176, %p177
      %p179 = scmp.ne.s32.totalorder %s170, %s171
      %p180 = scmp.eq.s32.totalorder %s18, 0
      %p181 = por %p179, %p180
      %p182 = scmp.ne.s32.totalorder %s170, %s171
      %p183 = scmp.eq.s32.totalorder %s19, 2
      %p184 = por %p182, %p183
      %p186 = scmp.ne.s32.totalorder %s171, %s185
      %p187 = scmp.eq.s32.totalorder %s19, 0
      %p188 = por %p186, %p187
      %s189 = sadd.s32 %s20, %s21
      %s190 = sadd.s32 %s39, %s35
      %s191 = ssub.s32 %s189, %s190
      %p192 = scmp.eq.s32.totalorder %s191, 0
      %s194 = sadd.s32 %s193, 1
      %s195 = scalar_select %p192, %s193, %s194
      %p198 = pneg %p192
      %p199 = scmp.eq.s32.totalorder %s13, 2
      %p200 = por %p198, %p199
      %p201 = scmp.ne.s32.totalorder %s193, %s196
      %p202 = scmp.eq.s32.totalorder %s13, 0
      %p203 = por %p201, %p202
      %p204 = scmp.ne.s32.totalorder %s193, %s196
      %p205 = scmp.eq.s32.totalorder %s18, 2
      %p206 = por %p204, %p205
      %p207 = scmp.ne.s32.totalorder %s196, %s197
      %p208 = scmp.eq.s32.totalorder %s18, 0
      %p209 = por %p207, %p208
      %p210 = scmp.ne.s32.totalorder %s196, %s197
      %p211 = scmp.eq.s32.totalorder %s19, 2
      %p212 = por %p210, %p211
      %p214 = scmp.ne.s32.totalorder %s197, %s213
      %p215 = scmp.eq.s32.totalorder %s19, 0
      %p216 = por %p214, %p215
      %p217 = scmp.le.s32.totalorder 1, %s13
      %p218 = scmp.lt.s32.totalorder %s13, 4
      %p219 = pnand %p217, %p218
      %p220 = pneg %p219
      // Predicated region
      $region9: #{_forward.8} parent=5 // pred_check
        _
      $region10: #{_forward.8} parent=5 // pred_check_branch
        %222 = sbr.rel (%p219) target = $region12
      $region11: #{_forward.8} parent=5 // pred_region
        %s223 = ssub.s32 %s13, 1
        // Predicated region
        $region13: #{_forward.8} parent=11 // pred_check
          %p224 = pneg %p53
        $region14: #{_forward.8} parent=11 // pred_check_branch
          %226 = sbr.rel (%p224) target = $region16
        $region15: #{_forward.8} parent=11 // pred_region
          %s228 = ssub.s32 16, 16
          %229 = vsyncadd [#allocation4], %s228
          %s231 = sshll.u32 %s0, 4
          %s232 = int_to_ptr.vmem [resolvable:$true] %s231
          %234 = dma.vmem_to_smem %s232, 16, [#allocation3], [#allocation4]
        $region16: #{_forward.8} parent=11 // pred_fallthru
          _
        // Predicated region
        $region17: #{_forward.8} parent=11 // pred_check
          %p235 = pneg %p104
        $region18: #{_forward.8} parent=11 // pred_check_branch
          %237 = sbr.rel (%p235) target = $region20
        $region19: #{_forward.8} parent=11 // pred_region
          _
        $region20: #{_forward.8} parent=11 // pred_fallthru
          _
        // Predicated region
        $region21: #{_forward.8} parent=11 // pred_check
          %p238 = pneg %p181
        $region22: #{_forward.8} parent=11 // pred_check_branch
          %240 = sbr.rel (%p238) target = $region24
        $region23: #{_forward.8} parent=11 // pred_region
          _
        $region24: #{_forward.8} parent=11 // pred_fallthru
          _
      $region12: #{_forward.8} parent=5 // pred_fallthru
        _
      %p241 = scmp.lt.s32.totalorder %s13, 3
      // Predicated region
      $region25: #{_forward.8} parent=5 // pred_check
        %p242 = pneg %p241
      $region26: #{_forward.8} parent=5 // pred_check_branch
        %244 = sbr.rel (%p242) target = $region28
      $region27: #{_forward.8} parent=5 // pred_region
        // Predicated region
        $region29: #{_forward.8} parent=27 // pred_check
          %p245 = pneg %p77
        $region30: #{_forward.8} parent=27 // pred_check_branch
          %247 = sbr.rel (%p245) target = $region32
        $region31: #{_forward.8} parent=27 // pred_region
          %s248 = sadd.s32 %s20, %s21
          %s249 = smul.u32 16, %s248
          %p250 = scmp.lt.s32.totalorder %s249, 47
          %s251 = scalar_select %p250, %s249, 47
          %p252 = scmp.lt.s32.totalorder %s22, 0
          %s253 = scalar_select %p252, %s22, 0
          %s254 = sadd.s32 %s253, %s251
          %s255 = smul.addr %s254, 4
          %s256 = scalar_lea.vmem %s1, %s255
          %s257 = sadd.s32 %s20, %s21
          %s258 = smul.u32 16, %s257
        $region32: #{_forward.8} parent=27 // pred_fallthru
          _
        // Predicated region
        $region33: #{_forward.8} parent=27 // pred_check
          %p259 = pneg %p126
        $region34: #{_forward.8} parent=27 // pred_check_branch
          %261 = sbr.rel (%p259) target = $region36
        $region35: #{_forward.8} parent=27 // pred_region
          %s262 = sand.u32 %s116, 1
          %s263 = sand.u32 %s116, 1
          %s264 = smul.addr %s263, 384
          %s265 = scalar_lea.vmem [#allocation5], %s264
          %s266 = sadd.s32 %s20, %s21
          %s267 = smul.u32 16, %s266
          %s268 = smul.addr %s267, 8
          %s269 = scalar_lea.vmem %s3, %s268
          // Predicated region
          $region37: #{_forward.8} parent=35 // pred_check
            _
          $region38: #{_forward.8} parent=35 // pred_check_branch
            %271 = sbr.rel (0) target = $region40
          $region39: #{_forward.8} parent=35 // pred_region
            // Predicated region
            $region41: #{_forward.8} parent=39 // pred_check
              _
            $region42: #{_forward.8} parent=39 // pred_check_branch
              %273 = sbr.rel (0) target = $region44
            $region43: #{_forward.8} parent=39 // pred_region
              // Predicated region
              $region56: #{_forward.8} parent=43 // pred_check
                _
              $region57: #{_forward.8} parent=43 // pred_check_branch
                %382 = sbr.rel (0) target = $region59
              $region58: #{_forward.8} parent=43 // pred_region
                loop: start=0, step=1, limit=1
                $region60: #{_forward.8} parent=58 // loop_pre_header
                  _
                $region61: #{_forward.8} parent=58 // loop_header
                  %s384 = sphi 0, %s388
                  %p385 = scmp.ge.s32.totalorder %s384, 1
                  %s389 = sphi %s269, %s269
                  %s390 = sphi %s265, %s265
                $region62: #{_forward.8} parent=58 // loop_header_branch
                  %387 = sbr.rel (%p385) target = $region66
                $region63: #{_forward.8} parent=58 // loop_body
                  %v391 = vld [vmem:[%s389] sm:$0xff]
                  %392 = vst [vmem:[%s390] sm:$0xff] %v391
                  %v393 = vld [vmem:[%s389 + $0x8] sm:$0xff]
                  %394 = vst [vmem:[%s390 + $0x8] sm:$0xff] %v393
                  %v395 = vld [vmem:[%s389 + $0x10] sm:$0xff]
                  %396 = vst [vmem:[%s390 + $0x10] sm:$0xff] %v395
                  %v397 = vld [vmem:[%s389 + $0x18] sm:$0xff]
                  %398 = vst [vmem:[%s390 + $0x18] sm:$0xff] %v397
                  %v399 = vld [vmem:[%s389 + $0x20] sm:$0xff]
                  %400 = vst [vmem:[%s390 + $0x20] sm:$0xff] %v399
                  %v401 = vld [vmem:[%s389 + $0x28] sm:$0xff]
                  %402 = vst [vmem:[%s390 + $0x28] sm:$0xff] %v401
                  %v403 = vld [vmem:[%s389 + $0x30] sm:$0xff]
                  %404 = vst [vmem:[%s390 + $0x30] sm:$0xff] %v403
                  %v405 = vld [vmem:[%s389 + $0x38] sm:$0xff]
                  %406 = vst [vmem:[%s390 + $0x38] sm:$0xff] %v405
                  %v407 = vld [vmem:[%s389 + $0x40] sm:$0xff]
                  %408 = vst [vmem:[%s390 + $0x40] sm:$0xff] %v407
                  %v409 = vld [vmem:[%s389 + $0x48] sm:$0xff]
                  %410 = vst [vmem:[%s390 + $0x48] sm:$0xff] %v409
                  %v411 = vld [vmem:[%s389 + $0x50] sm:$0xff]
                  %412 = vst [vmem:[%s390 + $0x50] sm:$0xff] %v411
                  %v413 = vld [vmem:[%s389 + $0x58] sm:$0xff]
                  %414 = vst [vmem:[%s390 + $0x58] sm:$0xff] %v413
                  %v415 = vld [vmem:[%s389 + $0x60] sm:$0xff]
                  %416 = vst [vmem:[%s390 + $0x60] sm:$0xff] %v415
                  %v417 = vld [vmem:[%s389 + $0x68] sm:$0xff]
                  %418 = vst [vmem:[%s390 + $0x68] sm:$0xff] %v417
                  %v419 = vld [vmem:[%s389 + $0x70] sm:$0xff]
                  %420 = vst [vmem:[%s390 + $0x70] sm:$0xff] %v419
                  %v421 = vld [vmem:[%s389 + $0x78] sm:$0xff]
                  %422 = vst [vmem:[%s390 + $0x78] sm:$0xff] %v421
                  %v423 = vld [vmem:[%s389 + $0x180] sm:$0xff]
                  %424 = vst [vmem:[%s390 + $0x80] sm:$0xff] %v423
                  %v425 = vld [vmem:[%s389 + $0x188] sm:$0xff]
                  %426 = vst [vmem:[%s390 + $0x88] sm:$0xff] %v425
                  %v427 = vld [vmem:[%s389 + $0x190] sm:$0xff]
                  %428 = vst [vmem:[%s390 + $0x90] sm:$0xff] %v427
                  %v429 = vld [vmem:[%s389 + $0x198] sm:$0xff]
                  %430 = vst [vmem:[%s390 + $0x98] sm:$0xff] %v429
                  %v431 = vld [vmem:[%s389 + $0x1a0] sm:$0xff]
                  %432 = vst [vmem:[%s390 + $0xa0] sm:$0xff] %v431
                  %v433 = vld [vmem:[%s389 + $0x1a8] sm:$0xff]
                  %434 = vst [vmem:[%s390 + $0xa8] sm:$0xff] %v433
                  %v435 = vld [vmem:[%s389 + $0x1b0] sm:$0xff]
                  %436 = vst [vmem:[%s390 + $0xb0] sm:$0xff] %v435
                  %v437 = vld [vmem:[%s389 + $0x1b8] sm:$0xff]
                  %438 = vst [vmem:[%s390 + $0xb8] sm:$0xff] %v437
                  %v439 = vld [vmem:[%s389 + $0x1c0] sm:$0xff]
                  %440 = vst [vmem:[%s390 + $0xc0] sm:$0xff] %v439
                  %v441 = vld [vmem:[%s389 + $0x1c8] sm:$0xff]
                  %442 = vst [vmem:[%s390 + $0xc8] sm:$0xff] %v441
                  %v443 = vld [vmem:[%s389 + $0x1d0] sm:$0xff]
                  %444 = vst [vmem:[%s390 + $0xd0] sm:$0xff] %v443
                  %v445 = vld [vmem:[%s389 + $0x1d8] sm:$0xff]
                  %446 = vst [vmem:[%s390 + $0xd8] sm:$0xff] %v445
                  %v447 = vld [vmem:[%s389 + $0x1e0] sm:$0xff]
                  %448 = vst [vmem:[%s390 + $0xe0] sm:$0xff] %v447
                  %v449 = vld [vmem:[%s389 + $0x1e8] sm:$0xff]
                  %450 = vst [vmem:[%s390 + $0xe8] sm:$0xff] %v449
                  %v451 = vld [vmem:[%s389 + $0x1f0] sm:$0xff]
                  %452 = vst [vmem:[%s390 + $0xf0] sm:$0xff] %v451
                  %v453 = vld [vmem:[%s389 + $0x1f8] sm:$0xff]
                  %454 = vst [vmem:[%s390 + $0xf8] sm:$0xff] %v453
                  %v455 = vld [vmem:[%s389 + $0x300] sm:$0xff]
                  %456 = vst [vmem:[%s390 + $0x100] sm:$0xff] %v455
                  %v457 = vld [vmem:[%s389 + $0x308] sm:$0xff]
                  %458 = vst [vmem:[%s390 + $0x108] sm:$0xff] %v457
                  %v459 = vld [vmem:[%s389 + $0x310] sm:$0xff]
                  %460 = vst [vmem:[%s390 + $0x110] sm:$0xff] %v459
                  %v461 = vld [vmem:[%s389 + $0x318] sm:$0xff]
                  %462 = vst [vmem:[%s390 + $0x118] sm:$0xff] %v461
                  %v463 = vld [vmem:[%s389 + $0x320] sm:$0xff]
                  %464 = vst [vmem:[%s390 + $0x120] sm:$0xff] %v463
                  %v465 = vld [vmem:[%s389 + $0x328] sm:$0xff]
                  %466 = vst [vmem:[%s390 + $0x128] sm:$0xff] %v465
                  %v467 = vld [vmem:[%s389 + $0x330] sm:$0xff]
                  %468 = vst [vmem:[%s390 + $0x130] sm:$0xff] %v467
                  %v469 = vld [vmem:[%s389 + $0x338] sm:$0xff]
                  %470 = vst [vmem:[%s390 + $0x138] sm:$0xff] %v469
                  %v471 = vld [vmem:[%s389 + $0x340] sm:$0xff]
                  %472 = vst [vmem:[%s390 + $0x140] sm:$0xff] %v471
                  %v473 = vld [vmem:[%s389 + $0x348] sm:$0xff]
                  %474 = vst [vmem:[%s390 + $0x148] sm:$0xff] %v473
                  %v475 = vld [vmem:[%s389 + $0x350] sm:$0xff]
                  %476 = vst [vmem:[%s390 + $0x150] sm:$0xff] %v475
                  %v477 = vld [vmem:[%s389 + $0x358] sm:$0xff]
                  %478 = vst [vmem:[%s390 + $0x158] sm:$0xff] %v477
                  %v479 = vld [vmem:[%s389 + $0x360] sm:$0xff]
                  %480 = vst [vmem:[%s390 + $0x160] sm:$0xff] %v479
                  %v481 = vld [vmem:[%s389 + $0x368] sm:$0xff]
                  %482 = vst [vmem:[%s390 + $0x168] sm:$0xff] %v481
                  %v483 = vld [vmem:[%s389 + $0x370] sm:$0xff]
                  %484 = vst [vmem:[%s390 + $0x170] sm:$0xff] %v483
                  %v485 = vld [vmem:[%s389 + $0x378] sm:$0xff]
                  %486 = vst [vmem:[%s390 + $0x178] sm:$0xff] %v485
                $region64: #{_forward.8} parent=58 // loop_footer
                  %s388 = sadd.s32 1, %s384
                $region65: #{_forward.8} parent=58 // loop_footer_branch
                  %383 = sbr.rel target = $region61
                $region66: #{_forward.8} parent=58 // loop_exit
                  _
              $region59: #{_forward.8} parent=43 // pred_fallthru
                _
              // Predicated region
              $region67: #{_forward.8} parent=43 // pred_check
                _
              $region68: #{_forward.8} parent=43 // pred_check_branch
                %488 = sbr.rel target = $region70
              $region69: #{_forward.8} parent=43 // pred_region
                _
              $region70: #{_forward.8} parent=43 // pred_fallthru
                _
            $region44: #{_forward.8} parent=39 // pred_fallthru
              _
            // Predicated region
            $region45: #{_forward.8} parent=39 // pred_check
              _
            $region46: #{_forward.8} parent=39 // pred_check_branch
              %275 = sbr.rel target = $region48
            $region47: #{_forward.8} parent=39 // pred_region
              loop: start=0, step=1, limit=1
              $region49: #{_forward.8} parent=47 // loop_pre_header
                _
              $region50: #{_forward.8} parent=47 // loop_header
                %s278 = sphi 0, %s282
                %p279 = scmp.ge.s32.totalorder %s278, 1
                %s283 = sphi %s269, %s269
                %s284 = sphi %s265, %s265
              $region51: #{_forward.8} parent=47 // loop_header_branch
                %281 = sbr.rel (%p279) target = $region55
              $region52: #{_forward.8} parent=47 // loop_body
                %v285 = vld [vmem:[%s283] sm:$0xff]
                %286 = vst [vmem:[%s284] sm:$0xff] %v285
                %v287 = vld [vmem:[%s283 + $0x8] sm:$0xff]
                %288 = vst [vmem:[%s284 + $0x8] sm:$0xff] %v287
                %v289 = vld [vmem:[%s283 + $0x10] sm:$0xff]
                %290 = vst [vmem:[%s284 + $0x10] sm:$0xff] %v289
                %v291 = vld [vmem:[%s283 + $0x18] sm:$0xff]
                %292 = vst [vmem:[%s284 + $0x18] sm:$0xff] %v291
                %v293 = vld [vmem:[%s283 + $0x20] sm:$0xff]
                %294 = vst [vmem:[%s284 + $0x20] sm:$0xff] %v293
                %v295 = vld [vmem:[%s283 + $0x28] sm:$0xff]
                %296 = vst [vmem:[%s284 + $0x28] sm:$0xff] %v295
                %v297 = vld [vmem:[%s283 + $0x30] sm:$0xff]
                %298 = vst [vmem:[%s284 + $0x30] sm:$0xff] %v297
                %v299 = vld [vmem:[%s283 + $0x38] sm:$0xff]
                %300 = vst [vmem:[%s284 + $0x38] sm:$0xff] %v299
                %v301 = vld [vmem:[%s283 + $0x40] sm:$0xff]
                %302 = vst [vmem:[%s284 + $0x40] sm:$0xff] %v301
                %v303 = vld [vmem:[%s283 + $0x48] sm:$0xff]
                %304 = vst [vmem:[%s284 + $0x48] sm:$0xff] %v303
                %v305 = vld [vmem:[%s283 + $0x50] sm:$0xff]
                %306 = vst [vmem:[%s284 + $0x50] sm:$0xff] %v305
                %v307 = vld [vmem:[%s283 + $0x58] sm:$0xff]
                %308 = vst [vmem:[%s284 + $0x58] sm:$0xff] %v307
                %v309 = vld [vmem:[%s283 + $0x60] sm:$0xff]
                %310 = vst [vmem:[%s284 + $0x60] sm:$0xff] %v309
                %v311 = vld [vmem:[%s283 + $0x68] sm:$0xff]
                %312 = vst [vmem:[%s284 + $0x68] sm:$0xff] %v311
                %v313 = vld [vmem:[%s283 + $0x70] sm:$0xff]
                %314 = vst [vmem:[%s284 + $0x70] sm:$0xff] %v313
                %v315 = vld [vmem:[%s283 + $0x78] sm:$0xff]
                %316 = vst [vmem:[%s284 + $0x78] sm:$0xff] %v315
                %v317 = vld [vmem:[%s283 + $0x180] sm:$0xff]
                %318 = vst [vmem:[%s284 + $0x80] sm:$0xff] %v317
                %v319 = vld [vmem:[%s283 + $0x188] sm:$0xff]
                %320 = vst [vmem:[%s284 + $0x88] sm:$0xff] %v319
                %v321 = vld [vmem:[%s283 + $0x190] sm:$0xff]
                %322 = vst [vmem:[%s284 + $0x90] sm:$0xff] %v321
                %v323 = vld [vmem:[%s283 + $0x198] sm:$0xff]
                %324 = vst [vmem:[%s284 + $0x98] sm:$0xff] %v323
                %v325 = vld [vmem:[%s283 + $0x1a0] sm:$0xff]
                %326 = vst [vmem:[%s284 + $0xa0] sm:$0xff] %v325
                %v327 = vld [vmem:[%s283 + $0x1a8] sm:$0xff]
                %328 = vst [vmem:[%s284 + $0xa8] sm:$0xff] %v327
                %v329 = vld [vmem:[%s283 + $0x1b0] sm:$0xff]
                %330 = vst [vmem:[%s284 + $0xb0] sm:$0xff] %v329
                %v331 = vld [vmem:[%s283 + $0x1b8] sm:$0xff]
                %332 = vst [vmem:[%s284 + $0xb8] sm:$0xff] %v331
                %v333 = vld [vmem:[%s283 + $0x1c0] sm:$0xff]
                %334 = vst [vmem:[%s284 + $0xc0] sm:$0xff] %v333
                %v335 = vld [vmem:[%s283 + $0x1c8] sm:$0xff]
                %336 = vst [vmem:[%s284 + $0xc8] sm:$0xff] %v335
                %v337 = vld [vmem:[%s283 + $0x1d0] sm:$0xff]
                %338 = vst [vmem:[%s284 + $0xd0] sm:$0xff] %v337
                %v339 = vld [vmem:[%s283 + $0x1d8] sm:$0xff]
                %340 = vst [vmem:[%s284 + $0xd8] sm:$0xff] %v339
                %v341 = vld [vmem:[%s283 + $0x1e0] sm:$0xff]
                %342 = vst [vmem:[%s284 + $0xe0] sm:$0xff] %v341
                %v343 = vld [vmem:[%s283 + $0x1e8] sm:$0xff]
                %344 = vst [vmem:[%s284 + $0xe8] sm:$0xff] %v343
                %v345 = vld [vmem:[%s283 + $0x1f0] sm:$0xff]
                %346 = vst [vmem:[%s284 + $0xf0] sm:$0xff] %v345
                %v347 = vld [vmem:[%s283 + $0x1f8] sm:$0xff]
                %348 = vst [vmem:[%s284 + $0xf8] sm:$0xff] %v347
                %v349 = vld [vmem:[%s283 + $0x300] sm:$0xff]
                %350 = vst [vmem:[%s284 + $0x100] sm:$0xff] %v349
                %v351 = vld [vmem:[%s283 + $0x308] sm:$0xff]
                %352 = vst [vmem:[%s284 + $0x108] sm:$0xff] %v351
                %v353 = vld [vmem:[%s283 + $0x310] sm:$0xff]
                %354 = vst [vmem:[%s284 + $0x110] sm:$0xff] %v353
                %v355 = vld [vmem:[%s283 + $0x318] sm:$0xff]
                %356 = vst [vmem:[%s284 + $0x118] sm:$0xff] %v355
                %v357 = vld [vmem:[%s283 + $0x320] sm:$0xff]
                %358 = vst [vmem:[%s284 + $0x120] sm:$0xff] %v357
                %v359 = vld [vmem:[%s283 + $0x328] sm:$0xff]
                %360 = vst [vmem:[%s284 + $0x128] sm:$0xff] %v359
                %v361 = vld [vmem:[%s283 + $0x330] sm:$0xff]
                %362 = vst [vmem:[%s284 + $0x130] sm:$0xff] %v361
                %v363 = vld [vmem:[%s283 + $0x338] sm:$0xff]
                %364 = vst [vmem:[%s284 + $0x138] sm:$0xff] %v363
                %v365 = vld [vmem:[%s283 + $0x340] sm:$0xff]
                %366 = vst [vmem:[%s284 + $0x140] sm:$0xff] %v365
                %v367 = vld [vmem:[%s283 + $0x348] sm:$0xff]
                %368 = vst [vmem:[%s284 + $0x148] sm:$0xff] %v367
                %v369 = vld [vmem:[%s283 + $0x350] sm:$0xff]
                %370 = vst [vmem:[%s284 + $0x150] sm:$0xff] %v369
                %v371 = vld [vmem:[%s283 + $0x358] sm:$0xff]
                %372 = vst [vmem:[%s284 + $0x158] sm:$0xff] %v371
                %v373 = vld [vmem:[%s283 + $0x360] sm:$0xff]
                %374 = vst [vmem:[%s284 + $0x160] sm:$0xff] %v373
                %v375 = vld [vmem:[%s283 + $0x368] sm:$0xff]
                %376 = vst [vmem:[%s284 + $0x168] sm:$0xff] %v375
                %v377 = vld [vmem:[%s283 + $0x370] sm:$0xff]
                %378 = vst [vmem:[%s284 + $0x170] sm:$0xff] %v377
                %v379 = vld [vmem:[%s283 + $0x378] sm:$0xff]
                %380 = vst [vmem:[%s284 + $0x178] sm:$0xff] %v379
              $region53: #{_forward.8} parent=47 // loop_footer
                %s282 = sadd.s32 1, %s278
              $region54: #{_forward.8} parent=47 // loop_footer_branch
                %277 = sbr.rel target = $region50
              $region55: #{_forward.8} parent=47 // loop_exit
                _
            $region48: #{_forward.8} parent=39 // pred_fallthru
              _
          $region40: #{_forward.8} parent=35 // pred_fallthru
            _
          %489 = vnop
        $region36: #{_forward.8} parent=27 // pred_fallthru
          _
        // Predicated region
        $region71: #{_forward.8} parent=27 // pred_check
          %p490 = pneg %p154
        $region72: #{_forward.8} parent=27 // pred_check_branch
          %492 = sbr.rel (%p490) target = $region74
        $region73: #{_forward.8} parent=27 // pred_region
          %s493 = sadd.s32 %s20, %s21
          %s494 = smul.u32 16, %s493
          %p495 = scmp.lt.s32.totalorder %s494, 47
          %s496 = scalar_select %p495, %s494, 47
          %s497 = smul.addr %s496, 8
          %s498 = scalar_lea.vmem %s4, %s497
          %s499 = sadd.s32 %s20, %s21
          %s500 = smul.u32 16, %s499
        $region74: #{_forward.8} parent=27 // pred_fallthru
          _
      $region28: #{_forward.8} parent=5 // pred_fallthru
        _
      %p501 = scmp.le.s32.totalorder 1, %s13
      %p502 = scmp.lt.s32.totalorder %s13, 4
      %p503 = pnand %p501, %p502
      %p504 = pneg %p503
      // Predicated region
      $region75: #{_forward.8} parent=5 // pred_check
        _
      $region76: #{_forward.8} parent=5 // pred_check_branch
        %506 = sbr.rel (%p503) target = $region78
      $region77: #{_forward.8} parent=5 // pred_region
        %s507 = ssub.s32 %s13, 1
        // Predicated region
        $region79: #{_forward.8} parent=77 // pred_check
          %p508 = pneg %p53
        $region80: #{_forward.8} parent=77 // pred_check_branch
          %510 = sbr.rel (%p508) target = $region82
        $region81: #{_forward.8} parent=77 // pred_region
          %511 = dma.done [#allocation4], 16
        $region82: #{_forward.8} parent=77 // pred_fallthru
          _
        %s512 = sand.u32 %s119, 1
        %s513 = sand.u32 %s119, 1
        %s514 = smul.addr %s513, 384
        %s515 = scalar_lea.vmem [#allocation5], %s514
        // Predicated region
        $region83: #{_forward.8} parent=77 // pred_check
          %p516 = pneg %p132
        $region84: #{_forward.8} parent=77 // pred_check_branch
          %518 = sbr.rel (%p516) target = $region86
        $region85: #{_forward.8} parent=77 // pred_region
          _
        $region86: #{_forward.8} parent=77 // pred_fallthru
          _
        %519 = sfence
        %p520 = pneg %p53
        %p521 = pneg %p50
        %s522 = sadd.s32 %s23, %s24
        %s523 = smul.u32 16, %s522
        %p524 = scmp.lt.s32.totalorder %s523, 47
        %s525 = scalar_select %p524, %s523, 47
        %p526 = scmp.lt.s32.totalorder %s25, 0
        %s527 = scalar_select %p526, %s25, 0
        %s528 = sadd.s32 %s527, %s525
        %s529 = smul.addr %s528, 4
        %s530 = scalar_lea.vmem %s1, %s529
        %p531 = pneg %p83
        %p532 = pneg %p80
        %p533 = pneg %p104
        %p534 = pneg %p101
        %s535 = sand.u32 %s119, 1
        %s536 = sand.u32 %s119, 1
        %s537 = smul.addr %s536, 384
        %s538 = scalar_lea.vmem [#allocation5], %s537
        %p539 = pneg %p132
        %p540 = pneg %p129
        %s541 = sadd.s32 %s23, %s24
        %s542 = smul.u32 16, %s541
        %p543 = scmp.lt.s32.totalorder %s542, 47
        %s544 = scalar_select %p543, %s542, 47
        %s545 = smul.addr %s544, 8
        %s546 = scalar_lea.vmem %s4, %s545
        %p547 = pneg %p160
        %p548 = pneg %p157
        %p549 = pneg %p181
        %p550 = pneg %p178
        %p551 = pneg %p209
        %p552 = pneg %p206
        %s553 = sadd.s32 %s23, %s24
        %s554 = smul.u32 16, %s553
        %p555 = scmp.lt.s32.totalorder %s554, 47
        %s556 = scalar_select %p555, %s554, 47
        %s557 = smul.addr %s556, 4
        %s558 = scalar_lea.vmem %s6, %s557
        %s559 = sadd.s32 %s23, %s24
        %s560 = smul.u32 16, %s559
        %p561 = scmp.lt.s32.totalorder %s560, 47
        %s562 = scalar_select %p561, %s560, 47
        %p563 = scmp.lt.s32.totalorder %s25, 0
        %s564 = scalar_select %p563, %s25, 0
        %s565 = sadd.s32 %s564, %s562
        %s566 = smul.addr %s565, 4
        %s567 = scalar_lea.vmem %s1, %s566
        %s568 = sadd.s32 %s23, %s24
        %s569 = smul.u32 16, %s568
        %s570 = sadd.s32 %s23, %s24
        %s571 = smul.u32 16, %s570
        %s572 = sadd.s32 %s23, %s24
        %s573 = smul.u32 16, %s572
        %p574 = scmp.lt.s32.totalorder %s573, 47
        %s575 = scalar_select %p574, %s573, 47
        %s576 = smul.addr %s575, 8
        %s577 = scalar_lea.vmem %s4, %s576
        %s578 = sadd.s32 %s23, %s24
        %s579 = smul.u32 16, %s578
        %s580 = sadd.s32 %s23, %s24
        %s581 = smul.u32 16, %s580
        %p582 = scmp.lt.s32.totalorder %s581, 47
        %s583 = scalar_select %p582, %s581, 47
        %s584 = smul.addr %s583, 4
        %s585 = scalar_lea.vmem %s6, %s584
        %s586 = sadd.s32 %s23, %s24
        %s587 = smul.u32 16, %s586
        %p589 = scmp.eq.s32.totalorder %s25, 0
        // Predicated region
        $region87: #{_forward.8} parent=77 // pred_check
          %p590 = pneg %p589
        $region88: #{_forward.8} parent=77 // pred_check_branch
          %592 = sbr.rel (%p590) target = $region90
        $region89: #{_forward.8} parent=77 // pred_region
          %593 = vst [vmem:[#allocation2] sm:$0xff] 0.0
          %594 = vst [vmem:[#allocation2 + $0x8] sm:$0xff] 0.0
          %595 = vst [vmem:[#allocation2 + $0x10] sm:$0xff] 0.0
          %596 = vst [vmem:[#allocation2 + $0x18] sm:$0xff] 0.0
          %597 = vst [vmem:[#allocation2 + $0x20] sm:$0xff] 0.0
          %598 = vst [vmem:[#allocation2 + $0x28] sm:$0xff] 0.0
          %599 = vst [vmem:[#allocation2 + $0x30] sm:$0xff] 0.0
          %600 = vst [vmem:[#allocation2 + $0x38] sm:$0xff] 0.0
          %601 = vst [vmem:[#allocation2 + $0x40] sm:$0xff] 0.0
          %602 = vst [vmem:[#allocation2 + $0x48] sm:$0xff] 0.0
          %603 = vst [vmem:[#allocation2 + $0x50] sm:$0xff] 0.0
          %604 = vst [vmem:[#allocation2 + $0x58] sm:$0xff] 0.0
          %605 = vst [vmem:[#allocation2 + $0x60] sm:$0xff] 0.0
          %606 = vst [vmem:[#allocation2 + $0x68] sm:$0xff] 0.0
          %607 = vst [vmem:[#allocation2 + $0x70] sm:$0xff] 0.0
          %608 = vst [vmem:[#allocation2 + $0x78] sm:$0xff] 0.0
        $region90: #{_forward.8} parent=77 // pred_fallthru
          _
        %s609 = smul.u32 %s23, 128
        %s610 = smul.u32 %s25, 128
        %s611 = sadd.s32 %s609, %s610
        %v612 = vld [vmem:[#allocation2] sm:$0xff]
        %v613 = vld [vmem:[#allocation2 + $0x8] sm:$0xff]
        %v614 = vld [vmem:[#allocation2 + $0x10] sm:$0xff]
        %v615 = vld [vmem:[#allocation2 + $0x18] sm:$0xff]
        %v616 = vld [vmem:[#allocation2 + $0x20] sm:$0xff]
        %v617 = vld [vmem:[#allocation2 + $0x28] sm:$0xff]
        %v618 = vld [vmem:[#allocation2 + $0x30] sm:$0xff]
        %v619 = vld [vmem:[#allocation2 + $0x38] sm:$0xff]
        %v620 = vld [vmem:[#allocation2 + $0x40] sm:$0xff]
        %v621 = vld [vmem:[#allocation2 + $0x48] sm:$0xff]
        %v622 = vld [vmem:[#allocation2 + $0x50] sm:$0xff]
        %v623 = vld [vmem:[#allocation2 + $0x58] sm:$0xff]
        %v624 = vld [vmem:[#allocation2 + $0x60] sm:$0xff]
        %v625 = vld [vmem:[#allocation2 + $0x68] sm:$0xff]
        %v626 = vld [vmem:[#allocation2 + $0x70] sm:$0xff]
        %v627 = vld [vmem:[#allocation2 + $0x78] sm:$0xff]
        %v628 = vld [vmem:[%s567] sm:$0xf]
        %v629 = vld [vmem:[%s567 + $0x4] sm:$0xf]
        %v630 = vld [vmem:[%s567 + $0x8] sm:$0xf]
        %v631 = vld [vmem:[%s567 + $0xc] sm:$0xf]
        %v632 = vld [vmem:[%s567 + $0x10] sm:$0xf]
        %v633 = vld [vmem:[%s567 + $0x14] sm:$0xf]
        %v634 = vld [vmem:[%s567 + $0x18] sm:$0xf]
        %v635 = vld [vmem:[%s567 + $0x1c] sm:$0xf]
        %v636 = vld [vmem:[%s567 + $0x20] sm:$0xf]
        %v637 = vld [vmem:[%s567 + $0x24] sm:$0xf]
        %v638 = vld [vmem:[%s567 + $0x28] sm:$0xf]
        %v639 = vld [vmem:[%s567 + $0x2c] sm:$0xf]
        %v640 = vld [vmem:[%s567 + $0x30] sm:$0xf]
        %v641 = vld [vmem:[%s567 + $0x34] sm:$0xf]
        %v642 = vld [vmem:[%s567 + $0x38] sm:$0xf]
        %v643 = vld [vmem:[%s567 + $0x3c] sm:$0xf]
        %s644 = sshra.s32 %s611, 3
        %s645 = sand.u32 %s611, 7
        %s646 = smul.addr %s644, 4
        %s647 = scalar_lea.vmem %s2, %s646
        %v648 = vld [vmem:[%s647] sm:$0xf]
        %v649 = vld [vmem:[%s647 + $0x4] sm:$0xf]
        %v650 = vld [vmem:[%s647 + $0x8] sm:$0xf]
        %v651 = vld [vmem:[%s647 + $0xc] sm:$0xf]
        %v652 = vld [vmem:[%s647 + $0x10] sm:$0xf]
        %v653 = vld [vmem:[%s647 + $0x14] sm:$0xf]
        %v654 = vld [vmem:[%s647 + $0x18] sm:$0xf]
        %v655 = vld [vmem:[%s647 + $0x1c] sm:$0xf]
        %v656 = vld [vmem:[%s647 + $0x20] sm:$0xf]
        %v657 = vld [vmem:[%s647 + $0x24] sm:$0xf]
        %v658 = vld [vmem:[%s647 + $0x28] sm:$0xf]
        %v659 = vld [vmem:[%s647 + $0x2c] sm:$0xf]
        %v660 = vld [vmem:[%s647 + $0x30] sm:$0xf]
        %v661 = vld [vmem:[%s647 + $0x34] sm:$0xf]
        %v662 = vld [vmem:[%s647 + $0x38] sm:$0xf]
        %v663 = vld [vmem:[%s647 + $0x3c] sm:$0xf]
        %v680 = vunpack.c.l.b16 %v628
        %v681 = vunpack.c.l.b16 %v629
        %v682 = vunpack.c.l.b16 %v630
        %v683 = vunpack.c.l.b16 %v631
        %v684 = vunpack.c.l.b16 %v632
        %v685 = vunpack.c.l.b16 %v633
        %v686 = vunpack.c.l.b16 %v634
        %v687 = vunpack.c.l.b16 %v635
        %v688 = vunpack.c.l.b16 %v636
        %v689 = vunpack.c.l.b16 %v637
        %v690 = vunpack.c.l.b16 %v638
        %v691 = vunpack.c.l.b16 %v639
        %v692 = vunpack.c.l.b16 %v640
        %v693 = vunpack.c.l.b16 %v641
        %v694 = vunpack.c.l.b16 %v642
        %v695 = vunpack.c.l.b16 %v643
        %v696 = vpack.c.b16 %v681, %v680
        %v697 = vpack.c.b16 %v683, %v682
        %v698 = vpack.c.b16 %v685, %v684
        %v699 = vpack.c.b16 %v687, %v686
        %v700 = vpack.c.b16 %v689, %v688
        %v701 = vpack.c.b16 %v691, %v690
        %v702 = vpack.c.b16 %v693, %v692
        %v703 = vpack.c.b16 %v695, %v694
        %v728 = vunpack.c.l.b16 %v648
        %v729 = vunpack.c.l.b16 %v649
        %v730 = vunpack.c.l.b16 %v650
        %v731 = vunpack.c.l.b16 %v651
        %v732 = vunpack.c.l.b16 %v652
        %v733 = vunpack.c.l.b16 %v653
        %v734 = vunpack.c.l.b16 %v654
        %v735 = vunpack.c.l.b16 %v655
        %v736 = vunpack.c.l.b16 %v656
        %v737 = vunpack.c.l.b16 %v657
        %v738 = vunpack.c.l.b16 %v658
        %v739 = vunpack.c.l.b16 %v659
        %v740 = vunpack.c.l.b16 %v660
        %v741 = vunpack.c.l.b16 %v661
        %v742 = vunpack.c.l.b16 %v662
        %v743 = vunpack.c.l.b16 %v663
        %v744 = vpack.c.b16 %v729, %v728
        %v745 = vpack.c.b16 %v731, %v730
        %v746 = vpack.c.b16 %v733, %v732
        %v747 = vpack.c.b16 %v735, %v734
        %v748 = vpack.c.b16 %v737, %v736
        %v749 = vpack.c.b16 %v739, %v738
        %v750 = vpack.c.b16 %v741, %v740
        %v751 = vpack.c.b16 %v743, %v742
        %760 = vmatprep.subr.bf16.mxu0 0
        %761 = vmatpush1.bf16.msra.mxu0 %v744
        %762 = vmatprep.subr.bf16.mxu0 0
        %763 = vmatpush1.bf16.msra.mxu0 %v745
        %764 = vmatprep.subr.bf16.mxu0 0
        %765 = vmatpush1.bf16.msra.mxu0 %v746
        %766 = vmatprep.subr.bf16.mxu0 0
        %767 = vmatpush1.bf16.msra.mxu0 %v747
        %768 = vmatprep.subr.bf16.mxu0 0
        %769 = vmatpush1.bf16.msra.mxu0 %v748
        %770 = vmatprep.subr.bf16.mxu0 0
        %771 = vmatpush1.bf16.msra.mxu0 %v749
        %772 = vmatprep.subr.bf16.mxu0 0
        %773 = vmatpush1.bf16.msra.mxu0 %v750
        %774 = vmatprep.subr.bf16.mxu0 0
        %775 = vmatpush1.bf16.msra.mxu0 %v751
        %776 = vmatprep.subr.bf16.mxu0 0
        %777 = vmatpush1.bf16.msra.mxu0 0
        %778 = vmatprep.subr.bf16.mxu0 0
        %779 = vmatpush1.bf16.msra.mxu0 0
        %780 = vmatprep.subr.bf16.mxu0 0
        %781 = vmatpush1.bf16.msra.mxu0 0
        %782 = vmatprep.subr.bf16.mxu0 0
        %783 = vmatpush1.bf16.msra.mxu0 0
        %784 = vmatprep.subr.bf16.mxu0 0
        %785 = vmatpush1.bf16.msra.mxu0 0
        %786 = vmatprep.subr.bf16.mxu0 0
        %787 = vmatpush1.bf16.msra.mxu0 0
        %788 = vmatprep.subr.bf16.mxu0 0
        %789 = vmatpush1.bf16.msra.mxu0 0
        %790 = vmatprep.subr.bf16.mxu0 0
        %791 = vmatpush1.bf16.msra.mxu0 0
        %792 = vmatprep.mubr.bf16.mxu0 0
        %793 = vmatmul.mubr.bf16.gmra.mrb[0].mxu0 %v696
        %v794 = vpop.f32.mrb[0].mxu0
        %v795 = vadd.f32 0.0, %v794
        %v796 = vpop.f32.mrb[0].mxu0
        %v797 = vpop.f32.mrb[0].mxu0
        %v798 = vadd.f32 0.0, %v797
        %v799 = vpop.f32.mrb[0].mxu0
        %800 = vmatprep.mubr.bf16.mxu0 0
        %801 = vmatmul.mubr.bf16.gmra.mrb[0].mxu0 %v697
        %v802 = vpop.f32.mrb[0].mxu0
        %v803 = vadd.f32 0.0, %v802
        %v804 = vpop.f32.mrb[0].mxu0
        %v805 = vpop.f32.mrb[0].mxu0
        %v806 = vadd.f32 0.0, %v805
        %v807 = vpop.f32.mrb[0].mxu0
        %808 = vmatprep.mubr.bf16.mxu0 0
        %809 = vmatmul.mubr.bf16.gmra.mrb[0].mxu0 %v698
        %v810 = vpop.f32.mrb[0].mxu0
        %v811 = vadd.f32 0.0, %v810
        %v812 = vpop.f32.mrb[0].mxu0
        %v813 = vpop.f32.mrb[0].mxu0
        %v814 = vadd.f32 0.0, %v813
        %v815 = vpop.f32.mrb[0].mxu0
        %816 = vmatprep.mubr.bf16.mxu0 0
        %817 = vmatmul.mubr.bf16.gmra.mrb[0].mxu0 %v699
        %v818 = vpop.f32.mrb[0].mxu0
        %v819 = vadd.f32 0.0, %v818
        %v820 = vpop.f32.mrb[0].mxu0
        %v821 = vpop.f32.mrb[0].mxu0
        %v822 = vadd.f32 0.0, %v821
        %v823 = vpop.f32.mrb[0].mxu0
        %824 = vmatprep.mubr.bf16.mxu0 0
        %825 = vmatmul.mubr.bf16.gmra.mrb[0].mxu0 %v700
        %v826 = vpop.f32.mrb[0].mxu0
        %v827 = vadd.f32 0.0, %v826
        %v828 = vpop.f32.mrb[0].mxu0
        %v829 = vpop.f32.mrb[0].mxu0
        %v830 = vadd.f32 0.0, %v829
        %v831 = vpop.f32.mrb[0].mxu0
        %832 = vmatprep.mubr.bf16.mxu0 0
        %833 = vmatmul.mubr.bf16.gmra.mrb[0].mxu0 %v701
        %v834 = vpop.f32.mrb[0].mxu0
        %v835 = vadd.f32 0.0, %v834
        %v836 = vpop.f32.mrb[0].mxu0
        %v837 = vpop.f32.mrb[0].mxu0
        %v838 = vadd.f32 0.0, %v837
        %v839 = vpop.f32.mrb[0].mxu0
        %840 = vmatprep.mubr.bf16.mxu0 0
        %841 = vmatmul.mubr.bf16.gmra.mrb[0].mxu0 %v702
        %v842 = vpop.f32.mrb[0].mxu0
        %v843 = vadd.f32 0.0, %v842
        %v844 = vpop.f32.mrb[0].mxu0
        %v845 = vpop.f32.mrb[0].mxu0
        %v846 = vadd.f32 0.0, %v845
        %v847 = vpop.f32.mrb[0].mxu0
        %848 = vmatprep.mubr.bf16.mxu0 0
        %849 = vmatmul.mubr.bf16.gmra.mrb[0].mxu0 %v703
        %v850 = vpop.f32.mrb[0].mxu0
        %v851 = vadd.f32 0.0, %v850
        %v852 = vpop.f32.mrb[0].mxu0
        %v853 = vpop.f32.mrb[0].mxu0
        %v854 = vadd.f32 0.0, %v853
        %v855 = vpop.f32.mrb[0].mxu0
        %856 = vdwg.mxu0
        %v857 = vadd.f32 %v612, %v795
        %v858 = vadd.f32 %v613, %v798
        %v859 = vadd.f32 %v614, %v803
        %v860 = vadd.f32 %v615, %v806
        %v861 = vadd.f32 %v616, %v811
        %v862 = vadd.f32 %v617, %v814
        %v863 = vadd.f32 %v618, %v819
        %v864 = vadd.f32 %v619, %v822
        %v865 = vadd.f32 %v620, %v827
        %v866 = vadd.f32 %v621, %v830
        %v867 = vadd.f32 %v622, %v835
        %v868 = vadd.f32 %v623, %v838
        %v869 = vadd.f32 %v624, %v843
        %v870 = vadd.f32 %v625, %v846
        %v871 = vadd.f32 %v626, %v851
        %v872 = vadd.f32 %v627, %v854
        %873 = vst [vmem:[#allocation2] sm:$0xff] %v857
        %874 = vst [vmem:[#allocation2 + $0x8] sm:$0xff] %v858
        %875 = vst [vmem:[#allocation2 + $0x10] sm:$0xff] %v859
        %876 = vst [vmem:[#allocation2 + $0x18] sm:$0xff] %v860
        %877 = vst [vmem:[#allocation2 + $0x20] sm:$0xff] %v861
        %878 = vst [vmem:[#allocation2 + $0x28] sm:$0xff] %v862
        %879 = vst [vmem:[#allocation2 + $0x30] sm:$0xff] %v863
        %880 = vst [vmem:[#allocation2 + $0x38] sm:$0xff] %v864
        %881 = vst [vmem:[#allocation2 + $0x40] sm:$0xff] %v865
        %882 = vst [vmem:[#allocation2 + $0x48] sm:$0xff] %v866
        %883 = vst [vmem:[#allocation2 + $0x50] sm:$0xff] %v867
        %884 = vst [vmem:[#allocation2 + $0x58] sm:$0xff] %v868
        %885 = vst [vmem:[#allocation2 + $0x60] sm:$0xff] %v869
        %886 = vst [vmem:[#allocation2 + $0x68] sm:$0xff] %v870
        %887 = vst [vmem:[#allocation2 + $0x70] sm:$0xff] %v871
        %888 = vst [vmem:[#allocation2 + $0x78] sm:$0xff] %v872
        // Predicated region
        $region91: #{_forward.8} parent=77 // pred_check
          %p889 = pneg %p589
        $region92: #{_forward.8} parent=77 // pred_check_branch
          %891 = sbr.rel (%p889) target = $region94
        $region93: #{_forward.8} parent=77 // pred_region
          %v892 = vld [vmem:[#allocation2] sm:$0xff]
          %v893 = vld [vmem:[#allocation2 + $0x8] sm:$0xff]
          %v894 = vld [vmem:[#allocation2 + $0x10] sm:$0xff]
          %v895 = vld [vmem:[#allocation2 + $0x18] sm:$0xff]
          %v896 = vld [vmem:[#allocation2 + $0x20] sm:$0xff]
          %v897 = vld [vmem:[#allocation2 + $0x28] sm:$0xff]
          %v898 = vld [vmem:[#allocation2 + $0x30] sm:$0xff]
          %v899 = vld [vmem:[#allocation2 + $0x38] sm:$0xff]
          %v900 = vld [vmem:[#allocation2 + $0x40] sm:$0xff]
          %v901 = vld [vmem:[#allocation2 + $0x48] sm:$0xff]
          %v902 = vld [vmem:[#allocation2 + $0x50] sm:$0xff]
          %v903 = vld [vmem:[#allocation2 + $0x58] sm:$0xff]
          %v904 = vld [vmem:[#allocation2 + $0x60] sm:$0xff]
          %v905 = vld [vmem:[#allocation2 + $0x68] sm:$0xff]
          %v906 = vld [vmem:[#allocation2 + $0x70] sm:$0xff]
          %v907 = vld [vmem:[#allocation2 + $0x78] sm:$0xff]
          %s908 = smul.u32 %s24, 128
          %v909 = vld [vmem:[%s515] sm:$0xff]
          %v910 = vld [vmem:[%s515 + $0x8] sm:$0xff]
          %v911 = vld [vmem:[%s515 + $0x10] sm:$0xff]
          %v912 = vld [vmem:[%s515 + $0x18] sm:$0xff]
          %v913 = vld [vmem:[%s515 + $0x20] sm:$0xff]
          %v914 = vld [vmem:[%s515 + $0x28] sm:$0xff]
          %v915 = vld [vmem:[%s515 + $0x30] sm:$0xff]
          %v916 = vld [vmem:[%s515 + $0x38] sm:$0xff]
          %v917 = vld [vmem:[%s515 + $0x40] sm:$0xff]
          %v918 = vld [vmem:[%s515 + $0x48] sm:$0xff]
          %v919 = vld [vmem:[%s515 + $0x50] sm:$0xff]
          %v920 = vld [vmem:[%s515 + $0x58] sm:$0xff]
          %v921 = vld [vmem:[%s515 + $0x60] sm:$0xff]
          %v922 = vld [vmem:[%s515 + $0x68] sm:$0xff]
          %v923 = vld [vmem:[%s515 + $0x70] sm:$0xff]
          %v924 = vld [vmem:[%s515 + $0x78] sm:$0xff]
          %s925 = sshra.s32 %s908, 3
          %s926 = sand.u32 %s908, 7
          %s927 = smul.addr %s925, 4
          %s928 = scalar_lea.vmem %s2, %s927
          %v929 = vld [vmem:[%s928] sm:$0xf]
          %v930 = vld [vmem:[%s928 + $0x4] sm:$0xf]
          %v931 = vld [vmem:[%s928 + $0x8] sm:$0xf]
          %v932 = vld [vmem:[%s928 + $0xc] sm:$0xf]
          %v933 = vld [vmem:[%s928 + $0x10] sm:$0xf]
          %v934 = vld [vmem:[%s928 + $0x14] sm:$0xf]
          %v935 = vld [vmem:[%s928 + $0x18] sm:$0xf]
          %v936 = vld [vmem:[%s928 + $0x1c] sm:$0xf]
          %v937 = vld [vmem:[%s928 + $0x20] sm:$0xf]
          %v938 = vld [vmem:[%s928 + $0x24] sm:$0xf]
          %v939 = vld [vmem:[%s928 + $0x28] sm:$0xf]
          %v940 = vld [vmem:[%s928 + $0x2c] sm:$0xf]
          %v941 = vld [vmem:[%s928 + $0x30] sm:$0xf]
          %v942 = vld [vmem:[%s928 + $0x34] sm:$0xf]
          %v943 = vld [vmem:[%s928 + $0x38] sm:$0xf]
          %v944 = vld [vmem:[%s928 + $0x3c] sm:$0xf]
          %v945 = vunpack.c.l.bf16 %v929
          %v946 = vunpack.c.l.bf16 %v930
          %v947 = vunpack.c.l.bf16 %v931
          %v948 = vunpack.c.l.bf16 %v932
          %v949 = vunpack.c.l.bf16 %v933
          %v950 = vunpack.c.l.bf16 %v934
          %v951 = vunpack.c.l.bf16 %v935
          %v952 = vunpack.c.l.bf16 %v936
          %v953 = vunpack.c.l.bf16 %v937
          %v954 = vunpack.c.l.bf16 %v938
          %v955 = vunpack.c.l.bf16 %v939
          %v956 = vunpack.c.l.bf16 %v940
          %v957 = vunpack.c.l.bf16 %v941
          %v958 = vunpack.c.l.bf16 %v942
          %v959 = vunpack.c.l.bf16 %v943
          %v960 = vunpack.c.l.bf16 %v944
          %962 = vset.pattern.permute.xlu0 0
          %963 = vperm.xlu0 %962, %v909
          %v964 = vpop.permute.xlu0 %963
          %967 = vset.pattern.permute.xlu0 0
          %968 = vperm.xlu0 %967, %v910
          %v969 = vpop.permute.xlu0 %968
          %972 = vset.pattern.permute.xlu0 0
          %973 = vperm.xlu0 %972, %v911
          %v974 = vpop.permute.xlu0 %973
          %977 = vset.pattern.permute.xlu0 0
          %978 = vperm.xlu0 %977, %v912
          %v979 = vpop.permute.xlu0 %978
          %982 = vset.pattern.permute.xlu0 0
          %983 = vperm.xlu0 %982, %v913
          %v984 = vpop.permute.xlu0 %983
          %987 = vset.pattern.permute.xlu0 0
          %988 = vperm.xlu0 %987, %v914
          %v989 = vpop.permute.xlu0 %988
          %992 = vset.pattern.permute.xlu0 0
          %993 = vperm.xlu0 %992, %v915
          %v994 = vpop.permute.xlu0 %993
          %997 = vset.pattern.permute.xlu0 0
          %998 = vperm.xlu0 %997, %v916
          %v999 = vpop.permute.xlu0 %998
          %1002 = vset.pattern.permute.xlu0 0
          %1003 = vperm.xlu0 %1002, %v917
          %v1004 = vpop.permute.xlu0 %1003
          %1007 = vset.pattern.permute.xlu0 0
          %1008 = vperm.xlu0 %1007, %v918
          %v1009 = vpop.permute.xlu0 %1008
          %1012 = vset.pattern.permute.xlu0 0
          %1013 = vperm.xlu0 %1012, %v919
          %v1014 = vpop.permute.xlu0 %1013
          %1017 = vset.pattern.permute.xlu0 0
          %1018 = vperm.xlu0 %1017, %v920
          %v1019 = vpop.permute.xlu0 %1018
          %1022 = vset.pattern.permute.xlu0 0
          %1023 = vperm.xlu0 %1022, %v921
          %v1024 = vpop.permute.xlu0 %1023
          %1027 = vset.pattern.permute.xlu0 0
          %1028 = vperm.xlu0 %1027, %v922
          %v1029 = vpop.permute.xlu0 %1028
          %1032 = vset.pattern.permute.xlu0 0
          %1033 = vperm.xlu0 %1032, %v923
          %v1034 = vpop.permute.xlu0 %1033
          %1037 = vset.pattern.permute.xlu0 0
          %1038 = vperm.xlu0 %1037, %v924
          %v1039 = vpop.permute.xlu0 %1038
          %v1041 = vmul.f32 %v964, %v945
          %v1042 = vmul.f32 %v969, %v946
          %v1043 = vmul.f32 %v974, %v947
          %v1044 = vmul.f32 %v979, %v948
          %v1045 = vmul.f32 %v984, %v949
          %v1046 = vmul.f32 %v989, %v950
          %v1047 = vmul.f32 %v994, %v951
          %v1048 = vmul.f32 %v999, %v952
          %v1049 = vmul.f32 %v1004, %v953
          %v1050 = vmul.f32 %v1009, %v954
          %v1051 = vmul.f32 %v1014, %v955
          %v1052 = vmul.f32 %v1019, %v956
          %v1053 = vmul.f32 %v1024, %v957
          %v1054 = vmul.f32 %v1029, %v958
          %v1055 = vmul.f32 %v1034, %v959
          %v1056 = vmul.f32 %v1039, %v960
          %v1057 = vadd.f32 %v892, %v1041
          %v1058 = vadd.f32 %v893, %v1042
          %v1059 = vadd.f32 %v894, %v1043
          %v1060 = vadd.f32 %v895, %v1044
          %v1061 = vadd.f32 %v896, %v1045
          %v1062 = vadd.f32 %v897, %v1046
          %v1063 = vadd.f32 %v898, %v1047
          %v1064 = vadd.f32 %v899, %v1048
          %v1065 = vadd.f32 %v900, %v1049
          %v1066 = vadd.f32 %v901, %v1050
          %v1067 = vadd.f32 %v902, %v1051
          %v1068 = vadd.f32 %v903, %v1052
          %v1069 = vadd.f32 %v904, %v1053
          %v1070 = vadd.f32 %v905, %v1054
          %v1071 = vadd.f32 %v906, %v1055
          %v1072 = vadd.f32 %v907, %v1056
          %s1073 = sadd.s32 %s908, 128
          %s1074 = scalar_lea.vmem %s515, 128 [#allocation5]
          %v1075 = vld [vmem:[%s1074] sm:$0xff]
          %v1076 = vld [vmem:[%s1074 + $0x8] sm:$0xff]
          %v1077 = vld [vmem:[%s1074 + $0x10] sm:$0xff]
          %v1078 = vld [vmem:[%s1074 + $0x18] sm:$0xff]
          %v1079 = vld [vmem:[%s1074 + $0x20] sm:$0xff]
          %v1080 = vld [vmem:[%s1074 + $0x28] sm:$0xff]
          %v1081 = vld [vmem:[%s1074 + $0x30] sm:$0xff]
          %v1082 = vld [vmem:[%s1074 + $0x38] sm:$0xff]
          %v1083 = vld [vmem:[%s1074 + $0x40] sm:$0xff]
          %v1084 = vld [vmem:[%s1074 + $0x48] sm:$0xff]
          %v1085 = vld [vmem:[%s1074 + $0x50] sm:$0xff]
          %v1086 = vld [vmem:[%s1074 + $0x58] sm:$0xff]
          %v1087 = vld [vmem:[%s1074 + $0x60] sm:$0xff]
          %v1088 = vld [vmem:[%s1074 + $0x68] sm:$0xff]
          %v1089 = vld [vmem:[%s1074 + $0x70] sm:$0xff]
          %v1090 = vld [vmem:[%s1074 + $0x78] sm:$0xff]
          %s1091 = sshra.s32 %s1073, 3
          %s1092 = sand.u32 %s1073, 7
          %s1093 = smul.addr %s1091, 4
          %s1094 = scalar_lea.vmem %s2, %s1093
          %v1095 = vld [vmem:[%s1094] sm:$0xf]
          %v1096 = vld [vmem:[%s1094 + $0x4] sm:$0xf]
          %v1097 = vld [vmem:[%s1094 + $0x8] sm:$0xf]
          %v1098 = vld [vmem:[%s1094 + $0xc] sm:$0xf]
          %v1099 = vld [vmem:[%s1094 + $0x10] sm:$0xf]
          %v1100 = vld [vmem:[%s1094 + $0x14] sm:$0xf]
          %v1101 = vld [vmem:[%s1094 + $0x18] sm:$0xf]
          %v1102 = vld [vmem:[%s1094 + $0x1c] sm:$0xf]
          %v1103 = vld [vmem:[%s1094 + $0x20] sm:$0xf]
          %v1104 = vld [vmem:[%s1094 + $0x24] sm:$0xf]
          %v1105 = vld [vmem:[%s1094 + $0x28] sm:$0xf]
          %v1106 = vld [vmem:[%s1094 + $0x2c] sm:$0xf]
          %v1107 = vld [vmem:[%s1094 + $0x30] sm:$0xf]
          %v1108 = vld [vmem:[%s1094 + $0x34] sm:$0xf]
          %v1109 = vld [vmem:[%s1094 + $0x38] sm:$0xf]
          %v1110 = vld [vmem:[%s1094 + $0x3c] sm:$0xf]
          %v1111 = vunpack.c.l.bf16 %v1095
          %v1112 = vunpack.c.l.bf16 %v1096
          %v1113 = vunpack.c.l.bf16 %v1097
          %v1114 = vunpack.c.l.bf16 %v1098
          %v1115 = vunpack.c.l.bf16 %v1099
          %v1116 = vunpack.c.l.bf16 %v1100
          %v1117 = vunpack.c.l.bf16 %v1101
          %v1118 = vunpack.c.l.bf16 %v1102
          %v1119 = vunpack.c.l.bf16 %v1103
          %v1120 = vunpack.c.l.bf16 %v1104
          %v1121 = vunpack.c.l.bf16 %v1105
          %v1122 = vunpack.c.l.bf16 %v1106
          %v1123 = vunpack.c.l.bf16 %v1107
          %v1124 = vunpack.c.l.bf16 %v1108
          %v1125 = vunpack.c.l.bf16 %v1109
          %v1126 = vunpack.c.l.bf16 %v1110
          %1128 = vset.pattern.permute.xlu0 0
          %1129 = vperm.xlu0 %1128, %v1075
          %v1130 = vpop.permute.xlu0 %1129
          %1133 = vset.pattern.permute.xlu0 0
          %1134 = vperm.xlu0 %1133, %v1076
          %v1135 = vpop.permute.xlu0 %1134
          %1138 = vset.pattern.permute.xlu0 0
          %1139 = vperm.xlu0 %1138, %v1077
          %v1140 = vpop.permute.xlu0 %1139
          %1143 = vset.pattern.permute.xlu0 0
          %1144 = vperm.xlu0 %1143, %v1078
          %v1145 = vpop.permute.xlu0 %1144
          %1148 = vset.pattern.permute.xlu0 0
          %1149 = vperm.xlu0 %1148, %v1079
          %v1150 = vpop.permute.xlu0 %1149
          %1153 = vset.pattern.permute.xlu0 0
          %1154 = vperm.xlu0 %1153, %v1080
          %v1155 = vpop.permute.xlu0 %1154
          %1158 = vset.pattern.permute.xlu0 0
          %1159 = vperm.xlu0 %1158, %v1081
          %v1160 = vpop.permute.xlu0 %1159
          %1163 = vset.pattern.permute.xlu0 0
          %1164 = vperm.xlu0 %1163, %v1082
          %v1165 = vpop.permute.xlu0 %1164
          %1168 = vset.pattern.permute.xlu0 0
          %1169 = vperm.xlu0 %1168, %v1083
          %v1170 = vpop.permute.xlu0 %1169
          %1173 = vset.pattern.permute.xlu0 0
          %1174 = vperm.xlu0 %1173, %v1084
          %v1175 = vpop.permute.xlu0 %1174
          %1178 = vset.pattern.permute.xlu0 0
          %1179 = vperm.xlu0 %1178, %v1085
          %v1180 = vpop.permute.xlu0 %1179
          %1183 = vset.pattern.permute.xlu0 0
          %1184 = vperm.xlu0 %1183, %v1086
          %v1185 = vpop.permute.xlu0 %1184
          %1188 = vset.pattern.permute.xlu0 0
          %1189 = vperm.xlu0 %1188, %v1087
          %v1190 = vpop.permute.xlu0 %1189
          %1193 = vset.pattern.permute.xlu0 0
          %1194 = vperm.xlu0 %1193, %v1088
          %v1195 = vpop.permute.xlu0 %1194
          %1198 = vset.pattern.permute.xlu0 0
          %1199 = vperm.xlu0 %1198, %v1089
          %v1200 = vpop.permute.xlu0 %1199
          %1203 = vset.pattern.permute.xlu0 0
          %1204 = vperm.xlu0 %1203, %v1090
          %v1205 = vpop.permute.xlu0 %1204
          %v1207 = vmul.f32 %v1130, %v1111
          %v1208 = vmul.f32 %v1135, %v1112
          %v1209 = vmul.f32 %v1140, %v1113
          %v1210 = vmul.f32 %v1145, %v1114
          %v1211 = vmul.f32 %v1150, %v1115
          %v1212 = vmul.f32 %v1155, %v1116
          %v1213 = vmul.f32 %v1160, %v1117
          %v1214 = vmul.f32 %v1165, %v1118
          %v1215 = vmul.f32 %v1170, %v1119
          %v1216 = vmul.f32 %v1175, %v1120
          %v1217 = vmul.f32 %v1180, %v1121
          %v1218 = vmul.f32 %v1185, %v1122
          %v1219 = vmul.f32 %v1190, %v1123
          %v1220 = vmul.f32 %v1195, %v1124
          %v1221 = vmul.f32 %v1200, %v1125
          %v1222 = vmul.f32 %v1205, %v1126
          %v1223 = vadd.f32 %v1057, %v1207
          %v1224 = vadd.f32 %v1058, %v1208
          %v1225 = vadd.f32 %v1059, %v1209
          %v1226 = vadd.f32 %v1060, %v1210
          %v1227 = vadd.f32 %v1061, %v1211
          %v1228 = vadd.f32 %v1062, %v1212
          %v1229 = vadd.f32 %v1063, %v1213
          %v1230 = vadd.f32 %v1064, %v1214
          %v1231 = vadd.f32 %v1065, %v1215
          %v1232 = vadd.f32 %v1066, %v1216
          %v1233 = vadd.f32 %v1067, %v1217
          %v1234 = vadd.f32 %v1068, %v1218
          %v1235 = vadd.f32 %v1069, %v1219
          %v1236 = vadd.f32 %v1070, %v1220
          %v1237 = vadd.f32 %v1071, %v1221
          %v1238 = vadd.f32 %v1072, %v1222
          %s1239 = sadd.s32 %s908, 256
          %s1240 = scalar_lea.vmem %s515, 256 [#allocation5]
          %v1241 = vld [vmem:[%s1240] sm:$0xff]
          %v1242 = vld [vmem:[%s1240 + $0x8] sm:$0xff]
          %v1243 = vld [vmem:[%s1240 + $0x10] sm:$0xff]
          %v1244 = vld [vmem:[%s1240 + $0x18] sm:$0xff]
          %v1245 = vld [vmem:[%s1240 + $0x20] sm:$0xff]
          %v1246 = vld [vmem:[%s1240 + $0x28] sm:$0xff]
          %v1247 = vld [vmem:[%s1240 + $0x30] sm:$0xff]
          %v1248 = vld [vmem:[%s1240 + $0x38] sm:$0xff]
          %v1249 = vld [vmem:[%s1240 + $0x40] sm:$0xff]
          %v1250 = vld [vmem:[%s1240 + $0x48] sm:$0xff]
          %v1251 = vld [vmem:[%s1240 + $0x50] sm:$0xff]
          %v1252 = vld [vmem:[%s1240 + $0x58] sm:$0xff]
          %v1253 = vld [vmem:[%s1240 + $0x60] sm:$0xff]
          %v1254 = vld [vmem:[%s1240 + $0x68] sm:$0xff]
          %v1255 = vld [vmem:[%s1240 + $0x70] sm:$0xff]
          %v1256 = vld [vmem:[%s1240 + $0x78] sm:$0xff]
          %s1257 = sshra.s32 %s1239, 3
          %s1258 = sand.u32 %s1239, 7
          %s1259 = smul.addr %s1257, 4
          %s1260 = scalar_lea.vmem %s2, %s1259
          %v1261 = vld [vmem:[%s1260] sm:$0xf]
          %v1262 = vld [vmem:[%s1260 + $0x4] sm:$0xf]
          %v1263 = vld [vmem:[%s1260 + $0x8] sm:$0xf]
          %v1264 = vld [vmem:[%s1260 + $0xc] sm:$0xf]
          %v1265 = vld [vmem:[%s1260 + $0x10] sm:$0xf]
          %v1266 = vld [vmem:[%s1260 + $0x14] sm:$0xf]
          %v1267 = vld [vmem:[%s1260 + $0x18] sm:$0xf]
          %v1268 = vld [vmem:[%s1260 + $0x1c] sm:$0xf]
          %v1269 = vld [vmem:[%s1260 + $0x20] sm:$0xf]
          %v1270 = vld [vmem:[%s1260 + $0x24] sm:$0xf]
          %v1271 = vld [vmem:[%s1260 + $0x28] sm:$0xf]
          %v1272 = vld [vmem:[%s1260 + $0x2c] sm:$0xf]
          %v1273 = vld [vmem:[%s1260 + $0x30] sm:$0xf]
          %v1274 = vld [vmem:[%s1260 + $0x34] sm:$0xf]
          %v1275 = vld [vmem:[%s1260 + $0x38] sm:$0xf]
          %v1276 = vld [vmem:[%s1260 + $0x3c] sm:$0xf]
          %v1277 = vunpack.c.l.bf16 %v1261
          %v1278 = vunpack.c.l.bf16 %v1262
          %v1279 = vunpack.c.l.bf16 %v1263
          %v1280 = vunpack.c.l.bf16 %v1264
          %v1281 = vunpack.c.l.bf16 %v1265
          %v1282 = vunpack.c.l.bf16 %v1266
          %v1283 = vunpack.c.l.bf16 %v1267
          %v1284 = vunpack.c.l.bf16 %v1268
          %v1285 = vunpack.c.l.bf16 %v1269
          %v1286 = vunpack.c.l.bf16 %v1270
          %v1287 = vunpack.c.l.bf16 %v1271
          %v1288 = vunpack.c.l.bf16 %v1272
          %v1289 = vunpack.c.l.bf16 %v1273
          %v1290 = vunpack.c.l.bf16 %v1274
          %v1291 = vunpack.c.l.bf16 %v1275
          %v1292 = vunpack.c.l.bf16 %v1276
          %1294 = vset.pattern.permute.xlu0 0
          %1295 = vperm.xlu0 %1294, %v1241
          %v1296 = vpop.permute.xlu0 %1295
          %1299 = vset.pattern.permute.xlu0 0
          %1300 = vperm.xlu0 %1299, %v1242
          %v1301 = vpop.permute.xlu0 %1300
          %1304 = vset.pattern.permute.xlu0 0
          %1305 = vperm.xlu0 %1304, %v1243
          %v1306 = vpop.permute.xlu0 %1305
          %1309 = vset.pattern.permute.xlu0 0
          %1310 = vperm.xlu0 %1309, %v1244
          %v1311 = vpop.permute.xlu0 %1310
          %1314 = vset.pattern.permute.xlu0 0
          %1315 = vperm.xlu0 %1314, %v1245
          %v1316 = vpop.permute.xlu0 %1315
          %1319 = vset.pattern.permute.xlu0 0
          %1320 = vperm.xlu0 %1319, %v1246
          %v1321 = vpop.permute.xlu0 %1320
          %1324 = vset.pattern.permute.xlu0 0
          %1325 = vperm.xlu0 %1324, %v1247
          %v1326 = vpop.permute.xlu0 %1325
          %1329 = vset.pattern.permute.xlu0 0
          %1330 = vperm.xlu0 %1329, %v1248
          %v1331 = vpop.permute.xlu0 %1330
          %1334 = vset.pattern.permute.xlu0 0
          %1335 = vperm.xlu0 %1334, %v1249
          %v1336 = vpop.permute.xlu0 %1335
          %1339 = vset.pattern.permute.xlu0 0
          %1340 = vperm.xlu0 %1339, %v1250
          %v1341 = vpop.permute.xlu0 %1340
          %1344 = vset.pattern.permute.xlu0 0
          %1345 = vperm.xlu0 %1344, %v1251
          %v1346 = vpop.permute.xlu0 %1345
          %1349 = vset.pattern.permute.xlu0 0
          %1350 = vperm.xlu0 %1349, %v1252
          %v1351 = vpop.permute.xlu0 %1350
          %1354 = vset.pattern.permute.xlu0 0
          %1355 = vperm.xlu0 %1354, %v1253
          %v1356 = vpop.permute.xlu0 %1355
          %1359 = vset.pattern.permute.xlu0 0
          %1360 = vperm.xlu0 %1359, %v1254
          %v1361 = vpop.permute.xlu0 %1360
          %1364 = vset.pattern.permute.xlu0 0
          %1365 = vperm.xlu0 %1364, %v1255
          %v1366 = vpop.permute.xlu0 %1365
          %1369 = vset.pattern.permute.xlu0 0
          %1370 = vperm.xlu0 %1369, %v1256
          %v1371 = vpop.permute.xlu0 %1370
          %v1373 = vmul.f32 %v1296, %v1277
          %v1374 = vmul.f32 %v1301, %v1278
          %v1375 = vmul.f32 %v1306, %v1279
          %v1376 = vmul.f32 %v1311, %v1280
          %v1377 = vmul.f32 %v1316, %v1281
          %v1378 = vmul.f32 %v1321, %v1282
          %v1379 = vmul.f32 %v1326, %v1283
          %v1380 = vmul.f32 %v1331, %v1284
          %v1381 = vmul.f32 %v1336, %v1285
          %v1382 = vmul.f32 %v1341, %v1286
          %v1383 = vmul.f32 %v1346, %v1287
          %v1384 = vmul.f32 %v1351, %v1288
          %v1385 = vmul.f32 %v1356, %v1289
          %v1386 = vmul.f32 %v1361, %v1290
          %v1387 = vmul.f32 %v1366, %v1291
          %v1388 = vmul.f32 %v1371, %v1292
          %v1389 = vadd.f32 %v1223, %v1373
          %v1390 = vadd.f32 %v1224, %v1374
          %v1391 = vadd.f32 %v1225, %v1375
          %v1392 = vadd.f32 %v1226, %v1376
          %v1393 = vadd.f32 %v1227, %v1377
          %v1394 = vadd.f32 %v1228, %v1378
          %v1395 = vadd.f32 %v1229, %v1379
          %v1396 = vadd.f32 %v1230, %v1380
          %v1397 = vadd.f32 %v1231, %v1381
          %v1398 = vadd.f32 %v1232, %v1382
          %v1399 = vadd.f32 %v1233, %v1383
          %v1400 = vadd.f32 %v1234, %v1384
          %v1401 = vadd.f32 %v1235, %v1385
          %v1402 = vadd.f32 %v1236, %v1386
          %v1403 = vadd.f32 %v1237, %v1387
          %v1404 = vadd.f32 %v1238, %v1388
          %s1405 = sld [smem:[#allocation3]]
          %s1406 = sld [smem:[#allocation3 + $0x1]]
          %v1407 = vld [vmem:[%s577] sm:$0xff]
          %v1408 = vld [vmem:[%s577 + $0x8] sm:$0xff]
          %v1409 = vld [vmem:[%s577 + $0x10] sm:$0xff]
          %v1410 = vld [vmem:[%s577 + $0x18] sm:$0xff]
          %v1411 = vld [vmem:[%s577 + $0x20] sm:$0xff]
          %v1412 = vld [vmem:[%s577 + $0x28] sm:$0xff]
          %v1413 = vld [vmem:[%s577 + $0x30] sm:$0xff]
          %v1414 = vld [vmem:[%s577 + $0x38] sm:$0xff]
          %v1415 = vld [vmem:[%s577 + $0x40] sm:$0xff]
          %v1416 = vld [vmem:[%s577 + $0x48] sm:$0xff]
          %v1417 = vld [vmem:[%s577 + $0x50] sm:$0xff]
          %v1418 = vld [vmem:[%s577 + $0x58] sm:$0xff]
          %v1419 = vld [vmem:[%s577 + $0x60] sm:$0xff]
          %v1420 = vld [vmem:[%s577 + $0x68] sm:$0xff]
          %v1421 = vld [vmem:[%s577 + $0x70] sm:$0xff]
          %v1422 = vld [vmem:[%s577 + $0x78] sm:$0xff]
          %s1423 = ssub.f32 1.0, %s1405
          %v1424 = vstv %s1423
          %v1425 = vmul.f32 %v1424, %v1389
          %v1426 = vmul.f32 %v1424, %v1390
          %v1427 = vmul.f32 %v1424, %v1391
          %v1428 = vmul.f32 %v1424, %v1392
          %v1429 = vmul.f32 %v1424, %v1393
          %v1430 = vmul.f32 %v1424, %v1394
          %v1431 = vmul.f32 %v1424, %v1395
          %v1432 = vmul.f32 %v1424, %v1396
          %v1433 = vmul.f32 %v1424, %v1397
          %v1434 = vmul.f32 %v1424, %v1398
          %v1435 = vmul.f32 %v1424, %v1399
          %v1436 = vmul.f32 %v1424, %v1400
          %v1437 = vmul.f32 %v1424, %v1401
          %v1438 = vmul.f32 %v1424, %v1402
          %v1439 = vmul.f32 %v1424, %v1403
          %v1440 = vmul.f32 %v1424, %v1404
          %v1441 = vstv %s1405
          %v1442 = vmul.f32 %v1441, %v1407
          %v1443 = vmul.f32 %v1441, %v1408
          %v1444 = vmul.f32 %v1441, %v1409
          %v1445 = vmul.f32 %v1441, %v1410
          %v1446 = vmul.f32 %v1441, %v1411
          %v1447 = vmul.f32 %v1441, %v1412
          %v1448 = vmul.f32 %v1441, %v1413
          %v1449 = vmul.f32 %v1441, %v1414
          %v1450 = vmul.f32 %v1441, %v1415
          %v1451 = vmul.f32 %v1441, %v1416
          %v1452 = vmul.f32 %v1441, %v1417
          %v1453 = vmul.f32 %v1441, %v1418
          %v1454 = vmul.f32 %v1441, %v1419
          %v1455 = vmul.f32 %v1441, %v1420
          %v1456 = vmul.f32 %v1441, %v1421
          %v1457 = vmul.f32 %v1441, %v1422
          %v1458 = vadd.f32 %v1425, %v1442
          %v1459 = vadd.f32 %v1426, %v1443
          %v1460 = vadd.f32 %v1427, %v1444
          %v1461 = vadd.f32 %v1428, %v1445
          %v1462 = vadd.f32 %v1429, %v1446
          %v1463 = vadd.f32 %v1430, %v1447
          %v1464 = vadd.f32 %v1431, %v1448
          %v1465 = vadd.f32 %v1432, %v1449
          %v1466 = vadd.f32 %v1433, %v1450
          %v1467 = vadd.f32 %v1434, %v1451
          %v1468 = vadd.f32 %v1435, %v1452
          %v1469 = vadd.f32 %v1436, %v1453
          %v1470 = vadd.f32 %v1437, %v1454
          %v1471 = vadd.f32 %v1438, %v1455
          %v1472 = vadd.f32 %v1439, %v1456
          %v1473 = vadd.f32 %v1440, %v1457
          %v1474 = vpack.c.bf16 %v1459, %v1458
          %v1475 = vpack.c.bf16 %v1461, %v1460
          %v1476 = vpack.c.bf16 %v1463, %v1462
          %v1477 = vpack.c.bf16 %v1465, %v1464
          %v1478 = vpack.c.bf16 %v1467, %v1466
          %v1479 = vpack.c.bf16 %v1469, %v1468
          %v1480 = vpack.c.bf16 %v1471, %v1470
          %v1481 = vpack.c.bf16 %v1473, %v1472
          %v1482 = vld [vmem:[%s5] sm:$0xf]
          %v1483 = vld [vmem:[%s5 + $0x4] sm:$0xf]
          %v1484 = vld [vmem:[%s5 + $0x8] sm:$0xf]
          %v1485 = vld [vmem:[%s5 + $0xc] sm:$0xf]
          %v1486 = vld [vmem:[%s5 + $0x10] sm:$0xf]
          %v1487 = vld [vmem:[%s5 + $0x14] sm:$0xf]
          %v1488 = vld [vmem:[%s5 + $0x18] sm:$0xf]
          %v1489 = vld [vmem:[%s5 + $0x1c] sm:$0xf]
          %v1490 = vld [vmem:[%s5 + $0x20] sm:$0xf]
          %v1491 = vld [vmem:[%s5 + $0x24] sm:$0xf]
          %v1492 = vld [vmem:[%s5 + $0x28] sm:$0xf]
          %v1493 = vld [vmem:[%s5 + $0x2c] sm:$0xf]
          %v1494 = vld [vmem:[%s5 + $0x30] sm:$0xf]
          %v1495 = vld [vmem:[%s5 + $0x34] sm:$0xf]
          %v1496 = vld [vmem:[%s5 + $0x38] sm:$0xf]
          %v1497 = vld [vmem:[%s5 + $0x3c] sm:$0xf]
          %v1514 = vunpack.c.l.b16 %v1482
          %v1515 = vunpack.c.l.b16 %v1483
          %v1516 = vunpack.c.l.b16 %v1484
          %v1517 = vunpack.c.l.b16 %v1485
          %v1518 = vunpack.c.l.b16 %v1486
          %v1519 = vunpack.c.l.b16 %v1487
          %v1520 = vunpack.c.l.b16 %v1488
          %v1521 = vunpack.c.l.b16 %v1489
          %v1522 = vunpack.c.l.b16 %v1490
          %v1523 = vunpack.c.l.b16 %v1491
          %v1524 = vunpack.c.l.b16 %v1492
          %v1525 = vunpack.c.l.b16 %v1493
          %v1526 = vunpack.c.l.b16 %v1494
          %v1527 = vunpack.c.l.b16 %v1495
          %v1528 = vunpack.c.l.b16 %v1496
          %v1529 = vunpack.c.l.b16 %v1497
          %v1530 = vpack.c.b16 %v1515, %v1514
          %v1531 = vpack.c.b16 %v1517, %v1516
          %v1532 = vpack.c.b16 %v1519, %v1518
          %v1533 = vpack.c.b16 %v1521, %v1520
          %v1534 = vpack.c.b16 %v1523, %v1522
          %v1535 = vpack.c.b16 %v1525, %v1524
          %v1536 = vpack.c.b16 %v1527, %v1526
          %v1537 = vpack.c.b16 %v1529, %v1528
          %1546 = vmatprep.subr.bf16.mxu0 0
          %1547 = vmatpush1.bf16.msra.mxu0 %v1530
          %1548 = vmatprep.subr.bf16.mxu0 0
          %1549 = vmatpush1.bf16.msra.mxu0 %v1531
          %1550 = vmatprep.subr.bf16.mxu0 0
          %1551 = vmatpush1.bf16.msra.mxu0 %v1532
          %1552 = vmatprep.subr.bf16.mxu0 0
          %1553 = vmatpush1.bf16.msra.mxu0 %v1533
          %1554 = vmatprep.subr.bf16.mxu0 0
          %1555 = vmatpush1.bf16.msra.mxu0 %v1534
          %1556 = vmatprep.subr.bf16.mxu0 0
          %1557 = vmatpush1.bf16.msra.mxu0 %v1535
          %1558 = vmatprep.subr.bf16.mxu0 0
          %1559 = vmatpush1.bf16.msra.mxu0 %v1536
          %1560 = vmatprep.subr.bf16.mxu0 0
          %1561 = vmatpush1.bf16.msra.mxu0 %v1537
          %1562 = vmatprep.subr.bf16.mxu0 0
          %1563 = vmatpush1.bf16.msra.mxu0 0
          %1564 = vmatprep.subr.bf16.mxu0 0
          %1565 = vmatpush1.bf16.msra.mxu0 0
          %1566 = vmatprep.subr.bf16.mxu0 0
          %1567 = vmatpush1.bf16.msra.mxu0 0
          %1568 = vmatprep.subr.bf16.mxu0 0
          %1569 = vmatpush1.bf16.msra.mxu0 0
          %1570 = vmatprep.subr.bf16.mxu0 0
          %1571 = vmatpush1.bf16.msra.mxu0 0
          %1572 = vmatprep.subr.bf16.mxu0 0
          %1573 = vmatpush1.bf16.msra.mxu0 0
          %1574 = vmatprep.subr.bf16.mxu0 0
          %1575 = vmatpush1.bf16.msra.mxu0 0
          %1576 = vmatprep.subr.bf16.mxu0 0
          %1577 = vmatpush1.bf16.msra.mxu0 0
          %1578 = vmatprep.mubr.bf16.mxu0 0
          %1579 = vmatmul.mubr.bf16.gmra.mrb[0].mxu0 %v1474
          %v1580 = vpop.f32.mrb[0].mxu0
          %v1581 = vadd.f32 0.0, %v1580
          %v1582 = vpop.f32.mrb[0].mxu0
          %v1583 = vpop.f32.mrb[0].mxu0
          %v1584 = vadd.f32 0.0, %v1583
          %v1585 = vpop.f32.mrb[0].mxu0
          %1586 = vmatprep.mubr.bf16.mxu0 0
          %1587 = vmatmul.mubr.bf16.gmra.mrb[0].mxu0 %v1475
          %v1588 = vpop.f32.mrb[0].mxu0
          %v1589 = vadd.f32 0.0, %v1588
          %v1590 = vpop.f32.mrb[0].mxu0
          %v1591 = vpop.f32.mrb[0].mxu0
          %v1592 = vadd.f32 0.0, %v1591
          %v1593 = vpop.f32.mrb[0].mxu0
          %1594 = vmatprep.mubr.bf16.mxu0 0
          %1595 = vmatmul.mubr.bf16.gmra.mrb[0].mxu0 %v1476
          %v1596 = vpop.f32.mrb[0].mxu0
          %v1597 = vadd.f32 0.0, %v1596
          %v1598 = vpop.f32.mrb[0].mxu0
          %v1599 = vpop.f32.mrb[0].mxu0
          %v1600 = vadd.f32 0.0, %v1599
          %v1601 = vpop.f32.mrb[0].mxu0
          %1602 = vmatprep.mubr.bf16.mxu0 0
          %1603 = vmatmul.mubr.bf16.gmra.mrb[0].mxu0 %v1477
          %v1604 = vpop.f32.mrb[0].mxu0
          %v1605 = vadd.f32 0.0, %v1604
          %v1606 = vpop.f32.mrb[0].mxu0
          %v1607 = vpop.f32.mrb[0].mxu0
          %v1608 = vadd.f32 0.0, %v1607
          %v1609 = vpop.f32.mrb[0].mxu0
          %1610 = vmatprep.mubr.bf16.mxu0 0
          %1611 = vmatmul.mubr.bf16.gmra.mrb[0].mxu0 %v1478
          %v1612 = vpop.f32.mrb[0].mxu0
          %v1613 = vadd.f32 0.0, %v1612
          %v1614 = vpop.f32.mrb[0].mxu0
          %v1615 = vpop.f32.mrb[0].mxu0
          %v1616 = vadd.f32 0.0, %v1615
          %v1617 = vpop.f32.mrb[0].mxu0
          %1618 = vmatprep.mubr.bf16.mxu0 0
          %1619 = vmatmul.mubr.bf16.gmra.mrb[0].mxu0 %v1479
          %v1620 = vpop.f32.mrb[0].mxu0
          %v1621 = vadd.f32 0.0, %v1620
          %v1622 = vpop.f32.mrb[0].mxu0
          %v1623 = vpop.f32.mrb[0].mxu0
          %v1624 = vadd.f32 0.0, %v1623
          %v1625 = vpop.f32.mrb[0].mxu0
          %1626 = vmatprep.mubr.bf16.mxu0 0
          %1627 = vmatmul.mubr.bf16.gmra.mrb[0].mxu0 %v1480
          %v1628 = vpop.f32.mrb[0].mxu0
          %v1629 = vadd.f32 0.0, %v1628
          %v1630 = vpop.f32.mrb[0].mxu0
          %v1631 = vpop.f32.mrb[0].mxu0
          %v1632 = vadd.f32 0.0, %v1631
          %v1633 = vpop.f32.mrb[0].mxu0
          %1634 = vmatprep.mubr.bf16.mxu0 0
          %1635 = vmatmul.mubr.bf16.gmra.mrb[0].mxu0 %v1481
          %v1636 = vpop.f32.mrb[0].mxu0
          %v1637 = vadd.f32 0.0, %v1636
          %v1638 = vpop.f32.mrb[0].mxu0
          %v1639 = vpop.f32.mrb[0].mxu0
          %v1640 = vadd.f32 0.0, %v1639
          %v1641 = vpop.f32.mrb[0].mxu0
          %1642 = vdwg.mxu0
          %v1643 = vstv %s1406
          %v1644 = vmul.f32 %v1643, %v1581
          %v1645 = vmul.f32 %v1643, %v1584
          %v1646 = vmul.f32 %v1643, %v1589
          %v1647 = vmul.f32 %v1643, %v1592
          %v1648 = vmul.f32 %v1643, %v1597
          %v1649 = vmul.f32 %v1643, %v1600
          %v1650 = vmul.f32 %v1643, %v1605
          %v1651 = vmul.f32 %v1643, %v1608
          %v1652 = vmul.f32 %v1643, %v1613
          %v1653 = vmul.f32 %v1643, %v1616
          %v1654 = vmul.f32 %v1643, %v1621
          %v1655 = vmul.f32 %v1643, %v1624
          %v1656 = vmul.f32 %v1643, %v1629
          %v1657 = vmul.f32 %v1643, %v1632
          %v1658 = vmul.f32 %v1643, %v1637
          %v1659 = vmul.f32 %v1643, %v1640
          %s1660 = ssub.f32 1.0, %s1406
          %v1661 = vstv %s1660
          %v1662 = vmul.f32 %v1661, %v1458
          %v1663 = vmul.f32 %v1661, %v1459
          %v1664 = vmul.f32 %v1661, %v1460
          %v1665 = vmul.f32 %v1661, %v1461
          %v1666 = vmul.f32 %v1661, %v1462
          %v1667 = vmul.f32 %v1661, %v1463
          %v1668 = vmul.f32 %v1661, %v1464
          %v1669 = vmul.f32 %v1661, %v1465
          %v1670 = vmul.f32 %v1661, %v1466
          %v1671 = vmul.f32 %v1661, %v1467
          %v1672 = vmul.f32 %v1661, %v1468
          %v1673 = vmul.f32 %v1661, %v1469
          %v1674 = vmul.f32 %v1661, %v1470
          %v1675 = vmul.f32 %v1661, %v1471
          %v1676 = vmul.f32 %v1661, %v1472
          %v1677 = vmul.f32 %v1661, %v1473
          %v1678 = vadd.f32 %v1644, %v1662
          %v1679 = vadd.f32 %v1645, %v1663
          %v1680 = vadd.f32 %v1646, %v1664
          %v1681 = vadd.f32 %v1647, %v1665
          %v1682 = vadd.f32 %v1648, %v1666
          %v1683 = vadd.f32 %v1649, %v1667
          %v1684 = vadd.f32 %v1650, %v1668
          %v1685 = vadd.f32 %v1651, %v1669
          %v1686 = vadd.f32 %v1652, %v1670
          %v1687 = vadd.f32 %v1653, %v1671
          %v1688 = vadd.f32 %v1654, %v1672
          %v1689 = vadd.f32 %v1655, %v1673
          %v1690 = vadd.f32 %v1656, %v1674
          %v1691 = vadd.f32 %v1657, %v1675
          %v1692 = vadd.f32 %v1658, %v1676
          %v1693 = vadd.f32 %v1659, %v1677
          %v1694 = vmax.f32 %v1678, 0.0
          %v1695 = vmax.f32 %v1679, 0.0
          %v1696 = vmax.f32 %v1680, 0.0
          %v1697 = vmax.f32 %v1681, 0.0
          %v1698 = vmax.f32 %v1682, 0.0
          %v1699 = vmax.f32 %v1683, 0.0
          %v1700 = vmax.f32 %v1684, 0.0
          %v1701 = vmax.f32 %v1685, 0.0
          %v1702 = vmax.f32 %v1686, 0.0
          %v1703 = vmax.f32 %v1687, 0.0
          %v1704 = vmax.f32 %v1688, 0.0
          %v1705 = vmax.f32 %v1689, 0.0
          %v1706 = vmax.f32 %v1690, 0.0
          %v1707 = vmax.f32 %v1691, 0.0
          %v1708 = vmax.f32 %v1692, 0.0
          %v1709 = vmax.f32 %v1693, 0.0
          %v1710 = vpack.c.bf16 %v1695, %v1694
          %v1711 = vpack.c.bf16 %v1697, %v1696
          %v1712 = vpack.c.bf16 %v1699, %v1698
          %v1713 = vpack.c.bf16 %v1701, %v1700
          %v1714 = vpack.c.bf16 %v1703, %v1702
          %v1715 = vpack.c.bf16 %v1705, %v1704
          %v1716 = vpack.c.bf16 %v1707, %v1706
          %v1717 = vpack.c.bf16 %v1709, %v1708
          %v1726 = vunpack.c.l.b16 %v1710
          %v1727 = vunpack.c.h.b16 %v1710
          %v1728 = vunpack.c.l.b16 %v1711
          %v1729 = vunpack.c.h.b16 %v1711
          %v1730 = vunpack.c.l.b16 %v1712
          %v1731 = vunpack.c.h.b16 %v1712
          %v1732 = vunpack.c.l.b16 %v1713
          %v1733 = vunpack.c.h.b16 %v1713
          %v1734 = vunpack.c.l.b16 %v1714
          %v1735 = vunpack.c.h.b16 %v1714
          %v1736 = vunpack.c.l.b16 %v1715
          %v1737 = vunpack.c.h.b16 %v1715
          %v1738 = vunpack.c.l.b16 %v1716
          %v1739 = vunpack.c.h.b16 %v1716
          %v1740 = vunpack.c.l.b16 %v1717
          %v1741 = vunpack.c.h.b16 %v1717
          %v1742 = vpack.c.b16 %v1726, %v1726
          %v1743 = vpack.c.b16 %v1727, %v1727
          %v1744 = vpack.c.b16 %v1728, %v1728
          %v1745 = vpack.c.b16 %v1729, %v1729
          %v1746 = vpack.c.b16 %v1730, %v1730
          %v1747 = vpack.c.b16 %v1731, %v1731
          %v1748 = vpack.c.b16 %v1732, %v1732
          %v1749 = vpack.c.b16 %v1733, %v1733
          %v1750 = vpack.c.b16 %v1734, %v1734
          %v1751 = vpack.c.b16 %v1735, %v1735
          %v1752 = vpack.c.b16 %v1736, %v1736
          %v1753 = vpack.c.b16 %v1737, %v1737
          %v1754 = vpack.c.b16 %v1738, %v1738
          %v1755 = vpack.c.b16 %v1739, %v1739
          %v1756 = vpack.c.b16 %v1740, %v1740
          %v1757 = vpack.c.b16 %v1741, %v1741
          %1774 = vst [vmem:[%s585] sm:$0xf] %v1742
          %1775 = vst [vmem:[%s585 + $0x4] sm:$0xf] %v1743
          %1776 = vst [vmem:[%s585 + $0x8] sm:$0xf] %v1744
          %1777 = vst [vmem:[%s585 + $0xc] sm:$0xf] %v1745
          %1778 = vst [vmem:[%s585 + $0x10] sm:$0xf] %v1746
          %1779 = vst [vmem:[%s585 + $0x14] sm:$0xf] %v1747
          %1780 = vst [vmem:[%s585 + $0x18] sm:$0xf] %v1748
          %1781 = vst [vmem:[%s585 + $0x1c] sm:$0xf] %v1749
          %1782 = vst [vmem:[%s585 + $0x20] sm:$0xf] %v1750
          %1783 = vst [vmem:[%s585 + $0x24] sm:$0xf] %v1751
          %1784 = vst [vmem:[%s585 + $0x28] sm:$0xf] %v1752
          %1785 = vst [vmem:[%s585 + $0x2c] sm:$0xf] %v1753
          %1786 = vst [vmem:[%s585 + $0x30] sm:$0xf] %v1754
          %1787 = vst [vmem:[%s585 + $0x34] sm:$0xf] %v1755
          %1788 = vst [vmem:[%s585 + $0x38] sm:$0xf] %v1756
          %1789 = vst [vmem:[%s585 + $0x3c] sm:$0xf] %v1757
        $region94: #{_forward.8} parent=77 // pred_fallthru
          _
        %s1790 = sadd.s32 %s23, %s24
        %s1791 = smul.u32 16, %s1790
        %p1792 = scmp.lt.s32.totalorder %s1791, 47
        %s1793 = scalar_select %p1792, %s1791, 47
        %s1794 = smul.addr %s1793, 4
        %s1795 = scalar_lea.vmem %s6, %s1794
        // Predicated region
        $region95: #{_forward.8} parent=77 // pred_check
          %p1796 = pneg %p206
        $region96: #{_forward.8} parent=77 // pred_check_branch
          %1798 = sbr.rel (%p1796) target = $region98
        $region97: #{_forward.8} parent=77 // pred_region
          %s1799 = sadd.s32 %s23, %s24
          %s1800 = smul.u32 16, %s1799
        $region98: #{_forward.8} parent=77 // pred_fallthru
          _
      $region78: #{_forward.8} parent=5 // pred_fallthru
        _
      %p1801 = scmp.le.s32.totalorder 2, %s13
      // Predicated region
      $region99: #{_forward.8} parent=5 // pred_check
        %p1802 = pneg %p1801
      $region100: #{_forward.8} parent=5 // pred_check_branch
        %1804 = sbr.rel (%p1802) target = $region102
      $region101: #{_forward.8} parent=5 // pred_region
        %s1805 = ssub.s32 %s13, 2
        // Predicated region
        $region103: #{_forward.8} parent=101 // pred_check
          %p1806 = pneg %p212
        $region104: #{_forward.8} parent=101 // pred_check_branch
          %1808 = sbr.rel (%p1806) target = $region106
        $region105: #{_forward.8} parent=101 // pred_region
          %s1809 = sadd.s32 %s26, %s27
          %s1810 = smul.u32 16, %s1809
          %p1811 = scmp.lt.s32.totalorder %s1810, 47
          %s1812 = scalar_select %p1811, %s1810, 47
          %s1813 = smul.addr %s1812, 4
          %s1814 = scalar_lea.vmem %s6, %s1813
        $region106: #{_forward.8} parent=101 // pred_fallthru
          _
      $region102: #{_forward.8} parent=5 // pred_fallthru
        _
    $region6: #{_forward.8} parent=1 // loop_footer
      %s17 = sadd.s32 1, %s13
    $region7: #{_forward.8} parent=1 // loop_footer_branch
      %12 = sbr.rel target = $region3
    $region8: #{_forward.8} parent=1 // loop_exit
      _
    %1815 = vsyncpa [#allocation4], 1
    %s1816 = scalar_lea.sflag [#allocation4], 1
    %1817 = vsyncpa %s1816, 1

</llo_original>
